<compile_context>
chip_gen: v6e
topology: v6e:2x2x1
jax: 0.10.0
libtpu: 0.0.40
codegen_flags: <defaults>
</compile_context>

<pallas_src>
import jax
import jax.numpy as jnp
from jax import lax
from jax.experimental import pallas as pl
from jax.experimental.pallas import tpu as pltpu


# ----------------------------------------------------------------------------
# Fused Pallas kernel:
#   concat([x2, x1up], C) -> conv3x3 -> BN -> ReLU -> conv3x3 -> BN -> ReLU
# ----------------------------------------------------------------------------
def _up_double_conv_kernel(x2_ref, x1_ref, w1_ref, s1_ref, b1_ref,
                           w2t_ref, s2_ref, b2_ref, o_ref,
                           pad1, pad2, pbuf1, pbuf2):
    # x2_ref : (1, H, W, Ch)    bf16  skip connection
    # x1_ref : (1, H, W, Ch)    bf16  upsampled low-res input
    # w1_ref : (9*2Ch, Cmid)    bf16  stage-1 weights, im2col-flattened (dy,dx,cin)
    # s1/b1  : (1, Cmid)        f32   fused BN scale / (conv-bias + BN shift)
    # w2t_ref: (Cout, 9*Cmid)   bf16  stage-2 weights, flattened + pre-transposed
    # s2/b2  : (Cout, 1)        f32
    # o_ref  : (1, Cout, H*W)   f32   channel-major (NCHW) output tile
    _, H, W, Ch = x2_ref.shape
    Cin1 = 2 * Ch
    Cmid = w1_ref.shape[1]
    Cout = o_ref.shape[1]
    HW = H * W

    # ---- channel concat + 1px zero pad, entirely in VMEM (no HBM pad/concat)
    pad1[...] = jnp.zeros_like(pad1)        # border stays zero; interior overwritten
    pad1[1:H + 1, 1:W + 1, 0:Ch] = x2_ref[0].astype(jnp.float32)
    pad1[1:H + 1, 1:W + 1, Ch:Cin1] = x1_ref[0].astype(jnp.float32)

    # ---- stage 1: im2col (HW, 9*Cin1) -> one wide-K MXU matmul --------------
    for t in range(9):
        dy, dx = t // 3, t % 3
        pbuf1[:, t * Cin1:(t + 1) * Cin1] = (
            pad1[dy:dy + H, dx:dx + W, :].reshape(HW, Cin1))
    y1 = jnp.dot(pbuf1[...].astype(jnp.bfloat16), w1_ref[...],
                 preferred_element_type=jnp.float32)            # (HW, Cmid) f32
    y1 = jnp.maximum(y1 * s1_ref[...] + b1_ref[...], 0.0)       # f32 epilogue

    # ---- stage 2: pad the intermediate in VMEM, im2col, matmul --------------
    pad2[...] = jnp.zeros_like(pad2)
    pad2[1:H + 1, 1:W + 1, :] = y1.reshape(H, W, Cmid)
    for t in range(9):
        dy, dx = t // 3, t % 3
        pbuf2[:, t * Cmid:(t + 1) * Cmid] = (
            pad2[dy:dy + H, dx:dx + W, :].reshape(HW, Cmid))

    # A @ B^T form produces the output directly channel-major (Cout, HW):
    #   - lane-dense HBM store (HW is a multiple of 128, no masked vst)
    #   - already NCHW, so the wrapper does a free reshape, no transpose.
    y2t = lax.dot_general(
        w2t_ref[...], pbuf2[...].astype(jnp.bfloat16),
        dimension_numbers=(((1,), (1,)), ((), ())),
        preferred_element_type=jnp.float32)                     # (Cout, HW) f32
    y2t = jnp.maximum(y2t * s2_ref[...] + b2_ref[...], 0.0)
    o_ref[...] = y2t.reshape(1, Cout, HW).astype(o_ref.dtype)


def fused_up_double_conv(x2_nhwc, x1_nhwc, w1_flat, s1, b1, w2t_flat, s2, b2):
    """x2/x1: (N, H, W, Ch) bf16. Returns (N, Cout, H*W) f32 (channel-major)."""
    N, H, W, Ch = x2_nhwc.shape
    cin1 = 2 * Ch
    cmid = w1_flat.shape[1]
    cout = w2t_flat.shape[0]
    assert w1_flat.shape[0] == 9 * cin1
    assert w2t_flat.shape[1] == 9 * cmid

    grid_spec = pltpu.PrefetchScalarGridSpec(
        num_scalar_prefetch=0,
        grid=(N,),
        in_specs=[
            pl.BlockSpec((1, H, W, Ch), lambda n: (n, 0, 0, 0)),      # x2 (skip)
            pl.BlockSpec((1, H, W, Ch), lambda n: (n, 0, 0, 0)),      # x1 (upsampled)
            pl.BlockSpec((9 * cin1, cmid), lambda n: (0, 0)),         # w1 flat
            pl.BlockSpec((1, cmid), lambda n: (0, 0)),                # s1
            pl.BlockSpec((1, cmid), lambda n: (0, 0)),                # b1
            pl.BlockSpec((cout, 9 * cmid), lambda n: (0, 0)),         # w2^T flat
            pl.BlockSpec((cout, 1), lambda n: (0, 0)),                # s2
            pl.BlockSpec((cout, 1), lambda n: (0, 0)),                # b2
        ],
        out_specs=pl.BlockSpec((1, cout, H * W), lambda n: (n, 0, 0)),
        scratch_shapes=[
            pltpu.VMEM((H + 2, W + 2, cin1), jnp.float32),   # padded concat input
            pltpu.VMEM((H + 2, W + 2, cmid), jnp.float32),   # padded stage-1 output
            pltpu.VMEM((H * W, 9 * cin1), jnp.float32),      # stage-1 im2col patches
            pltpu.VMEM((H * W, 9 * cmid), jnp.float32),      # stage-2 im2col patches
        ],
    )
    # TODO(synk): for production sizes on v7x (64 MiB VMEM, 2 TCs) add a
    # row-block grid axis with 1-row halos instead of whole-image blocks.
    return pl.pallas_call(
        _up_double_conv_kernel,
        out_shape=jax.ShapeDtypeStruct((N, cout, H * W), jnp.float32),
        grid_spec=grid_spec,
        compiler_params=pltpu.CompilerParams(
            dimension_semantics=("parallel",),
            vmem_limit_bytes=32 * 1024 * 1024),
    )(x2_nhwc, x1_nhwc, w1_flat, s1, b1, w2t_flat, s2, b2)


# ----------------------------------------------------------------------------
# Glue: bilinear x2 upsample (align_corners=True) in plain JAX (NHWC).
# TODO(synk): the bilinear gather itself is not fused into the Pallas kernel.
# ----------------------------------------------------------------------------
def bilinear_upsample_x2_align_corners(x):  # NHWC, f32
    N, H, W, C = x.shape
    Ho, Wo = 2 * H, 2 * W

    def coords(n_in, n_out):
        if n_in == 1:
            return jnp.zeros((n_out,), jnp.float32)
        return jnp.arange(n_out, dtype=jnp.float32) * (n_in - 1) / (n_out - 1)

    ys = coords(H, Ho)
    xs = coords(W, Wo)
    y0 = jnp.floor(ys).astype(jnp.int32)
    y1 = jnp.minimum(y0 + 1, H - 1)
    x0 = jnp.floor(xs).astype(jnp.int32)
    x1 = jnp.minimum(x0 + 1, W - 1)
    wy = (ys - y0.astype(jnp.float32))[None, :, None, None]
    wx = (xs - x0.astype(jnp.float32))[None, None, :, None]

    top = x[:, y0, :, :]
    bot = x[:, y1, :, :]
    row = top * (1.0 - wy) + bot * wy           # (N, Ho, W, C)
    left = row[:, :, x0, :]
    right = row[:, :, x1, :]
    return left * (1.0 - wx) + right * wx       # (N, Ho, Wo, C)


# ----------------------------------------------------------------------------
# Parameter construction (deterministic, mirrors nn.Conv2d / nn.BatchNorm2d).
# BatchNorm applied in eval-mode semantics with freshly-initialized stats
# (running_mean=0, running_var=1, gamma=1, beta=0, eps=1e-5), fused with the
# conv bias into a single per-channel scale/bias.
# ----------------------------------------------------------------------------
def make_conv_bn_params(key, cin, cout, eps=1e-5):
    kw, kb = jax.random.split(key)
    # PyTorch conv weight layout (Cout, Cin, 3, 3) -> HWIO (3, 3, Cin, Cout)
    w_oihw = 0.1 * jax.random.normal(kw, (cout, cin, 3, 3), jnp.float32)
    w_hwio = jnp.transpose(w_oihw, (2, 3, 1, 0))
    conv_bias = 0.1 * jax.random.normal(kb, (cout,), jnp.float32)

    gamma = jnp.ones((cout,), jnp.float32)
    beta = jnp.zeros((cout,), jnp.float32)
    running_mean = jnp.zeros((cout,), jnp.float32)
    running_var = jnp.ones((cout,), jnp.float32)

    bn_scale = gamma / jnp.sqrt(running_var + eps)
    bn_shift = beta - running_mean * bn_scale
    fused_scale = bn_scale
    fused_bias = conv_bias * bn_scale + bn_shift
    return w_hwio, fused_scale, fused_bias


class UpPallas:
    """Pallas equivalent of Up(in_channels, out_channels, bilinear=True)."""

    def __init__(self, in_channels, out_channels, key):
        k1, k2 = jax.random.split(key)
        w1, s1, b1 = make_conv_bn_params(k1, in_channels, out_channels)
        w2, s2, b2 = make_conv_bn_params(k2, out_channels, out_channels)
        cin1, cmid, cout = in_channels, out_channels, out_channels

        # im2col-flattened weights: (3,3,cin,cout) -> (9*cin, cout),
        # ordered (dy, dx, cin) to match the in-kernel patch assembly.
        self.w1_flat = w1.reshape(9 * cin1, cmid).astype(jnp.bfloat16)
        self.s1 = s1.reshape(1, cmid).astype(jnp.float32)
        self.b1 = b1.reshape(1, cmid).astype(jnp.float32)
        # Stage-2 weights pre-transposed on the host so the kernel can emit a
        # lane-dense, channel-major (NCHW) output without any in-kernel transpose.
        self.w2t_flat = jnp.transpose(w2.reshape(9 * cmid, cout)).astype(jnp.bfloat16)
        self.s2 = s2.reshape(cout, 1).astype(jnp.float32)
        self.b2 = b2.reshape(cout, 1).astype(jnp.float32)
        self.cout = cout

    def __call__(self, x1_nchw, x2_nchw):
        # NCHW -> NHWC on the input side only (the kernel emits NCHW directly,
        # so there is no output-side transpose).
        x1 = jnp.transpose(x1_nchw, (0, 2, 3, 1)).astype(jnp.float32)
        x2 = jnp.transpose(x2_nchw, (0, 2, 3, 1)).astype(jnp.float32)

        # Bilinear x2 upsample (align_corners=True), in f32.
        x1 = bilinear_upsample_x2_align_corners(x1)

        # Pad x1 spatially to match x2 (same split as F.pad in the reference).
        diffY = x2.shape[1] - x1.shape[1]
        diffX = x2.shape[2] - x1.shape[2]
        if diffY != 0 or diffX != 0:
            x1 = jnp.pad(x1, ((0, 0),
                              (diffY // 2, diffY - diffY // 2),
                              (diffX // 2, diffX - diffX // 2),
                              (0, 0)))

        # Concat + pad + both conv/BN/ReLU stages: one fused Pallas kernel.
        N, H, W, _ = x2.shape
        out_flat = fused_up_double_conv(
            x2.astype(jnp.bfloat16), x1.astype(jnp.bfloat16),
            self.w1_flat, self.s1, self.b1,
            self.w2t_flat, self.s2, self.b2)

        # (N, Cout, H*W) -> (N, Cout, H, W): already NCHW, reshape is free.
        return out_flat.reshape(N, self.cout, H, W)


if __name__ == "__main__":
    key = jax.random.PRNGKey(0)
    k_x1, k_x2, k_params = jax.random.split(key, 3)

    # in_channels = 8 (4 from x2 + 4 from upsampled x1), out_channels = 4
    N, C_half, H, W = 2, 4, 8, 8
    x1 = jax.random.normal(k_x1, (N, C_half, H, W), jnp.float32)          # low-res
    x2 = jax.random.normal(k_x2, (N, C_half, 2 * H, 2 * W), jnp.float32)  # skip conn

    up = UpPallas(in_channels=2 * C_half, out_channels=4, key=k_params)
    out = up(x1, x2)
    out = jax.block_until_ready(out)

    assert out.shape == (N, 4, 2 * H, 2 * W), out.shape
    assert bool(jnp.all(jnp.isfinite(out)))
    print("KERNEL_OK")
</pallas_src>

<mosaic_0001>
module attributes {stable_mosaic.version = 11 : i64} {
  func.func @_up_double_conv_kernel(%arg0: i32, %arg1: memref<1x16x16x4xbf16, #tpu.memory_space<vmem>>, %arg2: memref<1x16x16x4xbf16, #tpu.memory_space<vmem>>, %arg3: memref<72x4xbf16, #tpu.memory_space<vmem>>, %arg4: memref<1x4xf32, #tpu.memory_space<vmem>>, %arg5: memref<1x4xf32, #tpu.memory_space<vmem>>, %arg6: memref<4x36xbf16, #tpu.memory_space<vmem>>, %arg7: memref<4x1xf32, #tpu.memory_space<vmem>>, %arg8: memref<4x1xf32, #tpu.memory_space<vmem>>, %arg9: memref<1x4x256xf32, #tpu.memory_space<vmem>>, %arg10: memref<18x18x8xf32, #tpu.memory_space<vmem>>, %arg11: memref<18x18x4xf32, #tpu.memory_space<vmem>>, %arg12: memref<256x72xf32, #tpu.memory_space<vmem>>, %arg13: memref<256x36xf32, #tpu.memory_space<vmem>>) attributes {dimension_semantics = [#tpu.dimension_semantics<parallel>], iteration_bounds = array<i64: 2>, scalar_prefetch = 0 : i64, scratch_operands = 4 : i64, tpu.core_type = #tpu.core_type<tc>, window_params = [{transform_indices = @transform_0, window_bounds = array<i64: 1, 16, 16, 4>}, {transform_indices = @transform_1, window_bounds = array<i64: 1, 16, 16, 4>}, {pipeline_mode = #tpu.pipeline_mode<synchronous>, transform_indices = @transform_2, window_bounds = array<i64: 72, 4>}, {pipeline_mode = #tpu.pipeline_mode<synchronous>, transform_indices = @transform_3, window_bounds = array<i64: 1, 4>}, {pipeline_mode = #tpu.pipeline_mode<synchronous>, transform_indices = @transform_4, window_bounds = array<i64: 1, 4>}, {pipeline_mode = #tpu.pipeline_mode<synchronous>, transform_indices = @transform_5, window_bounds = array<i64: 4, 36>}, {pipeline_mode = #tpu.pipeline_mode<synchronous>, transform_indices = @transform_6, window_bounds = array<i64: 4, 1>}, {pipeline_mode = #tpu.pipeline_mode<synchronous>, transform_indices = @transform_7, window_bounds = array<i64: 4, 1>}, {transform_indices = @transform_8, window_bounds = array<i64: 1, 4, 256>}]} {
    %cst = arith.constant 0.000000e+00 : f32
    %0 = vector.broadcast %cst : f32 to vector<18x18x8xf32>
    %c0 = arith.constant 0 : index
    %c0_0 = arith.constant 0 : index
    %c0_1 = arith.constant 0 : index
    %1 = vector.load %arg10[%c0, %c0_0, %c0_1] : memref<18x18x8xf32, #tpu.memory_space<vmem>>, vector<18x18x8xf32>
    tpu.vector_store %arg10[%c0, %c0_0, %c0_1], %0 {strides = array<i32>} : memref<18x18x8xf32, #tpu.memory_space<vmem>>, vector<18x18x8xf32>,
    %c0_2 = arith.constant 0 : index
    %c0_3 = arith.constant 0 : index
    %c0_4 = arith.constant 0 : index
    %c0_5 = arith.constant 0 : index
    %2 = vector.load %arg1[%c0_2, %c0_3, %c0_4, %c0_5] : memref<1x16x16x4xbf16, #tpu.memory_space<vmem>>, vector<1x16x16x4xbf16>
    %3 = vector.shape_cast %2 : vector<1x16x16x4xbf16> to vector<16x16x4xbf16>
    %4 = arith.extf %3 : vector<16x16x4xbf16> to vector<16x16x4xf32>
    %c1 = arith.constant 1 : index
    %c1_6 = arith.constant 1 : index
    %c0_7 = arith.constant 0 : index
    %5 = vector.load %arg10[%c1, %c1_6, %c0_7] : memref<18x18x8xf32, #tpu.memory_space<vmem>>, vector<16x16x4xf32>
    tpu.vector_store %arg10[%c1, %c1_6, %c0_7], %4 {strides = array<i32>} : memref<18x18x8xf32, #tpu.memory_space<vmem>>, vector<16x16x4xf32>,
    %c0_8 = arith.constant 0 : index
    %c0_9 = arith.constant 0 : index
    %c0_10 = arith.constant 0 : index
    %c0_11 = arith.constant 0 : index
    %6 = vector.load %arg2[%c0_8, %c0_9, %c0_10, %c0_11] : memref<1x16x16x4xbf16, #tpu.memory_space<vmem>>, vector<1x16x16x4xbf16>
    %7 = vector.shape_cast %6 : vector<1x16x16x4xbf16> to vector<16x16x4xbf16>
    %8 = arith.extf %7 : vector<16x16x4xbf16> to vector<16x16x4xf32>
    %c1_12 = arith.constant 1 : index
    %c1_13 = arith.constant 1 : index
    %c4 = arith.constant 4 : index
    %9 = vector.load %arg10[%c1_12, %c1_13, %c4] : memref<18x18x8xf32, #tpu.memory_space<vmem>>, vector<16x16x4xf32>
    tpu.vector_store %arg10[%c1_12, %c1_13, %c4], %8 {strides = array<i32>} : memref<18x18x8xf32, #tpu.memory_space<vmem>>, vector<16x16x4xf32>,
    %c0_14 = arith.constant 0 : index
    %c0_15 = arith.constant 0 : index
    %c0_16 = arith.constant 0 : index
    %10 = vector.load %arg10[%c0_14, %c0_15, %c0_16] : memref<18x18x8xf32, #tpu.memory_space<vmem>>, vector<16x16x8xf32>
    %11 = vector.shape_cast %10 : vector<16x16x8xf32> to vector<256x8xf32>
    %c0_17 = arith.constant 0 : index
    %c0_18 = arith.constant 0 : index
    %12 = vector.load %arg12[%c0_17, %c0_18] : memref<256x72xf32, #tpu.memory_space<vmem>>, vector<256x8xf32>
    tpu.vector_store %arg12[%c0_17, %c0_18], %11 {strides = array<i32>} : memref<256x72xf32, #tpu.memory_space<vmem>>, vector<256x8xf32>,
    %c0_19 = arith.constant 0 : index
    %c1_20 = arith.constant 1 : index
    %c0_21 = arith.constant 0 : index
    %13 = vector.load %arg10[%c0_19, %c1_20, %c0_21] : memref<18x18x8xf32, #tpu.memory_space<vmem>>, vector<16x16x8xf32>
    %14 = vector.shape_cast %13 : vector<16x16x8xf32> to vector<256x8xf32>
    %c0_22 = arith.constant 0 : index
    %c8 = arith.constant 8 : index
    %15 = vector.load %arg12[%c0_22, %c8] : memref<256x72xf32, #tpu.memory_space<vmem>>, vector<256x8xf32>
    tpu.vector_store %arg12[%c0_22, %c8], %14 {strides = array<i32>} : memref<256x72xf32, #tpu.memory_space<vmem>>, vector<256x8xf32>,
    %c0_23 = arith.constant 0 : index
    %c2 = arith.constant 2 : index
    %c0_24 = arith.constant 0 : index
    %16 = vector.load %arg10[%c0_23, %c2, %c0_24] : memref<18x18x8xf32, #tpu.memory_space<vmem>>, vector<16x16x8xf32>
    %17 = vector.shape_cast %16 : vector<16x16x8xf32> to vector<256x8xf32>
    %c0_25 = arith.constant 0 : index
    %c16 = arith.constant 16 : index
    %18 = vector.load %arg12[%c0_25, %c16] : memref<256x72xf32, #tpu.memory_space<vmem>>, vector<256x8xf32>
    tpu.vector_store %arg12[%c0_25, %c16], %17 {strides = array<i32>} : memref<256x72xf32, #tpu.memory_space<vmem>>, vector<256x8xf32>,
    %c1_26 = arith.constant 1 : index
    %c0_27 = arith.constant 0 : index
    %c0_28 = arith.constant 0 : index
    %19 = vector.load %arg10[%c1_26, %c0_27, %c0_28] : memref<18x18x8xf32, #tpu.memory_space<vmem>>, vector<16x16x8xf32>
    %20 = vector.shape_cast %19 : vector<16x16x8xf32> to vector<256x8xf32>
    %c0_29 = arith.constant 0 : index
    %c24 = arith.constant 24 : index
    %21 = vector.load %arg12[%c0_29, %c24] : memref<256x72xf32, #tpu.memory_space<vmem>>, vector<256x8xf32>
    tpu.vector_store %arg12[%c0_29, %c24], %20 {strides = array<i32>} : memref<256x72xf32, #tpu.memory_space<vmem>>, vector<256x8xf32>,
    %c1_30 = arith.constant 1 : index
    %c1_31 = arith.constant 1 : index
    %c0_32 = arith.constant 0 : index
    %22 = vector.load %arg10[%c1_30, %c1_31, %c0_32] : memref<18x18x8xf32, #tpu.memory_space<vmem>>, vector<16x16x8xf32>
    %23 = vector.shape_cast %22 : vector<16x16x8xf32> to vector<256x8xf32>
    %c0_33 = arith.constant 0 : index
    %c32 = arith.constant 32 : index
    %24 = vector.load %arg12[%c0_33, %c32] : memref<256x72xf32, #tpu.memory_space<vmem>>, vector<256x8xf32>
    tpu.vector_store %arg12[%c0_33, %c32], %23 {strides = array<i32>} : memref<256x72xf32, #tpu.memory_space<vmem>>, vector<256x8xf32>,
    %c1_34 = arith.constant 1 : index
    %c2_35 = arith.constant 2 : index
    %c0_36 = arith.constant 0 : index
    %25 = vector.load %arg10[%c1_34, %c2_35, %c0_36] : memref<18x18x8xf32, #tpu.memory_space<vmem>>, vector<16x16x8xf32>
    %26 = vector.shape_cast %25 : vector<16x16x8xf32> to vector<256x8xf32>
    %c0_37 = arith.constant 0 : index
    %c40 = arith.constant 40 : index
    %27 = vector.load %arg12[%c0_37, %c40] : memref<256x72xf32, #tpu.memory_space<vmem>>, vector<256x8xf32>
    tpu.vector_store %arg12[%c0_37, %c40], %26 {strides = array<i32>} : memref<256x72xf32, #tpu.memory_space<vmem>>, vector<256x8xf32>,
    %c2_38 = arith.constant 2 : index
    %c0_39 = arith.constant 0 : index
    %c0_40 = arith.constant 0 : index
    %28 = vector.load %arg10[%c2_38, %c0_39, %c0_40] : memref<18x18x8xf32, #tpu.memory_space<vmem>>, vector<16x16x8xf32>
    %29 = vector.shape_cast %28 : vector<16x16x8xf32> to vector<256x8xf32>
    %c0_41 = arith.constant 0 : index
    %c48 = arith.constant 48 : index
    %30 = vector.load %arg12[%c0_41, %c48] : memref<256x72xf32, #tpu.memory_space<vmem>>, vector<256x8xf32>
    tpu.vector_store %arg12[%c0_41, %c48], %29 {strides = array<i32>} : memref<256x72xf32, #tpu.memory_space<vmem>>, vector<256x8xf32>,
    %c2_42 = arith.constant 2 : index
    %c1_43 = arith.constant 1 : index
    %c0_44 = arith.constant 0 : index
    %31 = vector.load %arg10[%c2_42, %c1_43, %c0_44] : memref<18x18x8xf32, #tpu.memory_space<vmem>>, vector<16x16x8xf32>
    %32 = vector.shape_cast %31 : vector<16x16x8xf32> to vector<256x8xf32>
    %c0_45 = arith.constant 0 : index
    %c56 = arith.constant 56 : index
    %33 = vector.load %arg12[%c0_45, %c56] : memref<256x72xf32, #tpu.memory_space<vmem>>, vector<256x8xf32>
    tpu.vector_store %arg12[%c0_45, %c56], %32 {strides = array<i32>} : memref<256x72xf32, #tpu.memory_space<vmem>>, vector<256x8xf32>,
    %c2_46 = arith.constant 2 : index
    %c2_47 = arith.constant 2 : index
    %c0_48 = arith.constant 0 : index
    %34 = vector.load %arg10[%c2_46, %c2_47, %c0_48] : memref<18x18x8xf32, #tpu.memory_space<vmem>>, vector<16x16x8xf32>
    %35 = vector.shape_cast %34 : vector<16x16x8xf32> to vector<256x8xf32>
    %c0_49 = arith.constant 0 : index
    %c64 = arith.constant 64 : index
    %36 = vector.load %arg12[%c0_49, %c64] : memref<256x72xf32, #tpu.memory_space<vmem>>, vector<256x8xf32>
    tpu.vector_store %arg12[%c0_49, %c64], %35 {strides = array<i32>} : memref<256x72xf32, #tpu.memory_space<vmem>>, vector<256x8xf32>,
    %c0_50 = arith.constant 0 : index
    %c0_51 = arith.constant 0 : index
    %37 = vector.load %arg12[%c0_50, %c0_51] : memref<256x72xf32, #tpu.memory_space<vmem>>, vector<256x72xf32>
    %38 = arith.truncf %37 : vector<256x72xf32> to vector<256x72xbf16>
    %c0_52 = arith.constant 0 : index
    %c0_53 = arith.constant 0 : index
    %39 = vector.load %arg3[%c0_52, %c0_53] : memref<72x4xbf16, #tpu.memory_space<vmem>>, vector<72x4xbf16>
    %cst_54 = arith.constant dense<0.000000e+00> : vector<256x4xf32>
    %40 = tpu.matmul %38, %39, %cst_54 {dimension_numbers = #tpu.dot_dimension_numbers<[1], [0], [0], [1], [0, 0, 1, 1], [], []>} : vector<256x72xbf16>, vector<72x4xbf16>, vector<256x4xf32> -> vector<256x4xf32>
    %c0_55 = arith.constant 0 : index
    %c0_56 = arith.constant 0 : index
    %41 = vector.load %arg4[%c0_55, %c0_56] : memref<1x4xf32, #tpu.memory_space<vmem>>, vector<1x4xf32>
    %42 = vector.broadcast %41 : vector<1x4xf32> to vector<256x4xf32>
    %43 = arith.mulf %40, %42 : vector<256x4xf32>
    %c0_57 = arith.constant 0 : index
    %c0_58 = arith.constant 0 : index
    %44 = vector.load %arg5[%c0_57, %c0_58] : memref<1x4xf32, #tpu.memory_space<vmem>>, vector<1x4xf32>
    %45 = vector.broadcast %44 : vector<1x4xf32> to vector<256x4xf32>
    %46 = arith.addf %43, %45 : vector<256x4xf32>
    %cst_59 = arith.constant 0.000000e+00 : f32
    %47 = vector.broadcast %cst_59 : f32 to vector<256x4xf32>
    %48 = arith.maximumf %46, %47 : vector<256x4xf32>
    %cst_60 = arith.constant 0.000000e+00 : f32
    %49 = vector.broadcast %cst_60 : f32 to vector<18x18x4xf32>
    %c0_61 = arith.constant 0 : index
    %c0_62 = arith.constant 0 : index
    %c0_63 = arith.constant 0 : index
    %50 = vector.load %arg11[%c0_61, %c0_62, %c0_63] : memref<18x18x4xf32, #tpu.memory_space<vmem>>, vector<18x18x4xf32>
    tpu.vector_store %arg11[%c0_61, %c0_62, %c0_63], %49 {strides = array<i32>} : memref<18x18x4xf32, #tpu.memory_space<vmem>>, vector<18x18x4xf32>,
    %51 = vector.shape_cast %48 : vector<256x4xf32> to vector<16x16x4xf32>
    %c1_64 = arith.constant 1 : index
    %c1_65 = arith.constant 1 : index
    %c0_66 = arith.constant 0 : index
    %52 = vector.load %arg11[%c1_64, %c1_65, %c0_66] : memref<18x18x4xf32, #tpu.memory_space<vmem>>, vector<16x16x4xf32>
    tpu.vector_store %arg11[%c1_64, %c1_65, %c0_66], %51 {strides = array<i32>} : memref<18x18x4xf32, #tpu.memory_space<vmem>>, vector<16x16x4xf32>,
    %c0_67 = arith.constant 0 : index
    %c0_68 = arith.constant 0 : index
    %c0_69 = arith.constant 0 : index
    %53 = vector.load %arg11[%c0_67, %c0_68, %c0_69] : memref<18x18x4xf32, #tpu.memory_space<vmem>>, vector<16x16x4xf32>
    %54 = vector.shape_cast %53 : vector<16x16x4xf32> to vector<256x4xf32>
    %c0_70 = arith.constant 0 : index
    %c0_71 = arith.constant 0 : index
    %55 = vector.load %arg13[%c0_70, %c0_71] : memref<256x36xf32, #tpu.memory_space<vmem>>, vector<256x4xf32>
    tpu.vector_store %arg13[%c0_70, %c0_71], %54 {strides = array<i32>} : memref<256x36xf32, #tpu.memory_space<vmem>>, vector<256x4xf32>,
    %c0_72 = arith.constant 0 : index
    %c1_73 = arith.constant 1 : index
    %c0_74 = arith.constant 0 : index
    %56 = vector.load %arg11[%c0_72, %c1_73, %c0_74] : memref<18x18x4xf32, #tpu.memory_space<vmem>>, vector<16x16x4xf32>
    %57 = vector.shape_cast %56 : vector<16x16x4xf32> to vector<256x4xf32>
    %c0_75 = arith.constant 0 : index
    %c4_76 = arith.constant 4 : index
    %58 = vector.load %arg13[%c0_75, %c4_76] : memref<256x36xf32, #tpu.memory_space<vmem>>, vector<256x4xf32>
    tpu.vector_store %arg13[%c0_75, %c4_76], %57 {strides = array<i32>} : memref<256x36xf32, #tpu.memory_space<vmem>>, vector<256x4xf32>,
    %c0_77 = arith.constant 0 : index
    %c2_78 = arith.constant 2 : index
    %c0_79 = arith.constant 0 : index
    %59 = vector.load %arg11[%c0_77, %c2_78, %c0_79] : memref<18x18x4xf32, #tpu.memory_space<vmem>>, vector<16x16x4xf32>
    %60 = vector.shape_cast %59 : vector<16x16x4xf32> to vector<256x4xf32>
    %c0_80 = arith.constant 0 : index
    %c8_81 = arith.constant 8 : index
    %61 = vector.load %arg13[%c0_80, %c8_81] : memref<256x36xf32, #tpu.memory_space<vmem>>, vector<256x4xf32>
    tpu.vector_store %arg13[%c0_80, %c8_81], %60 {strides = array<i32>} : memref<256x36xf32, #tpu.memory_space<vmem>>, vector<256x4xf32>,
    %c1_82 = arith.constant 1 : index
    %c0_83 = arith.constant 0 : index
    %c0_84 = arith.constant 0 : index
    %62 = vector.load %arg11[%c1_82, %c0_83, %c0_84] : memref<18x18x4xf32, #tpu.memory_space<vmem>>, vector<16x16x4xf32>
    %63 = vector.shape_cast %62 : vector<16x16x4xf32> to vector<256x4xf32>
    %c0_85 = arith.constant 0 : index
    %c12 = arith.constant 12 : index
    %64 = vector.load %arg13[%c0_85, %c12] : memref<256x36xf32, #tpu.memory_space<vmem>>, vector<256x4xf32>
    tpu.vector_store %arg13[%c0_85, %c12], %63 {strides = array<i32>} : memref<256x36xf32, #tpu.memory_space<vmem>>, vector<256x4xf32>,
    %c1_86 = arith.constant 1 : index
    %c1_87 = arith.constant 1 : index
    %c0_88 = arith.constant 0 : index
    %65 = vector.load %arg11[%c1_86, %c1_87, %c0_88] : memref<18x18x4xf32, #tpu.memory_space<vmem>>, vector<16x16x4xf32>
    %66 = vector.shape_cast %65 : vector<16x16x4xf32> to vector<256x4xf32>
    %c0_89 = arith.constant 0 : index
    %c16_90 = arith.constant 16 : index
    %67 = vector.load %arg13[%c0_89, %c16_90] : memref<256x36xf32, #tpu.memory_space<vmem>>, vector<256x4xf32>
    tpu.vector_store %arg13[%c0_89, %c16_90], %66 {strides = array<i32>} : memref<256x36xf32, #tpu.memory_space<vmem>>, vector<256x4xf32>,
    %c1_91 = arith.constant 1 : index
    %c2_92 = arith.constant 2 : index
    %c0_93 = arith.constant 0 : index
    %68 = vector.load %arg11[%c1_91, %c2_92, %c0_93] : memref<18x18x4xf32, #tpu.memory_space<vmem>>, vector<16x16x4xf32>
    %69 = vector.shape_cast %68 : vector<16x16x4xf32> to vector<256x4xf32>
    %c0_94 = arith.constant 0 : index
    %c20 = arith.constant 20 : index
    %70 = vector.load %arg13[%c0_94, %c20] : memref<256x36xf32, #tpu.memory_space<vmem>>, vector<256x4xf32>
    tpu.vector_store %arg13[%c0_94, %c20], %69 {strides = array<i32>} : memref<256x36xf32, #tpu.memory_space<vmem>>, vector<256x4xf32>,
    %c2_95 = arith.constant 2 : index
    %c0_96 = arith.constant 0 : index
    %c0_97 = arith.constant 0 : index
    %71 = vector.load %arg11[%c2_95, %c0_96, %c0_97] : memref<18x18x4xf32, #tpu.memory_space<vmem>>, vector<16x16x4xf32>
    %72 = vector.shape_cast %71 : vector<16x16x4xf32> to vector<256x4xf32>
    %c0_98 = arith.constant 0 : index
    %c24_99 = arith.constant 24 : index
    %73 = vector.load %arg13[%c0_98, %c24_99] : memref<256x36xf32, #tpu.memory_space<vmem>>, vector<256x4xf32>
    tpu.vector_store %arg13[%c0_98, %c24_99], %72 {strides = array<i32>} : memref<256x36xf32, #tpu.memory_space<vmem>>, vector<256x4xf32>,
    %c2_100 = arith.constant 2 : index
    %c1_101 = arith.constant 1 : index
    %c0_102 = arith.constant 0 : index
    %74 = vector.load %arg11[%c2_100, %c1_101, %c0_102] : memref<18x18x4xf32, #tpu.memory_space<vmem>>, vector<16x16x4xf32>
    %75 = vector.shape_cast %74 : vector<16x16x4xf32> to vector<256x4xf32>
    %c0_103 = arith.constant 0 : index
    %c28 = arith.constant 28 : index
    %76 = vector.load %arg13[%c0_103, %c28] : memref<256x36xf32, #tpu.memory_space<vmem>>, vector<256x4xf32>
    tpu.vector_store %arg13[%c0_103, %c28], %75 {strides = array<i32>} : memref<256x36xf32, #tpu.memory_space<vmem>>, vector<256x4xf32>,
    %c2_104 = arith.constant 2 : index
    %c2_105 = arith.constant 2 : index
    %c0_106 = arith.constant 0 : index
    %77 = vector.load %arg11[%c2_104, %c2_105, %c0_106] : memref<18x18x4xf32, #tpu.memory_space<vmem>>, vector<16x16x4xf32>
    %78 = vector.shape_cast %77 : vector<16x16x4xf32> to vector<256x4xf32>
    %c0_107 = arith.constant 0 : index
    %c32_108 = arith.constant 32 : index
    %79 = vector.load %arg13[%c0_107, %c32_108] : memref<256x36xf32, #tpu.memory_space<vmem>>, vector<256x4xf32>
    tpu.vector_store %arg13[%c0_107, %c32_108], %78 {strides = array<i32>} : memref<256x36xf32, #tpu.memory_space<vmem>>, vector<256x4xf32>,
    %c0_109 = arith.constant 0 : index
    %c0_110 = arith.constant 0 : index
    %80 = vector.load %arg6[%c0_109, %c0_110] : memref<4x36xbf16, #tpu.memory_space<vmem>>, vector<4x36xbf16>
    %c0_111 = arith.constant 0 : index
    %c0_112 = arith.constant 0 : index
    %81 = vector.load %arg13[%c0_111, %c0_112] : memref<256x36xf32, #tpu.memory_space<vmem>>, vector<256x36xf32>
    %82 = arith.truncf %81 : vector<256x36xf32> to vector<256x36xbf16>
    %cst_113 = arith.constant dense<0.000000e+00> : vector<4x256xf32>
    %83 = tpu.matmul %80, %82, %cst_113 {dimension_numbers = #tpu.dot_dimension_numbers<[1], [1], [0], [0], [0, 0, 1, 0], [], []>} : vector<4x36xbf16>, vector<256x36xbf16>, vector<4x256xf32> -> vector<4x256xf32>
    %c0_114 = arith.constant 0 : index
    %c0_115 = arith.constant 0 : index
    %84 = vector.load %arg7[%c0_114, %c0_115] : memref<4x1xf32, #tpu.memory_space<vmem>>, vector<4x1xf32>
    %85 = vector.broadcast %84 : vector<4x1xf32> to vector<4x256xf32>
    %86 = arith.mulf %83, %85 : vector<4x256xf32>
    %c0_116 = arith.constant 0 : index
    %c0_117 = arith.constant 0 : index
    %87 = vector.load %arg8[%c0_116, %c0_117] : memref<4x1xf32, #tpu.memory_space<vmem>>, vector<4x1xf32>
    %88 = vector.broadcast %87 : vector<4x1xf32> to vector<4x256xf32>
    %89 = arith.addf %86, %88 : vector<4x256xf32>
    %cst_118 = arith.constant 0.000000e+00 : f32
    %90 = vector.broadcast %cst_118 : f32 to vector<4x256xf32>
    %91 = arith.maximumf %89, %90 : vector<4x256xf32>
    %92 = vector.shape_cast %91 : vector<4x256xf32> to vector<1x4x256xf32>
    %c0_119 = arith.constant 0 : index
    %c0_120 = arith.constant 0 : index
    %c0_121 = arith.constant 0 : index
    %93 = vector.load %arg9[%c0_119, %c0_120, %c0_121] : memref<1x4x256xf32, #tpu.memory_space<vmem>>, vector<1x4x256xf32>
    tpu.vector_store %arg9[%c0_119, %c0_120, %c0_121], %92 {strides = array<i32>} : memref<1x4x256xf32, #tpu.memory_space<vmem>>, vector<1x4x256xf32>,
    return
  }
  func.func @transform_0(%arg0: i32) -> (i32, i32, i32, i32) {
    %c0_i32 = arith.constant 0 : i32
    %c0_i32_0 = arith.constant 0 : i32
    %c0_i32_1 = arith.constant 0 : i32
    %c0_i32_2 = arith.constant 0 : i32
    return %arg0, %c0_i32, %c0_i32_0, %c0_i32_1 : i32, i32, i32, i32
  }
  func.func @transform_1(%arg0: i32) -> (i32, i32, i32, i32) {
    %c0_i32 = arith.constant 0 : i32
    %c0_i32_0 = arith.constant 0 : i32
    %c0_i32_1 = arith.constant 0 : i32
    %c0_i32_2 = arith.constant 0 : i32
    return %arg0, %c0_i32, %c0_i32_0, %c0_i32_1 : i32, i32, i32, i32
  }
  func.func @transform_2(%arg0: i32) -> (i32, i32) {
    %c0_i32 = arith.constant 0 : i32
    %c0_i32_0 = arith.constant 0 : i32
    %c0_i32_1 = arith.constant 0 : i32
    return %c0_i32, %c0_i32_0 : i32, i32
  }
  func.func @transform_3(%arg0: i32) -> (i32, i32) {
    %c0_i32 = arith.constant 0 : i32
    %c0_i32_0 = arith.constant 0 : i32
    %c0_i32_1 = arith.constant 0 : i32
    return %c0_i32, %c0_i32_0 : i32, i32
  }
  func.func @transform_4(%arg0: i32) -> (i32, i32) {
    %c0_i32 = arith.constant 0 : i32
    %c0_i32_0 = arith.constant 0 : i32
    %c0_i32_1 = arith.constant 0 : i32
    return %c0_i32, %c0_i32_0 : i32, i32
  }
  func.func @transform_5(%arg0: i32) -> (i32, i32) {
    %c0_i32 = arith.constant 0 : i32
    %c0_i32_0 = arith.constant 0 : i32
    %c0_i32_1 = arith.constant 0 : i32
    return %c0_i32, %c0_i32_0 : i32, i32
  }
  func.func @transform_6(%arg0: i32) -> (i32, i32) {
    %c0_i32 = arith.constant 0 : i32
    %c0_i32_0 = arith.constant 0 : i32
    %c0_i32_1 = arith.constant 0 : i32
    return %c0_i32, %c0_i32_0 : i32, i32
  }
  func.func @transform_7(%arg0: i32) -> (i32, i32) {
    %c0_i32 = arith.constant 0 : i32
    %c0_i32_0 = arith.constant 0 : i32
    %c0_i32_1 = arith.constant 0 : i32
    return %c0_i32, %c0_i32_0 : i32, i32
  }
  func.func @transform_8(%arg0: i32) -> (i32, i32, i32) {
    %c0_i32 = arith.constant 0 : i32
    %c0_i32_0 = arith.constant 0 : i32
    %c0_i32_1 = arith.constant 0 : i32
    return %arg0, %c0_i32, %c0_i32_0 : i32, i32, i32
  }
}

</mosaic_0001>

<llo_original>
// kernel: tpu_custom_call.1
$region0: #{tpu_custom_call.1}
  #allocation0 [shape = 'u32[]', space=smem, size = 0x4, offset = 0x4, fixed_abs, tag = 'smem constant byte address 0x4 - core index']
  #allocation1 [shape = 'u32[144,128]{1,0:T(1,128)}', space=vmem, size = 0x12000, scoped, tag = 'internal scratch']
  #allocation2 [shape = 'f32[18,18,8]{2,1,0:T(8,128)}', space=vmem, size = 0x36000, scoped, tag = 'scratch operand']
  #allocation3 [shape = 'f32[18,18,4]{2,1,0:T(8,128)}', space=vmem, size = 0x36000, scoped, tag = 'scratch operand']
  #allocation4 [shape = 'f32[256,72]{1,0:T(8,128)}', space=vmem, size = 0x20000, scoped, tag = 'scratch operand']
  #allocation5 [shape = 'f32[256,36]{1,0:T(8,128)}', space=vmem, size = 0x20000, scoped, tag = 'scratch operand']
  %s0 = inlined_call_operand.vmem [shape: bf16[2,16,16,4], index: 0, kind: input, shape index: {}]
  %s1 = inlined_call_operand.vmem [shape: bf16[2,16,16,4], index: 1, kind: input, shape index: {}]
  %s2 = inlined_call_operand.vmem [shape: bf16[72,4], index: 2, kind: input, shape index: {}]
  %s3 = inlined_call_operand.vmem [shape: f32[1,4], index: 3, kind: input, shape index: {}]
  %s4 = inlined_call_operand.vmem [shape: f32[1,4], index: 4, kind: input, shape index: {}]
  %s5 = inlined_call_operand.vmem [shape: bf16[4,36], index: 5, kind: input, shape index: {}]
  %s6 = inlined_call_operand.vmem [shape: f32[4,1], index: 6, kind: input, shape index: {}]
  %s7 = inlined_call_operand.vmem [shape: f32[4,1], index: 7, kind: input, shape index: {}]
  %s8 = inlined_call_operand.hbm [shape: f32[2,4,256], index: 8, kind: output, shape index: {}]
  %s9 = sld [smem:[#allocation0]]
  $region65: #{tpu_custom_call.1} parent=0
    _
  %s11 = ssub.s32 1, %s9
  %s12 = scalar_select 0, %s11, %s9
  $region1: #{tpu_custom_call.1} parent=0
    #allocation6 [shape = 'u8[8192]{0}', space=vmem, size = 0x2000, scoped, tag = 'output window, operand 0']
    #allocation7 [shape = 's32[2]{0}', space=sflag, size = 0x8, scoped, tag = 'scoped memory for tpu_custom_call.1']
    %13 = vsyncpa [#allocation7], 0
    %s14 = scalar_lea.sflag [#allocation7], 1
    %15 = vsyncpa %s14, 0
    loop: start=0, step=1, limit=4
    $region2: #{tpu_custom_call.1} parent=1 // loop_pre_header
      _
    $region3: #{tpu_custom_call.1} parent=1 // loop_header
      %s17 = sphi 0, %s21
      %p18 = scmp.ge.s32.totalorder %s17, 4
      %s27 = sphi 0, %s29
      %s30 = sphi 0, %s27
      %s31 = sphi 0, %s30
      %s47 = sphi 0, %s31
      %s53 = sphi 0, %s55
      %s56 = sphi 0, %s53
      %s57 = sphi 0, %s56
      %s73 = sphi 0, %s57
      %s77 = sphi 0, %s77
      %s79 = sphi 0, %s77
      %s80 = sphi 0, %s79
      %s94 = sphi 0, %s80
      %s98 = sphi 0, %s98
      %s100 = sphi 0, %s98
      %s101 = sphi 0, %s100
      %s115 = sphi 0, %s101
      %s119 = sphi 0, %s119
      %s121 = sphi 0, %s119
      %s122 = sphi 0, %s121
      %s136 = sphi 0, %s122
      %s140 = sphi 0, %s140
      %s142 = sphi 0, %s140
      %s143 = sphi 0, %s142
      %s157 = sphi 0, %s143
      %s161 = sphi 0, %s161
      %s163 = sphi 0, %s161
      %s164 = sphi 0, %s163
      %s178 = sphi 0, %s164
      %s182 = sphi 0, %s182
      %s184 = sphi 0, %s182
      %s185 = sphi 0, %s184
      %s199 = sphi 0, %s185
      %s205 = sphi 0, %s207
      %s208 = sphi 0, %s205
      %s209 = sphi 0, %s208
      %s225 = sphi 0, %s209
    $region4: #{tpu_custom_call.1} parent=1 // loop_header_branch
      %20 = sbr.rel (%p18) target = $region8
    $region5: #{tpu_custom_call.1} parent=1 // loop_body
      %s22 = ssub.s32 %s17, 1
      %s23 = ssub.s32 %s17, 2
      %s24 = sadd.s32 %s17, 1
      %s25 = ssub.s32 %s17, %s24
      %p26 = scmp.eq.s32.totalorder %s25, 0
      %s28 = sadd.s32 %s27, 1
      %s29 = scalar_select %p26, %s27, %s28
      %p32 = pneg %p26
      %p33 = scmp.eq.s32.totalorder %s17, 1
      %p34 = por %p32, %p33
      %p35 = scmp.ne.s32.totalorder %s27, %s30
      %p36 = scmp.eq.s32.totalorder %s17, 0
      %p37 = por %p35, %p36
      %p38 = scmp.ne.s32.totalorder %s27, %s30
      %p39 = scmp.eq.s32.totalorder %s22, 1
      %p40 = por %p38, %p39
      %p41 = scmp.ne.s32.totalorder %s30, %s31
      %p42 = scmp.eq.s32.totalorder %s22, 0
      %p43 = por %p41, %p42
      %p44 = scmp.ne.s32.totalorder %s30, %s31
      %p45 = scmp.eq.s32.totalorder %s23, 1
      %p46 = por %p44, %p45
      %p48 = scmp.ne.s32.totalorder %s31, %s47
      %p49 = scmp.eq.s32.totalorder %s23, 0
      %p50 = por %p48, %p49
      %s51 = ssub.s32 %s17, %s24
      %p52 = scmp.eq.s32.totalorder %s51, 0
      %s54 = sadd.s32 %s53, 1
      %s55 = scalar_select %p52, %s53, %s54
      %p58 = pneg %p52
      %p59 = scmp.eq.s32.totalorder %s17, 1
      %p60 = por %p58, %p59
      %p61 = scmp.ne.s32.totalorder %s53, %s56
      %p62 = scmp.eq.s32.totalorder %s17, 0
      %p63 = por %p61, %p62
      %p64 = scmp.ne.s32.totalorder %s53, %s56
      %p65 = scmp.eq.s32.totalorder %s22, 1
      %p66 = por %p64, %p65
      %p67 = scmp.ne.s32.totalorder %s56, %s57
      %p68 = scmp.eq.s32.totalorder %s22, 0
      %p69 = por %p67, %p68
      %p70 = scmp.ne.s32.totalorder %s56, %s57
      %p71 = scmp.eq.s32.totalorder %s23, 1
      %p72 = por %p70, %p71
      %p74 = scmp.ne.s32.totalorder %s57, %s73
      %p75 = scmp.eq.s32.totalorder %s23, 0
      %p76 = por %p74, %p75
      %s78 = sadd.s32 %s77, 1
      %p81 = scmp.eq.s32.totalorder %s17, 1
      %p82 = scmp.ne.s32.totalorder %s77, %s79
      %p83 = scmp.eq.s32.totalorder %s17, 0
      %p84 = por %p82, %p83
      %p85 = scmp.ne.s32.totalorder %s77, %s79
      %p86 = scmp.eq.s32.totalorder %s22, 1
      %p87 = por %p85, %p86
      %p88 = scmp.ne.s32.totalorder %s79, %s80
      %p89 = scmp.eq.s32.totalorder %s22, 0
      %p90 = por %p88, %p89
      %p91 = scmp.ne.s32.totalorder %s79, %s80
      %p92 = scmp.eq.s32.totalorder %s23, 1
      %p93 = por %p91, %p92
      %p95 = scmp.ne.s32.totalorder %s80, %s94
      %p96 = scmp.eq.s32.totalorder %s23, 0
      %p97 = por %p95, %p96
      %s99 = sadd.s32 %s98, 1
      %p102 = scmp.eq.s32.totalorder %s17, 1
      %p103 = scmp.ne.s32.totalorder %s98, %s100
      %p104 = scmp.eq.s32.totalorder %s17, 0
      %p105 = por %p103, %p104
      %p106 = scmp.ne.s32.totalorder %s98, %s100
      %p107 = scmp.eq.s32.totalorder %s22, 1
      %p108 = por %p106, %p107
      %p109 = scmp.ne.s32.totalorder %s100, %s101
      %p110 = scmp.eq.s32.totalorder %s22, 0
      %p111 = por %p109, %p110
      %p112 = scmp.ne.s32.totalorder %s100, %s101
      %p113 = scmp.eq.s32.totalorder %s23, 1
      %p114 = por %p112, %p113
      %p116 = scmp.ne.s32.totalorder %s101, %s115
      %p117 = scmp.eq.s32.totalorder %s23, 0
      %p118 = por %p116, %p117
      %s120 = sadd.s32 %s119, 1
      %p123 = scmp.eq.s32.totalorder %s17, 1
      %p124 = scmp.ne.s32.totalorder %s119, %s121
      %p125 = scmp.eq.s32.totalorder %s17, 0
      %p126 = por %p124, %p125
      %p127 = scmp.ne.s32.totalorder %s119, %s121
      %p128 = scmp.eq.s32.totalorder %s22, 1
      %p129 = por %p127, %p128
      %p130 = scmp.ne.s32.totalorder %s121, %s122
      %p131 = scmp.eq.s32.totalorder %s22, 0
      %p132 = por %p130, %p131
      %p133 = scmp.ne.s32.totalorder %s121, %s122
      %p134 = scmp.eq.s32.totalorder %s23, 1
      %p135 = por %p133, %p134
      %p137 = scmp.ne.s32.totalorder %s122, %s136
      %p138 = scmp.eq.s32.totalorder %s23, 0
      %p139 = por %p137, %p138
      %s141 = sadd.s32 %s140, 1
      %p144 = scmp.eq.s32.totalorder %s17, 1
      %p145 = scmp.ne.s32.totalorder %s140, %s142
      %p146 = scmp.eq.s32.totalorder %s17, 0
      %p147 = por %p145, %p146
      %p148 = scmp.ne.s32.totalorder %s140, %s142
      %p149 = scmp.eq.s32.totalorder %s22, 1
      %p150 = por %p148, %p149
      %p151 = scmp.ne.s32.totalorder %s142, %s143
      %p152 = scmp.eq.s32.totalorder %s22, 0
      %p153 = por %p151, %p152
      %p154 = scmp.ne.s32.totalorder %s142, %s143
      %p155 = scmp.eq.s32.totalorder %s23, 1
      %p156 = por %p154, %p155
      %p158 = scmp.ne.s32.totalorder %s143, %s157
      %p159 = scmp.eq.s32.totalorder %s23, 0
      %p160 = por %p158, %p159
      %s162 = sadd.s32 %s161, 1
      %p165 = scmp.eq.s32.totalorder %s17, 1
      %p166 = scmp.ne.s32.totalorder %s161, %s163
      %p167 = scmp.eq.s32.totalorder %s17, 0
      %p168 = por %p166, %p167
      %p169 = scmp.ne.s32.totalorder %s161, %s163
      %p170 = scmp.eq.s32.totalorder %s22, 1
      %p171 = por %p169, %p170
      %p172 = scmp.ne.s32.totalorder %s163, %s164
      %p173 = scmp.eq.s32.totalorder %s22, 0
      %p174 = por %p172, %p173
      %p175 = scmp.ne.s32.totalorder %s163, %s164
      %p176 = scmp.eq.s32.totalorder %s23, 1
      %p177 = por %p175, %p176
      %p179 = scmp.ne.s32.totalorder %s164, %s178
      %p180 = scmp.eq.s32.totalorder %s23, 0
      %p181 = por %p179, %p180
      %s183 = sadd.s32 %s182, 1
      %p186 = scmp.eq.s32.totalorder %s17, 1
      %p187 = scmp.ne.s32.totalorder %s182, %s184
      %p188 = scmp.eq.s32.totalorder %s17, 0
      %p189 = por %p187, %p188
      %p190 = scmp.ne.s32.totalorder %s182, %s184
      %p191 = scmp.eq.s32.totalorder %s22, 1
      %p192 = por %p190, %p191
      %p193 = scmp.ne.s32.totalorder %s184, %s185
      %p194 = scmp.eq.s32.totalorder %s22, 0
      %p195 = por %p193, %p194
      %p196 = scmp.ne.s32.totalorder %s184, %s185
      %p197 = scmp.eq.s32.totalorder %s23, 1
      %p198 = por %p196, %p197
      %p200 = scmp.ne.s32.totalorder %s185, %s199
      %p201 = scmp.eq.s32.totalorder %s23, 0
      %p202 = por %p200, %p201
      %s203 = ssub.s32 %s17, %s24
      %p204 = scmp.eq.s32.totalorder %s203, 0
      %s206 = sadd.s32 %s205, 1
      %s207 = scalar_select %p204, %s205, %s206
      %p210 = pneg %p204
      %p211 = scmp.eq.s32.totalorder %s17, 1
      %p212 = por %p210, %p211
      %p213 = scmp.ne.s32.totalorder %s205, %s208
      %p214 = scmp.eq.s32.totalorder %s17, 0
      %p215 = por %p213, %p214
      %p216 = scmp.ne.s32.totalorder %s205, %s208
      %p217 = scmp.eq.s32.totalorder %s22, 1
      %p218 = por %p216, %p217
      %p219 = scmp.ne.s32.totalorder %s208, %s209
      %p220 = scmp.eq.s32.totalorder %s22, 0
      %p221 = por %p219, %p220
      %p222 = scmp.ne.s32.totalorder %s208, %s209
      %p223 = scmp.eq.s32.totalorder %s23, 1
      %p224 = por %p222, %p223
      %p226 = scmp.ne.s32.totalorder %s209, %s225
      %p227 = scmp.eq.s32.totalorder %s23, 0
      %p228 = por %p226, %p227
      %p229 = scmp.le.s32.totalorder 1, %s17
      %p230 = scmp.lt.s32.totalorder %s17, 3
      %p231 = pnand %p229, %p230
      %p232 = pneg %p231
      // Predicated region
      $region9: #{tpu_custom_call.1} parent=5 // pred_check
        _
      $region10: #{tpu_custom_call.1} parent=5 // pred_check_branch
        %234 = sbr.rel (%p231) target = $region12
      $region11: #{tpu_custom_call.1} parent=5 // pred_region
        %s235 = ssub.s32 %s17, 1
        // Predicated region
        $region13: #{tpu_custom_call.1} parent=11 // pred_check
          %p236 = pneg %p90
        $region14: #{tpu_custom_call.1} parent=11 // pred_check_branch
          %238 = sbr.rel (%p236) target = $region16
        $region15: #{tpu_custom_call.1} parent=11 // pred_region
          _
        $region16: #{tpu_custom_call.1} parent=11 // pred_fallthru
          _
        // Predicated region
        $region17: #{tpu_custom_call.1} parent=11 // pred_check
          %p239 = pneg %p111
        $region18: #{tpu_custom_call.1} parent=11 // pred_check_branch
          %241 = sbr.rel (%p239) target = $region20
        $region19: #{tpu_custom_call.1} parent=11 // pred_region
          _
        $region20: #{tpu_custom_call.1} parent=11 // pred_fallthru
          _
        // Predicated region
        $region21: #{tpu_custom_call.1} parent=11 // pred_check
          %p242 = pneg %p132
        $region22: #{tpu_custom_call.1} parent=11 // pred_check_branch
          %244 = sbr.rel (%p242) target = $region24
        $region23: #{tpu_custom_call.1} parent=11 // pred_region
          _
        $region24: #{tpu_custom_call.1} parent=11 // pred_fallthru
          _
        // Predicated region
        $region25: #{tpu_custom_call.1} parent=11 // pred_check
          %p245 = pneg %p153
        $region26: #{tpu_custom_call.1} parent=11 // pred_check_branch
          %247 = sbr.rel (%p245) target = $region28
        $region27: #{tpu_custom_call.1} parent=11 // pred_region
          _
        $region28: #{tpu_custom_call.1} parent=11 // pred_fallthru
          _
        // Predicated region
        $region29: #{tpu_custom_call.1} parent=11 // pred_check
          %p248 = pneg %p174
        $region30: #{tpu_custom_call.1} parent=11 // pred_check_branch
          %250 = sbr.rel (%p248) target = $region32
        $region31: #{tpu_custom_call.1} parent=11 // pred_region
          _
        $region32: #{tpu_custom_call.1} parent=11 // pred_fallthru
          _
        // Predicated region
        $region33: #{tpu_custom_call.1} parent=11 // pred_check
          %p251 = pneg %p195
        $region34: #{tpu_custom_call.1} parent=11 // pred_check_branch
          %253 = sbr.rel (%p251) target = $region36
        $region35: #{tpu_custom_call.1} parent=11 // pred_region
          _
        $region36: #{tpu_custom_call.1} parent=11 // pred_fallthru
          _
      $region12: #{tpu_custom_call.1} parent=5 // pred_fallthru
        _
      %p254 = scmp.lt.s32.totalorder %s17, 2
      // Predicated region
      $region37: #{tpu_custom_call.1} parent=5 // pred_check
        %p255 = pneg %p254
      $region38: #{tpu_custom_call.1} parent=5 // pred_check_branch
        %257 = sbr.rel (%p255) target = $region40
      $region39: #{tpu_custom_call.1} parent=5 // pred_region
        // Predicated region
        $region41: #{tpu_custom_call.1} parent=39 // pred_check
          %p258 = pneg %p37
        $region42: #{tpu_custom_call.1} parent=39 // pred_check_branch
          %260 = sbr.rel (%p258) target = $region44
        $region43: #{tpu_custom_call.1} parent=39 // pred_region
          %p261 = scmp.lt.s32.totalorder %s17, 1
          %s262 = scalar_select %p261, %s17, 1
          %s263 = smul.addr %s262, 32
          %s264 = smul.addr %s263, 4
          %s265 = scalar_lea.vmem %s0, %s264
        $region44: #{tpu_custom_call.1} parent=39 // pred_fallthru
          _
        // Predicated region
        $region45: #{tpu_custom_call.1} parent=39 // pred_check
          %p266 = pneg %p63
        $region46: #{tpu_custom_call.1} parent=39 // pred_check_branch
          %268 = sbr.rel (%p266) target = $region48
        $region47: #{tpu_custom_call.1} parent=39 // pred_region
          %p269 = scmp.lt.s32.totalorder %s17, 1
          %s270 = scalar_select %p269, %s17, 1
          %s271 = smul.addr %s270, 32
          %s272 = smul.addr %s271, 4
          %s273 = scalar_lea.vmem %s1, %s272
        $region48: #{tpu_custom_call.1} parent=39 // pred_fallthru
          _
      $region40: #{tpu_custom_call.1} parent=5 // pred_fallthru
        _
      %p274 = scmp.le.s32.totalorder 1, %s17
      %p275 = scmp.lt.s32.totalorder %s17, 3
      %p276 = pnand %p274, %p275
      %p277 = pneg %p276
      // Predicated region
      $region49: #{tpu_custom_call.1} parent=5 // pred_check
        _
      $region50: #{tpu_custom_call.1} parent=5 // pred_check_branch
        %279 = sbr.rel (%p276) target = $region52
      $region51: #{tpu_custom_call.1} parent=5 // pred_region
        %s280 = ssub.s32 %s17, 1
        %p281 = scmp.lt.s32.totalorder %s22, 1
        %s282 = scalar_select %p281, %s22, 1
        %s283 = smul.addr %s282, 32
        %s284 = smul.addr %s283, 4
        %s285 = scalar_lea.vmem %s0, %s284
        %p286 = pneg %p43
        %p287 = pneg %p40
        %p288 = scmp.lt.s32.totalorder %s22, 1
        %s289 = scalar_select %p288, %s22, 1
        %s290 = smul.addr %s289, 32
        %s291 = smul.addr %s290, 4
        %s292 = scalar_lea.vmem %s1, %s291
        %p293 = pneg %p69
        %p294 = pneg %p66
        %p295 = pneg %p90
        %p296 = pneg %p87
        %p297 = pneg %p111
        %p298 = pneg %p108
        %p299 = pneg %p132
        %p300 = pneg %p129
        %p301 = pneg %p153
        %p302 = pneg %p150
        %p303 = pneg %p174
        %p304 = pneg %p171
        %p305 = pneg %p195
        %p306 = pneg %p192
        %p307 = pneg %p221
        %p308 = pneg %p218
        %s309 = sand.u32 %s208, 1
        %s310 = scalar_lea.sflag [#allocation7], %s309
        %s311 = sand.u32 %s208, 1
        %s312 = smul.addr %s311, 8
        %s313 = scalar_lea.vmem [#allocation6], %s312
        %p314 = scmp.lt.s32.totalorder %s22, 1
        %s315 = scalar_select %p314, %s22, 1
        %s316 = smul.addr %s315, 32
        %s317 = smul.addr %s316, 4
        %s318 = scalar_lea.vmem %s0, %s317
        %p319 = scmp.lt.s32.totalorder %s22, 1
        %s320 = scalar_select %p319, %s22, 1
        %s321 = smul.addr %s320, 32
        %s322 = smul.addr %s321, 4
        %s323 = scalar_lea.vmem %s1, %s322
        %vm325 = vcmask 64512
        %326 = vst.msk [vmem:[#allocation2] sm:$0xff] %vm325, 0.0
        %327 = vst.msk [vmem:[#allocation2 + $0x8] sm:$0xff] %vm325, 0.0
        %vm328 = vcmask 58368
        %329 = vst.msk [vmem:[#allocation2 + $0x10] sm:$0x3] %vm328, 0.0
        %330 = vst.msk [vmem:[#allocation2 + $0x18] sm:$0xff] %vm325, 0.0
        %331 = vst.msk [vmem:[#allocation2 + $0x20] sm:$0xff] %vm325, 0.0
        %332 = vst.msk [vmem:[#allocation2 + $0x28] sm:$0x3] %vm328, 0.0
        %333 = vst.msk [vmem:[#allocation2 + $0x30] sm:$0xff] %vm325, 0.0
        %334 = vst.msk [vmem:[#allocation2 + $0x38] sm:$0xff] %vm325, 0.0
        %335 = vst.msk [vmem:[#allocation2 + $0x40] sm:$0x3] %vm328, 0.0
        %336 = vst.msk [vmem:[#allocation2 + $0x48] sm:$0xff] %vm325, 0.0
        %337 = vst.msk [vmem:[#allocation2 + $0x50] sm:$0xff] %vm325, 0.0
        %338 = vst.msk [vmem:[#allocation2 + $0x58] sm:$0x3] %vm328, 0.0
        %339 = vst.msk [vmem:[#allocation2 + $0x60] sm:$0xff] %vm325, 0.0
        %340 = vst.msk [vmem:[#allocation2 + $0x68] sm:$0xff] %vm325, 0.0
        %341 = vst.msk [vmem:[#allocation2 + $0x70] sm:$0x3] %vm328, 0.0
        %342 = vst.msk [vmem:[#allocation2 + $0x78] sm:$0xff] %vm325, 0.0
        %343 = vst.msk [vmem:[#allocation2 + $0x80] sm:$0xff] %vm325, 0.0
        %344 = vst.msk [vmem:[#allocation2 + $0x88] sm:$0x3] %vm328, 0.0
        %345 = vst.msk [vmem:[#allocation2 + $0x90] sm:$0xff] %vm325, 0.0
        %346 = vst.msk [vmem:[#allocation2 + $0x98] sm:$0xff] %vm325, 0.0
        %347 = vst.msk [vmem:[#allocation2 + $0xa0] sm:$0x3] %vm328, 0.0
        %348 = vst.msk [vmem:[#allocation2 + $0xa8] sm:$0xff] %vm325, 0.0
        %349 = vst.msk [vmem:[#allocation2 + $0xb0] sm:$0xff] %vm325, 0.0
        %350 = vst.msk [vmem:[#allocation2 + $0xb8] sm:$0x3] %vm328, 0.0
        %351 = vst.msk [vmem:[#allocation2 + $0xc0] sm:$0xff] %vm325, 0.0
        %352 = vst.msk [vmem:[#allocation2 + $0xc8] sm:$0xff] %vm325, 0.0
        %353 = vst.msk [vmem:[#allocation2 + $0xd0] sm:$0x3] %vm328, 0.0
        %354 = vst.msk [vmem:[#allocation2 + $0xd8] sm:$0xff] %vm325, 0.0
        %355 = vst.msk [vmem:[#allocation2 + $0xe0] sm:$0xff] %vm325, 0.0
        %356 = vst.msk [vmem:[#allocation2 + $0xe8] sm:$0x3] %vm328, 0.0
        %357 = vst.msk [vmem:[#allocation2 + $0xf0] sm:$0xff] %vm325, 0.0
        %358 = vst.msk [vmem:[#allocation2 + $0xf8] sm:$0xff] %vm325, 0.0
        %359 = vst.msk [vmem:[#allocation2 + $0x100] sm:$0x3] %vm328, 0.0
        %360 = vst.msk [vmem:[#allocation2 + $0x108] sm:$0xff] %vm325, 0.0
        %361 = vst.msk [vmem:[#allocation2 + $0x110] sm:$0xff] %vm325, 0.0
        %362 = vst.msk [vmem:[#allocation2 + $0x118] sm:$0x3] %vm328, 0.0
        %363 = vst.msk [vmem:[#allocation2 + $0x120] sm:$0xff] %vm325, 0.0
        %364 = vst.msk [vmem:[#allocation2 + $0x128] sm:$0xff] %vm325, 0.0
        %365 = vst.msk [vmem:[#allocation2 + $0x130] sm:$0x3] %vm328, 0.0
        %366 = vst.msk [vmem:[#allocation2 + $0x138] sm:$0xff] %vm325, 0.0
        %367 = vst.msk [vmem:[#allocation2 + $0x140] sm:$0xff] %vm325, 0.0
        %368 = vst.msk [vmem:[#allocation2 + $0x148] sm:$0x3] %vm328, 0.0
        %369 = vst.msk [vmem:[#allocation2 + $0x150] sm:$0xff] %vm325, 0.0
        %370 = vst.msk [vmem:[#allocation2 + $0x158] sm:$0xff] %vm325, 0.0
        %371 = vst.msk [vmem:[#allocation2 + $0x160] sm:$0x3] %vm328, 0.0
        %372 = vst.msk [vmem:[#allocation2 + $0x168] sm:$0xff] %vm325, 0.0
        %373 = vst.msk [vmem:[#allocation2 + $0x170] sm:$0xff] %vm325, 0.0
        %374 = vst.msk [vmem:[#allocation2 + $0x178] sm:$0x3] %vm328, 0.0
        %375 = vst.msk [vmem:[#allocation2 + $0x180] sm:$0xff] %vm325, 0.0
        %376 = vst.msk [vmem:[#allocation2 + $0x188] sm:$0xff] %vm325, 0.0
        %377 = vst.msk [vmem:[#allocation2 + $0x190] sm:$0x3] %vm328, 0.0
        %378 = vst.msk [vmem:[#allocation2 + $0x198] sm:$0xff] %vm325, 0.0
        %379 = vst.msk [vmem:[#allocation2 + $0x1a0] sm:$0xff] %vm325, 0.0
        %380 = vst.msk [vmem:[#allocation2 + $0x1a8] sm:$0x3] %vm328, 0.0
        %v381 = vld [vmem:[%s318] sm:$0xf]
        %v382 = vld [vmem:[%s318 + $0x4] sm:$0xf]
        %v383 = vld [vmem:[%s318 + $0x8] sm:$0xf]
        %v384 = vld [vmem:[%s318 + $0xc] sm:$0xf]
        %v385 = vld [vmem:[%s318 + $0x10] sm:$0xf]
        %v386 = vld [vmem:[%s318 + $0x14] sm:$0xf]
        %v387 = vld [vmem:[%s318 + $0x18] sm:$0xf]
        %v388 = vld [vmem:[%s318 + $0x1c] sm:$0xf]
        %v389 = vld [vmem:[%s318 + $0x20] sm:$0xf]
        %v390 = vld [vmem:[%s318 + $0x24] sm:$0xf]
        %v391 = vld [vmem:[%s318 + $0x28] sm:$0xf]
        %v392 = vld [vmem:[%s318 + $0x2c] sm:$0xf]
        %v393 = vld [vmem:[%s318 + $0x30] sm:$0xf]
        %v394 = vld [vmem:[%s318 + $0x34] sm:$0xf]
        %v395 = vld [vmem:[%s318 + $0x38] sm:$0xf]
        %v396 = vld [vmem:[%s318 + $0x3c] sm:$0xf]
        %v397 = vld [vmem:[%s318 + $0x40] sm:$0xf]
        %v398 = vld [vmem:[%s318 + $0x44] sm:$0xf]
        %v399 = vld [vmem:[%s318 + $0x48] sm:$0xf]
        %v400 = vld [vmem:[%s318 + $0x4c] sm:$0xf]
        %v401 = vld [vmem:[%s318 + $0x50] sm:$0xf]
        %v402 = vld [vmem:[%s318 + $0x54] sm:$0xf]
        %v403 = vld [vmem:[%s318 + $0x58] sm:$0xf]
        %v404 = vld [vmem:[%s318 + $0x5c] sm:$0xf]
        %v405 = vld [vmem:[%s318 + $0x60] sm:$0xf]
        %v406 = vld [vmem:[%s318 + $0x64] sm:$0xf]
        %v407 = vld [vmem:[%s318 + $0x68] sm:$0xf]
        %v408 = vld [vmem:[%s318 + $0x6c] sm:$0xf]
        %v409 = vld [vmem:[%s318 + $0x70] sm:$0xf]
        %v410 = vld [vmem:[%s318 + $0x74] sm:$0xf]
        %v411 = vld [vmem:[%s318 + $0x78] sm:$0xf]
        %v412 = vld [vmem:[%s318 + $0x7c] sm:$0xf]
        %v413 = vunpack.c.l.bf16 %v381
        %v414 = vunpack.c.l.bf16 %v382
        %v415 = vunpack.c.l.bf16 %v383
        %v416 = vunpack.c.l.bf16 %v384
        %v417 = vunpack.c.l.bf16 %v385
        %v418 = vunpack.c.l.bf16 %v386
        %v419 = vunpack.c.l.bf16 %v387
        %v420 = vunpack.c.l.bf16 %v388
        %v421 = vunpack.c.l.bf16 %v389
        %v422 = vunpack.c.l.bf16 %v390
        %v423 = vunpack.c.l.bf16 %v391
        %v424 = vunpack.c.l.bf16 %v392
        %v425 = vunpack.c.l.bf16 %v393
        %v426 = vunpack.c.l.bf16 %v394
        %v427 = vunpack.c.l.bf16 %v395
        %v428 = vunpack.c.l.bf16 %v396
        %v429 = vunpack.c.l.bf16 %v397
        %v430 = vunpack.c.l.bf16 %v398
        %v431 = vunpack.c.l.bf16 %v399
        %v432 = vunpack.c.l.bf16 %v400
        %v433 = vunpack.c.l.bf16 %v401
        %v434 = vunpack.c.l.bf16 %v402
        %v435 = vunpack.c.l.bf16 %v403
        %v436 = vunpack.c.l.bf16 %v404
        %v437 = vunpack.c.l.bf16 %v405
        %v438 = vunpack.c.l.bf16 %v406
        %v439 = vunpack.c.l.bf16 %v407
        %v440 = vunpack.c.l.bf16 %v408
        %v441 = vunpack.c.l.bf16 %v409
        %v442 = vunpack.c.l.bf16 %v410
        %v443 = vunpack.c.l.bf16 %v411
        %v444 = vunpack.c.l.bf16 %v412
        %s445 = scalar_lea.vmem [#allocation2], 24
        %vm446 = vcmask 31744
        %447 = vst.msk [vmem:[%s445 + $0x1] sm:$0xff] %vm446, %v413
        %448 = vst.msk [vmem:[%s445 + $0x9] sm:$0xff] %vm446, %v414
        %449 = vst.msk [vmem:[%s445 + $0x19] sm:$0xff] %vm446, %v415
        %450 = vst.msk [vmem:[%s445 + $0x21] sm:$0xff] %vm446, %v416
        %451 = vst.msk [vmem:[%s445 + $0x31] sm:$0xff] %vm446, %v417
        %452 = vst.msk [vmem:[%s445 + $0x39] sm:$0xff] %vm446, %v418
        %453 = vst.msk [vmem:[%s445 + $0x49] sm:$0xff] %vm446, %v419
        %454 = vst.msk [vmem:[%s445 + $0x51] sm:$0xff] %vm446, %v420
        %455 = vst.msk [vmem:[%s445 + $0x61] sm:$0xff] %vm446, %v421
        %456 = vst.msk [vmem:[%s445 + $0x69] sm:$0xff] %vm446, %v422
        %457 = vst.msk [vmem:[%s445 + $0x79] sm:$0xff] %vm446, %v423
        %458 = vst.msk [vmem:[%s445 + $0x81] sm:$0xff] %vm446, %v424
        %459 = vst.msk [vmem:[%s445 + $0x91] sm:$0xff] %vm446, %v425
        %460 = vst.msk [vmem:[%s445 + $0x99] sm:$0xff] %vm446, %v426
        %461 = vst.msk [vmem:[%s445 + $0xa9] sm:$0xff] %vm446, %v427
        %462 = vst.msk [vmem:[%s445 + $0xb1] sm:$0xff] %vm446, %v428
        %463 = vst.msk [vmem:[%s445 + $0xc1] sm:$0xff] %vm446, %v429
        %464 = vst.msk [vmem:[%s445 + $0xc9] sm:$0xff] %vm446, %v430
        %465 = vst.msk [vmem:[%s445 + $0xd9] sm:$0xff] %vm446, %v431
        %466 = vst.msk [vmem:[%s445 + $0xe1] sm:$0xff] %vm446, %v432
        %467 = vst.msk [vmem:[%s445 + $0xf1] sm:$0xff] %vm446, %v433
        %468 = vst.msk [vmem:[%s445 + $0xf9] sm:$0xff] %vm446, %v434
        %469 = vst.msk [vmem:[%s445 + $0x109] sm:$0xff] %vm446, %v435
        %470 = vst.msk [vmem:[%s445 + $0x111] sm:$0xff] %vm446, %v436
        %471 = vst.msk [vmem:[%s445 + $0x121] sm:$0xff] %vm446, %v437
        %472 = vst.msk [vmem:[%s445 + $0x129] sm:$0xff] %vm446, %v438
        %473 = vst.msk [vmem:[%s445 + $0x139] sm:$0xff] %vm446, %v439
        %474 = vst.msk [vmem:[%s445 + $0x141] sm:$0xff] %vm446, %v440
        %475 = vst.msk [vmem:[%s445 + $0x151] sm:$0xff] %vm446, %v441
        %476 = vst.msk [vmem:[%s445 + $0x159] sm:$0xff] %vm446, %v442
        %477 = vst.msk [vmem:[%s445 + $0x169] sm:$0xff] %vm446, %v443
        %478 = vst.msk [vmem:[%s445 + $0x171] sm:$0xff] %vm446, %v444
        %v479 = vld [vmem:[%s323] sm:$0xf]
        %v480 = vld [vmem:[%s323 + $0x4] sm:$0xf]
        %v481 = vld [vmem:[%s323 + $0x8] sm:$0xf]
        %v482 = vld [vmem:[%s323 + $0xc] sm:$0xf]
        %v483 = vld [vmem:[%s323 + $0x10] sm:$0xf]
        %v484 = vld [vmem:[%s323 + $0x14] sm:$0xf]
        %v485 = vld [vmem:[%s323 + $0x18] sm:$0xf]
        %v486 = vld [vmem:[%s323 + $0x1c] sm:$0xf]
        %v487 = vld [vmem:[%s323 + $0x20] sm:$0xf]
        %v488 = vld [vmem:[%s323 + $0x24] sm:$0xf]
        %v489 = vld [vmem:[%s323 + $0x28] sm:$0xf]
        %v490 = vld [vmem:[%s323 + $0x2c] sm:$0xf]
        %v491 = vld [vmem:[%s323 + $0x30] sm:$0xf]
        %v492 = vld [vmem:[%s323 + $0x34] sm:$0xf]
        %v493 = vld [vmem:[%s323 + $0x38] sm:$0xf]
        %v494 = vld [vmem:[%s323 + $0x3c] sm:$0xf]
        %v495 = vld [vmem:[%s323 + $0x40] sm:$0xf]
        %v496 = vld [vmem:[%s323 + $0x44] sm:$0xf]
        %v497 = vld [vmem:[%s323 + $0x48] sm:$0xf]
        %v498 = vld [vmem:[%s323 + $0x4c] sm:$0xf]
        %v499 = vld [vmem:[%s323 + $0x50] sm:$0xf]
        %v500 = vld [vmem:[%s323 + $0x54] sm:$0xf]
        %v501 = vld [vmem:[%s323 + $0x58] sm:$0xf]
        %v502 = vld [vmem:[%s323 + $0x5c] sm:$0xf]
        %v503 = vld [vmem:[%s323 + $0x60] sm:$0xf]
        %v504 = vld [vmem:[%s323 + $0x64] sm:$0xf]
        %v505 = vld [vmem:[%s323 + $0x68] sm:$0xf]
        %v506 = vld [vmem:[%s323 + $0x6c] sm:$0xf]
        %v507 = vld [vmem:[%s323 + $0x70] sm:$0xf]
        %v508 = vld [vmem:[%s323 + $0x74] sm:$0xf]
        %v509 = vld [vmem:[%s323 + $0x78] sm:$0xf]
        %v510 = vld [vmem:[%s323 + $0x7c] sm:$0xf]
        %v511 = vunpack.c.l.bf16 %v479
        %v512 = vunpack.c.l.bf16 %v480
        %v513 = vunpack.c.l.bf16 %v481
        %v514 = vunpack.c.l.bf16 %v482
        %v515 = vunpack.c.l.bf16 %v483
        %v516 = vunpack.c.l.bf16 %v484
        %v517 = vunpack.c.l.bf16 %v485
        %v518 = vunpack.c.l.bf16 %v486
        %v519 = vunpack.c.l.bf16 %v487
        %v520 = vunpack.c.l.bf16 %v488
        %v521 = vunpack.c.l.bf16 %v489
        %v522 = vunpack.c.l.bf16 %v490
        %v523 = vunpack.c.l.bf16 %v491
        %v524 = vunpack.c.l.bf16 %v492
        %v525 = vunpack.c.l.bf16 %v493
        %v526 = vunpack.c.l.bf16 %v494
        %v527 = vunpack.c.l.bf16 %v495
        %v528 = vunpack.c.l.bf16 %v496
        %v529 = vunpack.c.l.bf16 %v497
        %v530 = vunpack.c.l.bf16 %v498
        %v531 = vunpack.c.l.bf16 %v499
        %v532 = vunpack.c.l.bf16 %v500
        %v533 = vunpack.c.l.bf16 %v501
        %v534 = vunpack.c.l.bf16 %v502
        %v535 = vunpack.c.l.bf16 %v503
        %v536 = vunpack.c.l.bf16 %v504
        %v537 = vunpack.c.l.bf16 %v505
        %v538 = vunpack.c.l.bf16 %v506
        %v539 = vunpack.c.l.bf16 %v507
        %v540 = vunpack.c.l.bf16 %v508
        %v541 = vunpack.c.l.bf16 %v509
        %v542 = vunpack.c.l.bf16 %v510
        %575 = vrot.lane.b32.xlu0 %v511, 4
        %v576 = vpop.permute.xlu0 %575
        %577 = vrot.lane.b32.xlu0 %v512, 4
        %v578 = vpop.permute.xlu0 %577
        %579 = vrot.lane.b32.xlu0 %v513, 4
        %v580 = vpop.permute.xlu0 %579
        %581 = vrot.lane.b32.xlu0 %v514, 4
        %v582 = vpop.permute.xlu0 %581
        %583 = vrot.lane.b32.xlu0 %v515, 4
        %v584 = vpop.permute.xlu0 %583
        %585 = vrot.lane.b32.xlu0 %v516, 4
        %v586 = vpop.permute.xlu0 %585
        %587 = vrot.lane.b32.xlu0 %v517, 4
        %v588 = vpop.permute.xlu0 %587
        %589 = vrot.lane.b32.xlu0 %v518, 4
        %v590 = vpop.permute.xlu0 %589
        %591 = vrot.lane.b32.xlu0 %v519, 4
        %v592 = vpop.permute.xlu0 %591
        %593 = vrot.lane.b32.xlu0 %v520, 4
        %v594 = vpop.permute.xlu0 %593
        %595 = vrot.lane.b32.xlu0 %v521, 4
        %v596 = vpop.permute.xlu0 %595
        %597 = vrot.lane.b32.xlu0 %v522, 4
        %v598 = vpop.permute.xlu0 %597
        %599 = vrot.lane.b32.xlu0 %v523, 4
        %v600 = vpop.permute.xlu0 %599
        %601 = vrot.lane.b32.xlu0 %v524, 4
        %v602 = vpop.permute.xlu0 %601
        %603 = vrot.lane.b32.xlu0 %v525, 4
        %v604 = vpop.permute.xlu0 %603
        %605 = vrot.lane.b32.xlu0 %v526, 4
        %v606 = vpop.permute.xlu0 %605
        %607 = vrot.lane.b32.xlu0 %v527, 4
        %v608 = vpop.permute.xlu0 %607
        %609 = vrot.lane.b32.xlu0 %v528, 4
        %v610 = vpop.permute.xlu0 %609
        %611 = vrot.lane.b32.xlu0 %v529, 4
        %v612 = vpop.permute.xlu0 %611
        %613 = vrot.lane.b32.xlu0 %v530, 4
        %v614 = vpop.permute.xlu0 %613
        %615 = vrot.lane.b32.xlu0 %v531, 4
        %v616 = vpop.permute.xlu0 %615
        %617 = vrot.lane.b32.xlu0 %v532, 4
        %v618 = vpop.permute.xlu0 %617
        %619 = vrot.lane.b32.xlu0 %v533, 4
        %v620 = vpop.permute.xlu0 %619
        %621 = vrot.lane.b32.xlu0 %v534, 4
        %v622 = vpop.permute.xlu0 %621
        %623 = vrot.lane.b32.xlu0 %v535, 4
        %v624 = vpop.permute.xlu0 %623
        %625 = vrot.lane.b32.xlu0 %v536, 4
        %v626 = vpop.permute.xlu0 %625
        %627 = vrot.lane.b32.xlu0 %v537, 4
        %v628 = vpop.permute.xlu0 %627
        %629 = vrot.lane.b32.xlu0 %v538, 4
        %v630 = vpop.permute.xlu0 %629
        %631 = vrot.lane.b32.xlu0 %v539, 4
        %v632 = vpop.permute.xlu0 %631
        %633 = vrot.lane.b32.xlu0 %v540, 4
        %v634 = vpop.permute.xlu0 %633
        %635 = vrot.lane.b32.xlu0 %v541, 4
        %v636 = vpop.permute.xlu0 %635
        %637 = vrot.lane.b32.xlu0 %v542, 4
        %v638 = vpop.permute.xlu0 %637
        %vm671 = vcmask 64544
        %672 = vst.msk [vmem:[%s445 + $0x1] sm:$0xff] %vm671, %v576
        %673 = vst.msk [vmem:[%s445 + $0x9] sm:$0xff] %vm671, %v578
        %674 = vst.msk [vmem:[%s445 + $0x19] sm:$0xff] %vm671, %v580
        %675 = vst.msk [vmem:[%s445 + $0x21] sm:$0xff] %vm671, %v582
        %676 = vst.msk [vmem:[%s445 + $0x31] sm:$0xff] %vm671, %v584
        %677 = vst.msk [vmem:[%s445 + $0x39] sm:$0xff] %vm671, %v586
        %678 = vst.msk [vmem:[%s445 + $0x49] sm:$0xff] %vm671, %v588
        %679 = vst.msk [vmem:[%s445 + $0x51] sm:$0xff] %vm671, %v590
        %680 = vst.msk [vmem:[%s445 + $0x61] sm:$0xff] %vm671, %v592
        %681 = vst.msk [vmem:[%s445 + $0x69] sm:$0xff] %vm671, %v594
        %682 = vst.msk [vmem:[%s445 + $0x79] sm:$0xff] %vm671, %v596
        %683 = vst.msk [vmem:[%s445 + $0x81] sm:$0xff] %vm671, %v598
        %684 = vst.msk [vmem:[%s445 + $0x91] sm:$0xff] %vm671, %v600
        %685 = vst.msk [vmem:[%s445 + $0x99] sm:$0xff] %vm671, %v602
        %686 = vst.msk [vmem:[%s445 + $0xa9] sm:$0xff] %vm671, %v604
        %687 = vst.msk [vmem:[%s445 + $0xb1] sm:$0xff] %vm671, %v606
        %688 = vst.msk [vmem:[%s445 + $0xc1] sm:$0xff] %vm671, %v608
        %689 = vst.msk [vmem:[%s445 + $0xc9] sm:$0xff] %vm671, %v610
        %690 = vst.msk [vmem:[%s445 + $0xd9] sm:$0xff] %vm671, %v612
        %691 = vst.msk [vmem:[%s445 + $0xe1] sm:$0xff] %vm671, %v614
        %692 = vst.msk [vmem:[%s445 + $0xf1] sm:$0xff] %vm671, %v616
        %693 = vst.msk [vmem:[%s445 + $0xf9] sm:$0xff] %vm671, %v618
        %694 = vst.msk [vmem:[%s445 + $0x109] sm:$0xff] %vm671, %v620
        %695 = vst.msk [vmem:[%s445 + $0x111] sm:$0xff] %vm671, %v622
        %696 = vst.msk [vmem:[%s445 + $0x121] sm:$0xff] %vm671, %v624
        %697 = vst.msk [vmem:[%s445 + $0x129] sm:$0xff] %vm671, %v626
        %698 = vst.msk [vmem:[%s445 + $0x139] sm:$0xff] %vm671, %v628
        %699 = vst.msk [vmem:[%s445 + $0x141] sm:$0xff] %vm671, %v630
        %700 = vst.msk [vmem:[%s445 + $0x151] sm:$0xff] %vm671, %v632
        %701 = vst.msk [vmem:[%s445 + $0x159] sm:$0xff] %vm671, %v634
        %702 = vst.msk [vmem:[%s445 + $0x169] sm:$0xff] %vm671, %v636
        %703 = vst.msk [vmem:[%s445 + $0x171] sm:$0xff] %vm671, %v638
        %v704 = vld [vmem:[#allocation2] sm:$0xff]
        %v705 = vld [vmem:[#allocation2 + $0x8] sm:$0xff]
        %v706 = vld [vmem:[#allocation2 + $0x18] sm:$0xff]
        %v707 = vld [vmem:[#allocation2 + $0x20] sm:$0xff]
        %v708 = vld [vmem:[#allocation2 + $0x30] sm:$0xff]
        %v709 = vld [vmem:[#allocation2 + $0x38] sm:$0xff]
        %v710 = vld [vmem:[#allocation2 + $0x48] sm:$0xff]
        %v711 = vld [vmem:[#allocation2 + $0x50] sm:$0xff]
        %v712 = vld [vmem:[#allocation2 + $0x60] sm:$0xff]
        %v713 = vld [vmem:[#allocation2 + $0x68] sm:$0xff]
        %v714 = vld [vmem:[#allocation2 + $0x78] sm:$0xff]
        %v715 = vld [vmem:[#allocation2 + $0x80] sm:$0xff]
        %v716 = vld [vmem:[#allocation2 + $0x90] sm:$0xff]
        %v717 = vld [vmem:[#allocation2 + $0x98] sm:$0xff]
        %v718 = vld [vmem:[#allocation2 + $0xa8] sm:$0xff]
        %v719 = vld [vmem:[#allocation2 + $0xb0] sm:$0xff]
        %v720 = vld [vmem:[#allocation2 + $0xc0] sm:$0xff]
        %v721 = vld [vmem:[#allocation2 + $0xc8] sm:$0xff]
        %v722 = vld [vmem:[#allocation2 + $0xd8] sm:$0xff]
        %v723 = vld [vmem:[#allocation2 + $0xe0] sm:$0xff]
        %v724 = vld [vmem:[#allocation2 + $0xf0] sm:$0xff]
        %v725 = vld [vmem:[#allocation2 + $0xf8] sm:$0xff]
        %v726 = vld [vmem:[#allocation2 + $0x108] sm:$0xff]
        %v727 = vld [vmem:[#allocation2 + $0x110] sm:$0xff]
        %v728 = vld [vmem:[#allocation2 + $0x120] sm:$0xff]
        %v729 = vld [vmem:[#allocation2 + $0x128] sm:$0xff]
        %v730 = vld [vmem:[#allocation2 + $0x138] sm:$0xff]
        %v731 = vld [vmem:[#allocation2 + $0x140] sm:$0xff]
        %v732 = vld [vmem:[#allocation2 + $0x150] sm:$0xff]
        %v733 = vld [vmem:[#allocation2 + $0x158] sm:$0xff]
        %v734 = vld [vmem:[#allocation2 + $0x168] sm:$0xff]
        %v735 = vld [vmem:[#allocation2 + $0x170] sm:$0xff]
        %736 = vst.msk [vmem:[#allocation4] sm:$0xff] %vm325, %v704
        %737 = vst.msk [vmem:[#allocation4 + $0x8] sm:$0xff] %vm325, %v705
        %738 = vst.msk [vmem:[#allocation4 + $0x10] sm:$0xff] %vm325, %v706
        %739 = vst.msk [vmem:[#allocation4 + $0x18] sm:$0xff] %vm325, %v707
        %740 = vst.msk [vmem:[#allocation4 + $0x20] sm:$0xff] %vm325, %v708
        %741 = vst.msk [vmem:[#allocation4 + $0x28] sm:$0xff] %vm325, %v709
        %742 = vst.msk [vmem:[#allocation4 + $0x30] sm:$0xff] %vm325, %v710
        %743 = vst.msk [vmem:[#allocation4 + $0x38] sm:$0xff] %vm325, %v711
        %744 = vst.msk [vmem:[#allocation4 + $0x40] sm:$0xff] %vm325, %v712
        %745 = vst.msk [vmem:[#allocation4 + $0x48] sm:$0xff] %vm325, %v713
        %746 = vst.msk [vmem:[#allocation4 + $0x50] sm:$0xff] %vm325, %v714
        %747 = vst.msk [vmem:[#allocation4 + $0x58] sm:$0xff] %vm325, %v715
        %748 = vst.msk [vmem:[#allocation4 + $0x60] sm:$0xff] %vm325, %v716
        %749 = vst.msk [vmem:[#allocation4 + $0x68] sm:$0xff] %vm325, %v717
        %750 = vst.msk [vmem:[#allocation4 + $0x70] sm:$0xff] %vm325, %v718
        %751 = vst.msk [vmem:[#allocation4 + $0x78] sm:$0xff] %vm325, %v719
        %752 = vst.msk [vmem:[#allocation4 + $0x80] sm:$0xff] %vm325, %v720
        %753 = vst.msk [vmem:[#allocation4 + $0x88] sm:$0xff] %vm325, %v721
        %754 = vst.msk [vmem:[#allocation4 + $0x90] sm:$0xff] %vm325, %v722
        %755 = vst.msk [vmem:[#allocation4 + $0x98] sm:$0xff] %vm325, %v723
        %756 = vst.msk [vmem:[#allocation4 + $0xa0] sm:$0xff] %vm325, %v724
        %757 = vst.msk [vmem:[#allocation4 + $0xa8] sm:$0xff] %vm325, %v725
        %758 = vst.msk [vmem:[#allocation4 + $0xb0] sm:$0xff] %vm325, %v726
        %759 = vst.msk [vmem:[#allocation4 + $0xb8] sm:$0xff] %vm325, %v727
        %760 = vst.msk [vmem:[#allocation4 + $0xc0] sm:$0xff] %vm325, %v728
        %761 = vst.msk [vmem:[#allocation4 + $0xc8] sm:$0xff] %vm325, %v729
        %762 = vst.msk [vmem:[#allocation4 + $0xd0] sm:$0xff] %vm325, %v730
        %763 = vst.msk [vmem:[#allocation4 + $0xd8] sm:$0xff] %vm325, %v731
        %764 = vst.msk [vmem:[#allocation4 + $0xe0] sm:$0xff] %vm325, %v732
        %765 = vst.msk [vmem:[#allocation4 + $0xe8] sm:$0xff] %vm325, %v733
        %766 = vst.msk [vmem:[#allocation4 + $0xf0] sm:$0xff] %vm325, %v734
        %767 = vst.msk [vmem:[#allocation4 + $0xf8] sm:$0xff] %vm325, %v735
        %v768 = vld [vmem:[#allocation2 + $0x1] sm:$0xff]
        %v769 = vld [vmem:[#allocation2 + $0x9] sm:$0xff]
        %v770 = vld [vmem:[#allocation2 + $0x19] sm:$0xff]
        %v771 = vld [vmem:[#allocation2 + $0x21] sm:$0xff]
        %v772 = vld [vmem:[#allocation2 + $0x31] sm:$0xff]
        %v773 = vld [vmem:[#allocation2 + $0x39] sm:$0xff]
        %v774 = vld [vmem:[#allocation2 + $0x49] sm:$0xff]
        %v775 = vld [vmem:[#allocation2 + $0x51] sm:$0xff]
        %v776 = vld [vmem:[#allocation2 + $0x61] sm:$0xff]
        %v777 = vld [vmem:[#allocation2 + $0x69] sm:$0xff]
        %v778 = vld [vmem:[#allocation2 + $0x79] sm:$0xff]
        %v779 = vld [vmem:[#allocation2 + $0x81] sm:$0xff]
        %v780 = vld [vmem:[#allocation2 + $0x91] sm:$0xff]
        %v781 = vld [vmem:[#allocation2 + $0x99] sm:$0xff]
        %v782 = vld [vmem:[#allocation2 + $0xa9] sm:$0xff]
        %v783 = vld [vmem:[#allocation2 + $0xb1] sm:$0xff]
        %v784 = vld [vmem:[#allocation2 + $0xc1] sm:$0xff]
        %v785 = vld [vmem:[#allocation2 + $0xc9] sm:$0xff]
        %v786 = vld [vmem:[#allocation2 + $0xd9] sm:$0xff]
        %v787 = vld [vmem:[#allocation2 + $0xe1] sm:$0xff]
        %v788 = vld [vmem:[#allocation2 + $0xf1] sm:$0xff]
        %v789 = vld [vmem:[#allocation2 + $0xf9] sm:$0xff]
        %v790 = vld [vmem:[#allocation2 + $0x109] sm:$0xff]
        %v791 = vld [vmem:[#allocation2 + $0x111] sm:$0xff]
        %v792 = vld [vmem:[#allocation2 + $0x121] sm:$0xff]
        %v793 = vld [vmem:[#allocation2 + $0x129] sm:$0xff]
        %v794 = vld [vmem:[#allocation2 + $0x139] sm:$0xff]
        %v795 = vld [vmem:[#allocation2 + $0x141] sm:$0xff]
        %v796 = vld [vmem:[#allocation2 + $0x151] sm:$0xff]
        %v797 = vld [vmem:[#allocation2 + $0x159] sm:$0xff]
        %v798 = vld [vmem:[#allocation2 + $0x169] sm:$0xff]
        %v799 = vld [vmem:[#allocation2 + $0x171] sm:$0xff]
        %832 = vrot.lane.b32.xlu0 %v768, 8
        %v833 = vpop.permute.xlu0 %832
        %834 = vrot.lane.b32.xlu0 %v769, 8
        %v835 = vpop.permute.xlu0 %834
        %836 = vrot.lane.b32.xlu0 %v770, 8
        %v837 = vpop.permute.xlu0 %836
        %838 = vrot.lane.b32.xlu0 %v771, 8
        %v839 = vpop.permute.xlu0 %838
        %840 = vrot.lane.b32.xlu0 %v772, 8
        %v841 = vpop.permute.xlu0 %840
        %842 = vrot.lane.b32.xlu0 %v773, 8
        %v843 = vpop.permute.xlu0 %842
        %844 = vrot.lane.b32.xlu0 %v774, 8
        %v845 = vpop.permute.xlu0 %844
        %846 = vrot.lane.b32.xlu0 %v775, 8
        %v847 = vpop.permute.xlu0 %846
        %848 = vrot.lane.b32.xlu0 %v776, 8
        %v849 = vpop.permute.xlu0 %848
        %850 = vrot.lane.b32.xlu0 %v777, 8
        %v851 = vpop.permute.xlu0 %850
        %852 = vrot.lane.b32.xlu0 %v778, 8
        %v853 = vpop.permute.xlu0 %852
        %854 = vrot.lane.b32.xlu0 %v779, 8
        %v855 = vpop.permute.xlu0 %854
        %856 = vrot.lane.b32.xlu0 %v780, 8
        %v857 = vpop.permute.xlu0 %856
        %858 = vrot.lane.b32.xlu0 %v781, 8
        %v859 = vpop.permute.xlu0 %858
        %860 = vrot.lane.b32.xlu0 %v782, 8
        %v861 = vpop.permute.xlu0 %860
        %862 = vrot.lane.b32.xlu0 %v783, 8
        %v863 = vpop.permute.xlu0 %862
        %864 = vrot.lane.b32.xlu0 %v784, 8
        %v865 = vpop.permute.xlu0 %864
        %866 = vrot.lane.b32.xlu0 %v785, 8
        %v867 = vpop.permute.xlu0 %866
        %868 = vrot.lane.b32.xlu0 %v786, 8
        %v869 = vpop.permute.xlu0 %868
        %870 = vrot.lane.b32.xlu0 %v787, 8
        %v871 = vpop.permute.xlu0 %870
        %872 = vrot.lane.b32.xlu0 %v788, 8
        %v873 = vpop.permute.xlu0 %872
        %874 = vrot.lane.b32.xlu0 %v789, 8
        %v875 = vpop.permute.xlu0 %874
        %876 = vrot.lane.b32.xlu0 %v790, 8
        %v877 = vpop.permute.xlu0 %876
        %878 = vrot.lane.b32.xlu0 %v791, 8
        %v879 = vpop.permute.xlu0 %878
        %880 = vrot.lane.b32.xlu0 %v792, 8
        %v881 = vpop.permute.xlu0 %880
        %882 = vrot.lane.b32.xlu0 %v793, 8
        %v883 = vpop.permute.xlu0 %882
        %884 = vrot.lane.b32.xlu0 %v794, 8
        %v885 = vpop.permute.xlu0 %884
        %886 = vrot.lane.b32.xlu0 %v795, 8
        %v887 = vpop.permute.xlu0 %886
        %888 = vrot.lane.b32.xlu0 %v796, 8
        %v889 = vpop.permute.xlu0 %888
        %890 = vrot.lane.b32.xlu0 %v797, 8
        %v891 = vpop.permute.xlu0 %890
        %892 = vrot.lane.b32.xlu0 %v798, 8
        %v893 = vpop.permute.xlu0 %892
        %894 = vrot.lane.b32.xlu0 %v799, 8
        %v895 = vpop.permute.xlu0 %894
        %vm928 = vcmask 130112
        %929 = vst.msk [vmem:[#allocation4] sm:$0xff] %vm928, %v833
        %930 = vst.msk [vmem:[#allocation4 + $0x8] sm:$0xff] %vm928, %v835
        %931 = vst.msk [vmem:[#allocation4 + $0x10] sm:$0xff] %vm928, %v837
        %932 = vst.msk [vmem:[#allocation4 + $0x18] sm:$0xff] %vm928, %v839
        %933 = vst.msk [vmem:[#allocation4 + $0x20] sm:$0xff] %vm928, %v841
        %934 = vst.msk [vmem:[#allocation4 + $0x28] sm:$0xff] %vm928, %v843
        %935 = vst.msk [vmem:[#allocation4 + $0x30] sm:$0xff] %vm928, %v845
        %936 = vst.msk [vmem:[#allocation4 + $0x38] sm:$0xff] %vm928, %v847
        %937 = vst.msk [vmem:[#allocation4 + $0x40] sm:$0xff] %vm928, %v849
        %938 = vst.msk [vmem:[#allocation4 + $0x48] sm:$0xff] %vm928, %v851
        %939 = vst.msk [vmem:[#allocation4 + $0x50] sm:$0xff] %vm928, %v853
        %940 = vst.msk [vmem:[#allocation4 + $0x58] sm:$0xff] %vm928, %v855
        %941 = vst.msk [vmem:[#allocation4 + $0x60] sm:$0xff] %vm928, %v857
        %942 = vst.msk [vmem:[#allocation4 + $0x68] sm:$0xff] %vm928, %v859
        %943 = vst.msk [vmem:[#allocation4 + $0x70] sm:$0xff] %vm928, %v861
        %944 = vst.msk [vmem:[#allocation4 + $0x78] sm:$0xff] %vm928, %v863
        %945 = vst.msk [vmem:[#allocation4 + $0x80] sm:$0xff] %vm928, %v865
        %946 = vst.msk [vmem:[#allocation4 + $0x88] sm:$0xff] %vm928, %v867
        %947 = vst.msk [vmem:[#allocation4 + $0x90] sm:$0xff] %vm928, %v869
        %948 = vst.msk [vmem:[#allocation4 + $0x98] sm:$0xff] %vm928, %v871
        %949 = vst.msk [vmem:[#allocation4 + $0xa0] sm:$0xff] %vm928, %v873
        %950 = vst.msk [vmem:[#allocation4 + $0xa8] sm:$0xff] %vm928, %v875
        %951 = vst.msk [vmem:[#allocation4 + $0xb0] sm:$0xff] %vm928, %v877
        %952 = vst.msk [vmem:[#allocation4 + $0xb8] sm:$0xff] %vm928, %v879
        %953 = vst.msk [vmem:[#allocation4 + $0xc0] sm:$0xff] %vm928, %v881
        %954 = vst.msk [vmem:[#allocation4 + $0xc8] sm:$0xff] %vm928, %v883
        %955 = vst.msk [vmem:[#allocation4 + $0xd0] sm:$0xff] %vm928, %v885
        %956 = vst.msk [vmem:[#allocation4 + $0xd8] sm:$0xff] %vm928, %v887
        %957 = vst.msk [vmem:[#allocation4 + $0xe0] sm:$0xff] %vm928, %v889
        %958 = vst.msk [vmem:[#allocation4 + $0xe8] sm:$0xff] %vm928, %v891
        %959 = vst.msk [vmem:[#allocation4 + $0xf0] sm:$0xff] %vm928, %v893
        %960 = vst.msk [vmem:[#allocation4 + $0xf8] sm:$0xff] %vm928, %v895
        %v961 = vld [vmem:[#allocation2 + $0x2] sm:$0xff]
        %v962 = vld [vmem:[#allocation2 + $0xa] sm:$0xff]
        %v963 = vld [vmem:[#allocation2 + $0x1a] sm:$0xff]
        %v964 = vld [vmem:[#allocation2 + $0x22] sm:$0xff]
        %v965 = vld [vmem:[#allocation2 + $0x32] sm:$0xff]
        %v966 = vld [vmem:[#allocation2 + $0x3a] sm:$0xff]
        %v967 = vld [vmem:[#allocation2 + $0x4a] sm:$0xff]
        %v968 = vld [vmem:[#allocation2 + $0x52] sm:$0xff]
        %v969 = vld [vmem:[#allocation2 + $0x62] sm:$0xff]
        %v970 = vld [vmem:[#allocation2 + $0x6a] sm:$0xff]
        %v971 = vld [vmem:[#allocation2 + $0x7a] sm:$0xff]
        %v972 = vld [vmem:[#allocation2 + $0x82] sm:$0xff]
        %v973 = vld [vmem:[#allocation2 + $0x92] sm:$0xff]
        %v974 = vld [vmem:[#allocation2 + $0x9a] sm:$0xff]
        %v975 = vld [vmem:[#allocation2 + $0xaa] sm:$0xff]
        %v976 = vld [vmem:[#allocation2 + $0xb2] sm:$0xff]
        %v977 = vld [vmem:[#allocation2 + $0xc2] sm:$0xff]
        %v978 = vld [vmem:[#allocation2 + $0xca] sm:$0xff]
        %v979 = vld [vmem:[#allocation2 + $0xda] sm:$0xff]
        %v980 = vld [vmem:[#allocation2 + $0xe2] sm:$0xff]
        %v981 = vld [vmem:[#allocation2 + $0xf2] sm:$0xff]
        %v982 = vld [vmem:[#allocation2 + $0xfa] sm:$0xff]
        %v983 = vld [vmem:[#allocation2 + $0x10a] sm:$0xff]
        %v984 = vld [vmem:[#allocation2 + $0x112] sm:$0xff]
        %v985 = vld [vmem:[#allocation2 + $0x122] sm:$0xff]
        %v986 = vld [vmem:[#allocation2 + $0x12a] sm:$0xff]
        %v987 = vld [vmem:[#allocation2 + $0x13a] sm:$0xff]
        %v988 = vld [vmem:[#allocation2 + $0x142] sm:$0xff]
        %v989 = vld [vmem:[#allocation2 + $0x152] sm:$0xff]
        %v990 = vld [vmem:[#allocation2 + $0x15a] sm:$0xff]
        %v991 = vld [vmem:[#allocation2 + $0x16a] sm:$0xff]
        %v992 = vld [vmem:[#allocation2 + $0x172] sm:$0xff]
        %1025 = vrot.lane.b32.xlu0 %v961, 16
        %v1026 = vpop.permute.xlu0 %1025
        %1027 = vrot.lane.b32.xlu0 %v962, 16
        %v1028 = vpop.permute.xlu0 %1027
        %1029 = vrot.lane.b32.xlu0 %v963, 16
        %v1030 = vpop.permute.xlu0 %1029
        %1031 = vrot.lane.b32.xlu0 %v964, 16
        %v1032 = vpop.permute.xlu0 %1031
        %1033 = vrot.lane.b32.xlu0 %v965, 16
        %v1034 = vpop.permute.xlu0 %1033
        %1035 = vrot.lane.b32.xlu0 %v966, 16
        %v1036 = vpop.permute.xlu0 %1035
        %1037 = vrot.lane.b32.xlu0 %v967, 16
        %v1038 = vpop.permute.xlu0 %1037
        %1039 = vrot.lane.b32.xlu0 %v968, 16
        %v1040 = vpop.permute.xlu0 %1039
        %1041 = vrot.lane.b32.xlu0 %v969, 16
        %v1042 = vpop.permute.xlu0 %1041
        %1043 = vrot.lane.b32.xlu0 %v970, 16
        %v1044 = vpop.permute.xlu0 %1043
        %1045 = vrot.lane.b32.xlu0 %v971, 16
        %v1046 = vpop.permute.xlu0 %1045
        %1047 = vrot.lane.b32.xlu0 %v972, 16
        %v1048 = vpop.permute.xlu0 %1047
        %1049 = vrot.lane.b32.xlu0 %v973, 16
        %v1050 = vpop.permute.xlu0 %1049
        %1051 = vrot.lane.b32.xlu0 %v974, 16
        %v1052 = vpop.permute.xlu0 %1051
        %1053 = vrot.lane.b32.xlu0 %v975, 16
        %v1054 = vpop.permute.xlu0 %1053
        %1055 = vrot.lane.b32.xlu0 %v976, 16
        %v1056 = vpop.permute.xlu0 %1055
        %1057 = vrot.lane.b32.xlu0 %v977, 16
        %v1058 = vpop.permute.xlu0 %1057
        %1059 = vrot.lane.b32.xlu0 %v978, 16
        %v1060 = vpop.permute.xlu0 %1059
        %1061 = vrot.lane.b32.xlu0 %v979, 16
        %v1062 = vpop.permute.xlu0 %1061
        %1063 = vrot.lane.b32.xlu0 %v980, 16
        %v1064 = vpop.permute.xlu0 %1063
        %1065 = vrot.lane.b32.xlu0 %v981, 16
        %v1066 = vpop.permute.xlu0 %1065
        %1067 = vrot.lane.b32.xlu0 %v982, 16
        %v1068 = vpop.permute.xlu0 %1067
        %1069 = vrot.lane.b32.xlu0 %v983, 16
        %v1070 = vpop.permute.xlu0 %1069
        %1071 = vrot.lane.b32.xlu0 %v984, 16
        %v1072 = vpop.permute.xlu0 %1071
        %1073 = vrot.lane.b32.xlu0 %v985, 16
        %v1074 = vpop.permute.xlu0 %1073
        %1075 = vrot.lane.b32.xlu0 %v986, 16
        %v1076 = vpop.permute.xlu0 %1075
        %1077 = vrot.lane.b32.xlu0 %v987, 16
        %v1078 = vpop.permute.xlu0 %1077
        %1079 = vrot.lane.b32.xlu0 %v988, 16
        %v1080 = vpop.permute.xlu0 %1079
        %1081 = vrot.lane.b32.xlu0 %v989, 16
        %v1082 = vpop.permute.xlu0 %1081
        %1083 = vrot.lane.b32.xlu0 %v990, 16
        %v1084 = vpop.permute.xlu0 %1083
        %1085 = vrot.lane.b32.xlu0 %v991, 16
        %v1086 = vpop.permute.xlu0 %1085
        %1087 = vrot.lane.b32.xlu0 %v992, 16
        %v1088 = vpop.permute.xlu0 %1087
        %vm1121 = vcmask 195712
        %1122 = vst.msk [vmem:[#allocation4] sm:$0xff] %vm1121, %v1026
        %1123 = vst.msk [vmem:[#allocation4 + $0x8] sm:$0xff] %vm1121, %v1028
        %1124 = vst.msk [vmem:[#allocation4 + $0x10] sm:$0xff] %vm1121, %v1030
        %1125 = vst.msk [vmem:[#allocation4 + $0x18] sm:$0xff] %vm1121, %v1032
        %1126 = vst.msk [vmem:[#allocation4 + $0x20] sm:$0xff] %vm1121, %v1034
        %1127 = vst.msk [vmem:[#allocation4 + $0x28] sm:$0xff] %vm1121, %v1036
        %1128 = vst.msk [vmem:[#allocation4 + $0x30] sm:$0xff] %vm1121, %v1038
        %1129 = vst.msk [vmem:[#allocation4 + $0x38] sm:$0xff] %vm1121, %v1040
        %1130 = vst.msk [vmem:[#allocation4 + $0x40] sm:$0xff] %vm1121, %v1042
        %1131 = vst.msk [vmem:[#allocation4 + $0x48] sm:$0xff] %vm1121, %v1044
        %1132 = vst.msk [vmem:[#allocation4 + $0x50] sm:$0xff] %vm1121, %v1046
        %1133 = vst.msk [vmem:[#allocation4 + $0x58] sm:$0xff] %vm1121, %v1048
        %1134 = vst.msk [vmem:[#allocation4 + $0x60] sm:$0xff] %vm1121, %v1050
        %1135 = vst.msk [vmem:[#allocation4 + $0x68] sm:$0xff] %vm1121, %v1052
        %1136 = vst.msk [vmem:[#allocation4 + $0x70] sm:$0xff] %vm1121, %v1054
        %1137 = vst.msk [vmem:[#allocation4 + $0x78] sm:$0xff] %vm1121, %v1056
        %1138 = vst.msk [vmem:[#allocation4 + $0x80] sm:$0xff] %vm1121, %v1058
        %1139 = vst.msk [vmem:[#allocation4 + $0x88] sm:$0xff] %vm1121, %v1060
        %1140 = vst.msk [vmem:[#allocation4 + $0x90] sm:$0xff] %vm1121, %v1062
        %1141 = vst.msk [vmem:[#allocation4 + $0x98] sm:$0xff] %vm1121, %v1064
        %1142 = vst.msk [vmem:[#allocation4 + $0xa0] sm:$0xff] %vm1121, %v1066
        %1143 = vst.msk [vmem:[#allocation4 + $0xa8] sm:$0xff] %vm1121, %v1068
        %1144 = vst.msk [vmem:[#allocation4 + $0xb0] sm:$0xff] %vm1121, %v1070
        %1145 = vst.msk [vmem:[#allocation4 + $0xb8] sm:$0xff] %vm1121, %v1072
        %1146 = vst.msk [vmem:[#allocation4 + $0xc0] sm:$0xff] %vm1121, %v1074
        %1147 = vst.msk [vmem:[#allocation4 + $0xc8] sm:$0xff] %vm1121, %v1076
        %1148 = vst.msk [vmem:[#allocation4 + $0xd0] sm:$0xff] %vm1121, %v1078
        %1149 = vst.msk [vmem:[#allocation4 + $0xd8] sm:$0xff] %vm1121, %v1080
        %1150 = vst.msk [vmem:[#allocation4 + $0xe0] sm:$0xff] %vm1121, %v1082
        %1151 = vst.msk [vmem:[#allocation4 + $0xe8] sm:$0xff] %vm1121, %v1084
        %1152 = vst.msk [vmem:[#allocation4 + $0xf0] sm:$0xff] %vm1121, %v1086
        %1153 = vst.msk [vmem:[#allocation4 + $0xf8] sm:$0xff] %vm1121, %v1088
        %v1154 = vld [vmem:[%s445] sm:$0xff]
        %v1155 = vld [vmem:[%s445 + $0x8] sm:$0xff]
        %v1156 = vld [vmem:[%s445 + $0x18] sm:$0xff]
        %v1157 = vld [vmem:[%s445 + $0x20] sm:$0xff]
        %v1158 = vld [vmem:[%s445 + $0x30] sm:$0xff]
        %v1159 = vld [vmem:[%s445 + $0x38] sm:$0xff]
        %v1160 = vld [vmem:[%s445 + $0x48] sm:$0xff]
        %v1161 = vld [vmem:[%s445 + $0x50] sm:$0xff]
        %v1162 = vld [vmem:[%s445 + $0x60] sm:$0xff]
        %v1163 = vld [vmem:[%s445 + $0x68] sm:$0xff]
        %v1164 = vld [vmem:[%s445 + $0x78] sm:$0xff]
        %v1165 = vld [vmem:[%s445 + $0x80] sm:$0xff]
        %v1166 = vld [vmem:[%s445 + $0x90] sm:$0xff]
        %v1167 = vld [vmem:[%s445 + $0x98] sm:$0xff]
        %v1168 = vld [vmem:[%s445 + $0xa8] sm:$0xff]
        %v1169 = vld [vmem:[%s445 + $0xb0] sm:$0xff]
        %v1170 = vld [vmem:[%s445 + $0xc0] sm:$0xff]
        %v1171 = vld [vmem:[%s445 + $0xc8] sm:$0xff]
        %v1172 = vld [vmem:[%s445 + $0xd8] sm:$0xff]
        %v1173 = vld [vmem:[%s445 + $0xe0] sm:$0xff]
        %v1174 = vld [vmem:[%s445 + $0xf0] sm:$0xff]
        %v1175 = vld [vmem:[%s445 + $0xf8] sm:$0xff]
        %v1176 = vld [vmem:[%s445 + $0x108] sm:$0xff]
        %v1177 = vld [vmem:[%s445 + $0x110] sm:$0xff]
        %v1178 = vld [vmem:[%s445 + $0x120] sm:$0xff]
        %v1179 = vld [vmem:[%s445 + $0x128] sm:$0xff]
        %v1180 = vld [vmem:[%s445 + $0x138] sm:$0xff]
        %v1181 = vld [vmem:[%s445 + $0x140] sm:$0xff]
        %v1182 = vld [vmem:[%s445 + $0x150] sm:$0xff]
        %v1183 = vld [vmem:[%s445 + $0x158] sm:$0xff]
        %v1184 = vld [vmem:[%s445 + $0x168] sm:$0xff]
        %v1185 = vld [vmem:[%s445 + $0x170] sm:$0xff]
        %1218 = vrot.lane.b32.xlu0 %v1154, 24
        %v1219 = vpop.permute.xlu0 %1218
        %1220 = vrot.lane.b32.xlu0 %v1155, 24
        %v1221 = vpop.permute.xlu0 %1220
        %1222 = vrot.lane.b32.xlu0 %v1156, 24
        %v1223 = vpop.permute.xlu0 %1222
        %1224 = vrot.lane.b32.xlu0 %v1157, 24
        %v1225 = vpop.permute.xlu0 %1224
        %1226 = vrot.lane.b32.xlu0 %v1158, 24
        %v1227 = vpop.permute.xlu0 %1226
        %1228 = vrot.lane.b32.xlu0 %v1159, 24
        %v1229 = vpop.permute.xlu0 %1228
        %1230 = vrot.lane.b32.xlu0 %v1160, 24
        %v1231 = vpop.permute.xlu0 %1230
        %1232 = vrot.lane.b32.xlu0 %v1161, 24
        %v1233 = vpop.permute.xlu0 %1232
        %1234 = vrot.lane.b32.xlu0 %v1162, 24
        %v1235 = vpop.permute.xlu0 %1234
        %1236 = vrot.lane.b32.xlu0 %v1163, 24
        %v1237 = vpop.permute.xlu0 %1236
        %1238 = vrot.lane.b32.xlu0 %v1164, 24
        %v1239 = vpop.permute.xlu0 %1238
        %1240 = vrot.lane.b32.xlu0 %v1165, 24
        %v1241 = vpop.permute.xlu0 %1240
        %1242 = vrot.lane.b32.xlu0 %v1166, 24
        %v1243 = vpop.permute.xlu0 %1242
        %1244 = vrot.lane.b32.xlu0 %v1167, 24
        %v1245 = vpop.permute.xlu0 %1244
        %1246 = vrot.lane.b32.xlu0 %v1168, 24
        %v1247 = vpop.permute.xlu0 %1246
        %1248 = vrot.lane.b32.xlu0 %v1169, 24
        %v1249 = vpop.permute.xlu0 %1248
        %1250 = vrot.lane.b32.xlu0 %v1170, 24
        %v1251 = vpop.permute.xlu0 %1250
        %1252 = vrot.lane.b32.xlu0 %v1171, 24
        %v1253 = vpop.permute.xlu0 %1252
        %1254 = vrot.lane.b32.xlu0 %v1172, 24
        %v1255 = vpop.permute.xlu0 %1254
        %1256 = vrot.lane.b32.xlu0 %v1173, 24
        %v1257 = vpop.permute.xlu0 %1256
        %1258 = vrot.lane.b32.xlu0 %v1174, 24
        %v1259 = vpop.permute.xlu0 %1258
        %1260 = vrot.lane.b32.xlu0 %v1175, 24
        %v1261 = vpop.permute.xlu0 %1260
        %1262 = vrot.lane.b32.xlu0 %v1176, 24
        %v1263 = vpop.permute.xlu0 %1262
        %1264 = vrot.lane.b32.xlu0 %v1177, 24
        %v1265 = vpop.permute.xlu0 %1264
        %1266 = vrot.lane.b32.xlu0 %v1178, 24
        %v1267 = vpop.permute.xlu0 %1266
        %1268 = vrot.lane.b32.xlu0 %v1179, 24
        %v1269 = vpop.permute.xlu0 %1268
        %1270 = vrot.lane.b32.xlu0 %v1180, 24
        %v1271 = vpop.permute.xlu0 %1270
        %1272 = vrot.lane.b32.xlu0 %v1181, 24
        %v1273 = vpop.permute.xlu0 %1272
        %1274 = vrot.lane.b32.xlu0 %v1182, 24
        %v1275 = vpop.permute.xlu0 %1274
        %1276 = vrot.lane.b32.xlu0 %v1183, 24
        %v1277 = vpop.permute.xlu0 %1276
        %1278 = vrot.lane.b32.xlu0 %v1184, 24
        %v1279 = vpop.permute.xlu0 %1278
        %1280 = vrot.lane.b32.xlu0 %v1185, 24
        %v1281 = vpop.permute.xlu0 %1280
        %vm1314 = vcmask 261312
        %1315 = vst.msk [vmem:[#allocation4] sm:$0xff] %vm1314, %v1219
        %1316 = vst.msk [vmem:[#allocation4 + $0x8] sm:$0xff] %vm1314, %v1221
        %1317 = vst.msk [vmem:[#allocation4 + $0x10] sm:$0xff] %vm1314, %v1223
        %1318 = vst.msk [vmem:[#allocation4 + $0x18] sm:$0xff] %vm1314, %v1225
        %1319 = vst.msk [vmem:[#allocation4 + $0x20] sm:$0xff] %vm1314, %v1227
        %1320 = vst.msk [vmem:[#allocation4 + $0x28] sm:$0xff] %vm1314, %v1229
        %1321 = vst.msk [vmem:[#allocation4 + $0x30] sm:$0xff] %vm1314, %v1231
        %1322 = vst.msk [vmem:[#allocation4 + $0x38] sm:$0xff] %vm1314, %v1233
        %1323 = vst.msk [vmem:[#allocation4 + $0x40] sm:$0xff] %vm1314, %v1235
        %1324 = vst.msk [vmem:[#allocation4 + $0x48] sm:$0xff] %vm1314, %v1237
        %1325 = vst.msk [vmem:[#allocation4 + $0x50] sm:$0xff] %vm1314, %v1239
        %1326 = vst.msk [vmem:[#allocation4 + $0x58] sm:$0xff] %vm1314, %v1241
        %1327 = vst.msk [vmem:[#allocation4 + $0x60] sm:$0xff] %vm1314, %v1243
        %1328 = vst.msk [vmem:[#allocation4 + $0x68] sm:$0xff] %vm1314, %v1245
        %1329 = vst.msk [vmem:[#allocation4 + $0x70] sm:$0xff] %vm1314, %v1247
        %1330 = vst.msk [vmem:[#allocation4 + $0x78] sm:$0xff] %vm1314, %v1249
        %1331 = vst.msk [vmem:[#allocation4 + $0x80] sm:$0xff] %vm1314, %v1251
        %1332 = vst.msk [vmem:[#allocation4 + $0x88] sm:$0xff] %vm1314, %v1253
        %1333 = vst.msk [vmem:[#allocation4 + $0x90] sm:$0xff] %vm1314, %v1255
        %1334 = vst.msk [vmem:[#allocation4 + $0x98] sm:$0xff] %vm1314, %v1257
        %1335 = vst.msk [vmem:[#allocation4 + $0xa0] sm:$0xff] %vm1314, %v1259
        %1336 = vst.msk [vmem:[#allocation4 + $0xa8] sm:$0xff] %vm1314, %v1261
        %1337 = vst.msk [vmem:[#allocation4 + $0xb0] sm:$0xff] %vm1314, %v1263
        %1338 = vst.msk [vmem:[#allocation4 + $0xb8] sm:$0xff] %vm1314, %v1265
        %1339 = vst.msk [vmem:[#allocation4 + $0xc0] sm:$0xff] %vm1314, %v1267
        %1340 = vst.msk [vmem:[#allocation4 + $0xc8] sm:$0xff] %vm1314, %v1269
        %1341 = vst.msk [vmem:[#allocation4 + $0xd0] sm:$0xff] %vm1314, %v1271
        %1342 = vst.msk [vmem:[#allocation4 + $0xd8] sm:$0xff] %vm1314, %v1273
        %1343 = vst.msk [vmem:[#allocation4 + $0xe0] sm:$0xff] %vm1314, %v1275
        %1344 = vst.msk [vmem:[#allocation4 + $0xe8] sm:$0xff] %vm1314, %v1277
        %1345 = vst.msk [vmem:[#allocation4 + $0xf0] sm:$0xff] %vm1314, %v1279
        %1346 = vst.msk [vmem:[#allocation4 + $0xf8] sm:$0xff] %vm1314, %v1281
        %v1347 = vld [vmem:[%s445 + $0x1] sm:$0xff]
        %v1348 = vld [vmem:[%s445 + $0x9] sm:$0xff]
        %v1349 = vld [vmem:[%s445 + $0x19] sm:$0xff]
        %v1350 = vld [vmem:[%s445 + $0x21] sm:$0xff]
        %v1351 = vld [vmem:[%s445 + $0x31] sm:$0xff]
        %v1352 = vld [vmem:[%s445 + $0x39] sm:$0xff]
        %v1353 = vld [vmem:[%s445 + $0x49] sm:$0xff]
        %v1354 = vld [vmem:[%s445 + $0x51] sm:$0xff]
        %v1355 = vld [vmem:[%s445 + $0x61] sm:$0xff]
        %v1356 = vld [vmem:[%s445 + $0x69] sm:$0xff]
        %v1357 = vld [vmem:[%s445 + $0x79] sm:$0xff]
        %v1358 = vld [vmem:[%s445 + $0x81] sm:$0xff]
        %v1359 = vld [vmem:[%s445 + $0x91] sm:$0xff]
        %v1360 = vld [vmem:[%s445 + $0x99] sm:$0xff]
        %v1361 = vld [vmem:[%s445 + $0xa9] sm:$0xff]
        %v1362 = vld [vmem:[%s445 + $0xb1] sm:$0xff]
        %v1363 = vld [vmem:[%s445 + $0xc1] sm:$0xff]
        %v1364 = vld [vmem:[%s445 + $0xc9] sm:$0xff]
        %v1365 = vld [vmem:[%s445 + $0xd9] sm:$0xff]
        %v1366 = vld [vmem:[%s445 + $0xe1] sm:$0xff]
        %v1367 = vld [vmem:[%s445 + $0xf1] sm:$0xff]
        %v1368 = vld [vmem:[%s445 + $0xf9] sm:$0xff]
        %v1369 = vld [vmem:[%s445 + $0x109] sm:$0xff]
        %v1370 = vld [vmem:[%s445 + $0x111] sm:$0xff]
        %v1371 = vld [vmem:[%s445 + $0x121] sm:$0xff]
        %v1372 = vld [vmem:[%s445 + $0x129] sm:$0xff]
        %v1373 = vld [vmem:[%s445 + $0x139] sm:$0xff]
        %v1374 = vld [vmem:[%s445 + $0x141] sm:$0xff]
        %v1375 = vld [vmem:[%s445 + $0x151] sm:$0xff]
        %v1376 = vld [vmem:[%s445 + $0x159] sm:$0xff]
        %v1377 = vld [vmem:[%s445 + $0x169] sm:$0xff]
        %v1378 = vld [vmem:[%s445 + $0x171] sm:$0xff]
        %1411 = vrot.lane.b32.xlu0 %v1347, 32
        %v1412 = vpop.permute.xlu0 %1411
        %1413 = vrot.lane.b32.xlu0 %v1348, 32
        %v1414 = vpop.permute.xlu0 %1413
        %1415 = vrot.lane.b32.xlu0 %v1349, 32
        %v1416 = vpop.permute.xlu0 %1415
        %1417 = vrot.lane.b32.xlu0 %v1350, 32
        %v1418 = vpop.permute.xlu0 %1417
        %1419 = vrot.lane.b32.xlu0 %v1351, 32
        %v1420 = vpop.permute.xlu0 %1419
        %1421 = vrot.lane.b32.xlu0 %v1352, 32
        %v1422 = vpop.permute.xlu0 %1421
        %1423 = vrot.lane.b32.xlu0 %v1353, 32
        %v1424 = vpop.permute.xlu0 %1423
        %1425 = vrot.lane.b32.xlu0 %v1354, 32
        %v1426 = vpop.permute.xlu0 %1425
        %1427 = vrot.lane.b32.xlu0 %v1355, 32
        %v1428 = vpop.permute.xlu0 %1427
        %1429 = vrot.lane.b32.xlu0 %v1356, 32
        %v1430 = vpop.permute.xlu0 %1429
        %1431 = vrot.lane.b32.xlu0 %v1357, 32
        %v1432 = vpop.permute.xlu0 %1431
        %1433 = vrot.lane.b32.xlu0 %v1358, 32
        %v1434 = vpop.permute.xlu0 %1433
        %1435 = vrot.lane.b32.xlu0 %v1359, 32
        %v1436 = vpop.permute.xlu0 %1435
        %1437 = vrot.lane.b32.xlu0 %v1360, 32
        %v1438 = vpop.permute.xlu0 %1437
        %1439 = vrot.lane.b32.xlu0 %v1361, 32
        %v1440 = vpop.permute.xlu0 %1439
        %1441 = vrot.lane.b32.xlu0 %v1362, 32
        %v1442 = vpop.permute.xlu0 %1441
        %1443 = vrot.lane.b32.xlu0 %v1363, 32
        %v1444 = vpop.permute.xlu0 %1443
        %1445 = vrot.lane.b32.xlu0 %v1364, 32
        %v1446 = vpop.permute.xlu0 %1445
        %1447 = vrot.lane.b32.xlu0 %v1365, 32
        %v1448 = vpop.permute.xlu0 %1447
        %1449 = vrot.lane.b32.xlu0 %v1366, 32
        %v1450 = vpop.permute.xlu0 %1449
        %1451 = vrot.lane.b32.xlu0 %v1367, 32
        %v1452 = vpop.permute.xlu0 %1451
        %1453 = vrot.lane.b32.xlu0 %v1368, 32
        %v1454 = vpop.permute.xlu0 %1453
        %1455 = vrot.lane.b32.xlu0 %v1369, 32
        %v1456 = vpop.permute.xlu0 %1455
        %1457 = vrot.lane.b32.xlu0 %v1370, 32
        %v1458 = vpop.permute.xlu0 %1457
        %1459 = vrot.lane.b32.xlu0 %v1371, 32
        %v1460 = vpop.permute.xlu0 %1459
        %1461 = vrot.lane.b32.xlu0 %v1372, 32
        %v1462 = vpop.permute.xlu0 %1461
        %1463 = vrot.lane.b32.xlu0 %v1373, 32
        %v1464 = vpop.permute.xlu0 %1463
        %1465 = vrot.lane.b32.xlu0 %v1374, 32
        %v1466 = vpop.permute.xlu0 %1465
        %1467 = vrot.lane.b32.xlu0 %v1375, 32
        %v1468 = vpop.permute.xlu0 %1467
        %1469 = vrot.lane.b32.xlu0 %v1376, 32
        %v1470 = vpop.permute.xlu0 %1469
        %1471 = vrot.lane.b32.xlu0 %v1377, 32
        %v1472 = vpop.permute.xlu0 %1471
        %1473 = vrot.lane.b32.xlu0 %v1378, 32
        %v1474 = vpop.permute.xlu0 %1473
        %vm1507 = vcmask 326912
        %1508 = vst.msk [vmem:[#allocation4] sm:$0xff] %vm1507, %v1412
        %1509 = vst.msk [vmem:[#allocation4 + $0x8] sm:$0xff] %vm1507, %v1414
        %1510 = vst.msk [vmem:[#allocation4 + $0x10] sm:$0xff] %vm1507, %v1416
        %1511 = vst.msk [vmem:[#allocation4 + $0x18] sm:$0xff] %vm1507, %v1418
        %1512 = vst.msk [vmem:[#allocation4 + $0x20] sm:$0xff] %vm1507, %v1420
        %1513 = vst.msk [vmem:[#allocation4 + $0x28] sm:$0xff] %vm1507, %v1422
        %1514 = vst.msk [vmem:[#allocation4 + $0x30] sm:$0xff] %vm1507, %v1424
        %1515 = vst.msk [vmem:[#allocation4 + $0x38] sm:$0xff] %vm1507, %v1426
        %1516 = vst.msk [vmem:[#allocation4 + $0x40] sm:$0xff] %vm1507, %v1428
        %1517 = vst.msk [vmem:[#allocation4 + $0x48] sm:$0xff] %vm1507, %v1430
        %1518 = vst.msk [vmem:[#allocation4 + $0x50] sm:$0xff] %vm1507, %v1432
        %1519 = vst.msk [vmem:[#allocation4 + $0x58] sm:$0xff] %vm1507, %v1434
        %1520 = vst.msk [vmem:[#allocation4 + $0x60] sm:$0xff] %vm1507, %v1436
        %1521 = vst.msk [vmem:[#allocation4 + $0x68] sm:$0xff] %vm1507, %v1438
        %1522 = vst.msk [vmem:[#allocation4 + $0x70] sm:$0xff] %vm1507, %v1440
        %1523 = vst.msk [vmem:[#allocation4 + $0x78] sm:$0xff] %vm1507, %v1442
        %1524 = vst.msk [vmem:[#allocation4 + $0x80] sm:$0xff] %vm1507, %v1444
        %1525 = vst.msk [vmem:[#allocation4 + $0x88] sm:$0xff] %vm1507, %v1446
        %1526 = vst.msk [vmem:[#allocation4 + $0x90] sm:$0xff] %vm1507, %v1448
        %1527 = vst.msk [vmem:[#allocation4 + $0x98] sm:$0xff] %vm1507, %v1450
        %1528 = vst.msk [vmem:[#allocation4 + $0xa0] sm:$0xff] %vm1507, %v1452
        %1529 = vst.msk [vmem:[#allocation4 + $0xa8] sm:$0xff] %vm1507, %v1454
        %1530 = vst.msk [vmem:[#allocation4 + $0xb0] sm:$0xff] %vm1507, %v1456
        %1531 = vst.msk [vmem:[#allocation4 + $0xb8] sm:$0xff] %vm1507, %v1458
        %1532 = vst.msk [vmem:[#allocation4 + $0xc0] sm:$0xff] %vm1507, %v1460
        %1533 = vst.msk [vmem:[#allocation4 + $0xc8] sm:$0xff] %vm1507, %v1462
        %1534 = vst.msk [vmem:[#allocation4 + $0xd0] sm:$0xff] %vm1507, %v1464
        %1535 = vst.msk [vmem:[#allocation4 + $0xd8] sm:$0xff] %vm1507, %v1466
        %1536 = vst.msk [vmem:[#allocation4 + $0xe0] sm:$0xff] %vm1507, %v1468
        %1537 = vst.msk [vmem:[#allocation4 + $0xe8] sm:$0xff] %vm1507, %v1470
        %1538 = vst.msk [vmem:[#allocation4 + $0xf0] sm:$0xff] %vm1507, %v1472
        %1539 = vst.msk [vmem:[#allocation4 + $0xf8] sm:$0xff] %vm1507, %v1474
        %v1540 = vld [vmem:[%s445 + $0x2] sm:$0xff]
        %v1541 = vld [vmem:[%s445 + $0xa] sm:$0xff]
        %v1542 = vld [vmem:[%s445 + $0x1a] sm:$0xff]
        %v1543 = vld [vmem:[%s445 + $0x22] sm:$0xff]
        %v1544 = vld [vmem:[%s445 + $0x32] sm:$0xff]
        %v1545 = vld [vmem:[%s445 + $0x3a] sm:$0xff]
        %v1546 = vld [vmem:[%s445 + $0x4a] sm:$0xff]
        %v1547 = vld [vmem:[%s445 + $0x52] sm:$0xff]
        %v1548 = vld [vmem:[%s445 + $0x62] sm:$0xff]
        %v1549 = vld [vmem:[%s445 + $0x6a] sm:$0xff]
        %v1550 = vld [vmem:[%s445 + $0x7a] sm:$0xff]
        %v1551 = vld [vmem:[%s445 + $0x82] sm:$0xff]
        %v1552 = vld [vmem:[%s445 + $0x92] sm:$0xff]
        %v1553 = vld [vmem:[%s445 + $0x9a] sm:$0xff]
        %v1554 = vld [vmem:[%s445 + $0xaa] sm:$0xff]
        %v1555 = vld [vmem:[%s445 + $0xb2] sm:$0xff]
        %v1556 = vld [vmem:[%s445 + $0xc2] sm:$0xff]
        %v1557 = vld [vmem:[%s445 + $0xca] sm:$0xff]
        %v1558 = vld [vmem:[%s445 + $0xda] sm:$0xff]
        %v1559 = vld [vmem:[%s445 + $0xe2] sm:$0xff]
        %v1560 = vld [vmem:[%s445 + $0xf2] sm:$0xff]
        %v1561 = vld [vmem:[%s445 + $0xfa] sm:$0xff]
        %v1562 = vld [vmem:[%s445 + $0x10a] sm:$0xff]
        %v1563 = vld [vmem:[%s445 + $0x112] sm:$0xff]
        %v1564 = vld [vmem:[%s445 + $0x122] sm:$0xff]
        %v1565 = vld [vmem:[%s445 + $0x12a] sm:$0xff]
        %v1566 = vld [vmem:[%s445 + $0x13a] sm:$0xff]
        %v1567 = vld [vmem:[%s445 + $0x142] sm:$0xff]
        %v1568 = vld [vmem:[%s445 + $0x152] sm:$0xff]
        %v1569 = vld [vmem:[%s445 + $0x15a] sm:$0xff]
        %v1570 = vld [vmem:[%s445 + $0x16a] sm:$0xff]
        %v1571 = vld [vmem:[%s445 + $0x172] sm:$0xff]
        %1604 = vrot.lane.b32.xlu0 %v1540, 40
        %v1605 = vpop.permute.xlu0 %1604
        %1606 = vrot.lane.b32.xlu0 %v1541, 40
        %v1607 = vpop.permute.xlu0 %1606
        %1608 = vrot.lane.b32.xlu0 %v1542, 40
        %v1609 = vpop.permute.xlu0 %1608
        %1610 = vrot.lane.b32.xlu0 %v1543, 40
        %v1611 = vpop.permute.xlu0 %1610
        %1612 = vrot.lane.b32.xlu0 %v1544, 40
        %v1613 = vpop.permute.xlu0 %1612
        %1614 = vrot.lane.b32.xlu0 %v1545, 40
        %v1615 = vpop.permute.xlu0 %1614
        %1616 = vrot.lane.b32.xlu0 %v1546, 40
        %v1617 = vpop.permute.xlu0 %1616
        %1618 = vrot.lane.b32.xlu0 %v1547, 40
        %v1619 = vpop.permute.xlu0 %1618
        %1620 = vrot.lane.b32.xlu0 %v1548, 40
        %v1621 = vpop.permute.xlu0 %1620
        %1622 = vrot.lane.b32.xlu0 %v1549, 40
        %v1623 = vpop.permute.xlu0 %1622
        %1624 = vrot.lane.b32.xlu0 %v1550, 40
        %v1625 = vpop.permute.xlu0 %1624
        %1626 = vrot.lane.b32.xlu0 %v1551, 40
        %v1627 = vpop.permute.xlu0 %1626
        %1628 = vrot.lane.b32.xlu0 %v1552, 40
        %v1629 = vpop.permute.xlu0 %1628
        %1630 = vrot.lane.b32.xlu0 %v1553, 40
        %v1631 = vpop.permute.xlu0 %1630
        %1632 = vrot.lane.b32.xlu0 %v1554, 40
        %v1633 = vpop.permute.xlu0 %1632
        %1634 = vrot.lane.b32.xlu0 %v1555, 40
        %v1635 = vpop.permute.xlu0 %1634
        %1636 = vrot.lane.b32.xlu0 %v1556, 40
        %v1637 = vpop.permute.xlu0 %1636
        %1638 = vrot.lane.b32.xlu0 %v1557, 40
        %v1639 = vpop.permute.xlu0 %1638
        %1640 = vrot.lane.b32.xlu0 %v1558, 40
        %v1641 = vpop.permute.xlu0 %1640
        %1642 = vrot.lane.b32.xlu0 %v1559, 40
        %v1643 = vpop.permute.xlu0 %1642
        %1644 = vrot.lane.b32.xlu0 %v1560, 40
        %v1645 = vpop.permute.xlu0 %1644
        %1646 = vrot.lane.b32.xlu0 %v1561, 40
        %v1647 = vpop.permute.xlu0 %1646
        %1648 = vrot.lane.b32.xlu0 %v1562, 40
        %v1649 = vpop.permute.xlu0 %1648
        %1650 = vrot.lane.b32.xlu0 %v1563, 40
        %v1651 = vpop.permute.xlu0 %1650
        %1652 = vrot.lane.b32.xlu0 %v1564, 40
        %v1653 = vpop.permute.xlu0 %1652
        %1654 = vrot.lane.b32.xlu0 %v1565, 40
        %v1655 = vpop.permute.xlu0 %1654
        %1656 = vrot.lane.b32.xlu0 %v1566, 40
        %v1657 = vpop.permute.xlu0 %1656
        %1658 = vrot.lane.b32.xlu0 %v1567, 40
        %v1659 = vpop.permute.xlu0 %1658
        %1660 = vrot.lane.b32.xlu0 %v1568, 40
        %v1661 = vpop.permute.xlu0 %1660
        %1662 = vrot.lane.b32.xlu0 %v1569, 40
        %v1663 = vpop.permute.xlu0 %1662
        %1664 = vrot.lane.b32.xlu0 %v1570, 40
        %v1665 = vpop.permute.xlu0 %1664
        %1666 = vrot.lane.b32.xlu0 %v1571, 40
        %v1667 = vpop.permute.xlu0 %1666
        %vm1700 = vcmask 392512
        %1701 = vst.msk [vmem:[#allocation4] sm:$0xff] %vm1700, %v1605
        %1702 = vst.msk [vmem:[#allocation4 + $0x8] sm:$0xff] %vm1700, %v1607
        %1703 = vst.msk [vmem:[#allocation4 + $0x10] sm:$0xff] %vm1700, %v1609
        %1704 = vst.msk [vmem:[#allocation4 + $0x18] sm:$0xff] %vm1700, %v1611
        %1705 = vst.msk [vmem:[#allocation4 + $0x20] sm:$0xff] %vm1700, %v1613
        %1706 = vst.msk [vmem:[#allocation4 + $0x28] sm:$0xff] %vm1700, %v1615
        %1707 = vst.msk [vmem:[#allocation4 + $0x30] sm:$0xff] %vm1700, %v1617
        %1708 = vst.msk [vmem:[#allocation4 + $0x38] sm:$0xff] %vm1700, %v1619
        %1709 = vst.msk [vmem:[#allocation4 + $0x40] sm:$0xff] %vm1700, %v1621
        %1710 = vst.msk [vmem:[#allocation4 + $0x48] sm:$0xff] %vm1700, %v1623
        %1711 = vst.msk [vmem:[#allocation4 + $0x50] sm:$0xff] %vm1700, %v1625
        %1712 = vst.msk [vmem:[#allocation4 + $0x58] sm:$0xff] %vm1700, %v1627
        %1713 = vst.msk [vmem:[#allocation4 + $0x60] sm:$0xff] %vm1700, %v1629
        %1714 = vst.msk [vmem:[#allocation4 + $0x68] sm:$0xff] %vm1700, %v1631
        %1715 = vst.msk [vmem:[#allocation4 + $0x70] sm:$0xff] %vm1700, %v1633
        %1716 = vst.msk [vmem:[#allocation4 + $0x78] sm:$0xff] %vm1700, %v1635
        %1717 = vst.msk [vmem:[#allocation4 + $0x80] sm:$0xff] %vm1700, %v1637
        %1718 = vst.msk [vmem:[#allocation4 + $0x88] sm:$0xff] %vm1700, %v1639
        %1719 = vst.msk [vmem:[#allocation4 + $0x90] sm:$0xff] %vm1700, %v1641
        %1720 = vst.msk [vmem:[#allocation4 + $0x98] sm:$0xff] %vm1700, %v1643
        %1721 = vst.msk [vmem:[#allocation4 + $0xa0] sm:$0xff] %vm1700, %v1645
        %1722 = vst.msk [vmem:[#allocation4 + $0xa8] sm:$0xff] %vm1700, %v1647
        %1723 = vst.msk [vmem:[#allocation4 + $0xb0] sm:$0xff] %vm1700, %v1649
        %1724 = vst.msk [vmem:[#allocation4 + $0xb8] sm:$0xff] %vm1700, %v1651
        %1725 = vst.msk [vmem:[#allocation4 + $0xc0] sm:$0xff] %vm1700, %v1653
        %1726 = vst.msk [vmem:[#allocation4 + $0xc8] sm:$0xff] %vm1700, %v1655
        %1727 = vst.msk [vmem:[#allocation4 + $0xd0] sm:$0xff] %vm1700, %v1657
        %1728 = vst.msk [vmem:[#allocation4 + $0xd8] sm:$0xff] %vm1700, %v1659
        %1729 = vst.msk [vmem:[#allocation4 + $0xe0] sm:$0xff] %vm1700, %v1661
        %1730 = vst.msk [vmem:[#allocation4 + $0xe8] sm:$0xff] %vm1700, %v1663
        %1731 = vst.msk [vmem:[#allocation4 + $0xf0] sm:$0xff] %vm1700, %v1665
        %1732 = vst.msk [vmem:[#allocation4 + $0xf8] sm:$0xff] %vm1700, %v1667
        %s1733 = scalar_lea.vmem [#allocation2], 48
        %v1734 = vld [vmem:[%s1733] sm:$0xff]
        %v1735 = vld [vmem:[%s1733 + $0x8] sm:$0xff]
        %v1736 = vld [vmem:[%s1733 + $0x18] sm:$0xff]
        %v1737 = vld [vmem:[%s1733 + $0x20] sm:$0xff]
        %v1738 = vld [vmem:[%s1733 + $0x30] sm:$0xff]
        %v1739 = vld [vmem:[%s1733 + $0x38] sm:$0xff]
        %v1740 = vld [vmem:[%s1733 + $0x48] sm:$0xff]
        %v1741 = vld [vmem:[%s1733 + $0x50] sm:$0xff]
        %v1742 = vld [vmem:[%s1733 + $0x60] sm:$0xff]
        %v1743 = vld [vmem:[%s1733 + $0x68] sm:$0xff]
        %v1744 = vld [vmem:[%s1733 + $0x78] sm:$0xff]
        %v1745 = vld [vmem:[%s1733 + $0x80] sm:$0xff]
        %v1746 = vld [vmem:[%s1733 + $0x90] sm:$0xff]
        %v1747 = vld [vmem:[%s1733 + $0x98] sm:$0xff]
        %v1748 = vld [vmem:[%s1733 + $0xa8] sm:$0xff]
        %v1749 = vld [vmem:[%s1733 + $0xb0] sm:$0xff]
        %v1750 = vld [vmem:[%s1733 + $0xc0] sm:$0xff]
        %v1751 = vld [vmem:[%s1733 + $0xc8] sm:$0xff]
        %v1752 = vld [vmem:[%s1733 + $0xd8] sm:$0xff]
        %v1753 = vld [vmem:[%s1733 + $0xe0] sm:$0xff]
        %v1754 = vld [vmem:[%s1733 + $0xf0] sm:$0xff]
        %v1755 = vld [vmem:[%s1733 + $0xf8] sm:$0xff]
        %v1756 = vld [vmem:[%s1733 + $0x108] sm:$0xff]
        %v1757 = vld [vmem:[%s1733 + $0x110] sm:$0xff]
        %v1758 = vld [vmem:[%s1733 + $0x120] sm:$0xff]
        %v1759 = vld [vmem:[%s1733 + $0x128] sm:$0xff]
        %v1760 = vld [vmem:[%s1733 + $0x138] sm:$0xff]
        %v1761 = vld [vmem:[%s1733 + $0x140] sm:$0xff]
        %v1762 = vld [vmem:[%s1733 + $0x150] sm:$0xff]
        %v1763 = vld [vmem:[%s1733 + $0x158] sm:$0xff]
        %v1764 = vld [vmem:[%s1733 + $0x168] sm:$0xff]
        %v1765 = vld [vmem:[%s1733 + $0x170] sm:$0xff]
        %1798 = vrot.lane.b32.xlu0 %v1734, 48
        %v1799 = vpop.permute.xlu0 %1798
        %1800 = vrot.lane.b32.xlu0 %v1735, 48
        %v1801 = vpop.permute.xlu0 %1800
        %1802 = vrot.lane.b32.xlu0 %v1736, 48
        %v1803 = vpop.permute.xlu0 %1802
        %1804 = vrot.lane.b32.xlu0 %v1737, 48
        %v1805 = vpop.permute.xlu0 %1804
        %1806 = vrot.lane.b32.xlu0 %v1738, 48
        %v1807 = vpop.permute.xlu0 %1806
        %1808 = vrot.lane.b32.xlu0 %v1739, 48
        %v1809 = vpop.permute.xlu0 %1808
        %1810 = vrot.lane.b32.xlu0 %v1740, 48
        %v1811 = vpop.permute.xlu0 %1810
        %1812 = vrot.lane.b32.xlu0 %v1741, 48
        %v1813 = vpop.permute.xlu0 %1812
        %1814 = vrot.lane.b32.xlu0 %v1742, 48
        %v1815 = vpop.permute.xlu0 %1814
        %1816 = vrot.lane.b32.xlu0 %v1743, 48
        %v1817 = vpop.permute.xlu0 %1816
        %1818 = vrot.lane.b32.xlu0 %v1744, 48
        %v1819 = vpop.permute.xlu0 %1818
        %1820 = vrot.lane.b32.xlu0 %v1745, 48
        %v1821 = vpop.permute.xlu0 %1820
        %1822 = vrot.lane.b32.xlu0 %v1746, 48
        %v1823 = vpop.permute.xlu0 %1822
        %1824 = vrot.lane.b32.xlu0 %v1747, 48
        %v1825 = vpop.permute.xlu0 %1824
        %1826 = vrot.lane.b32.xlu0 %v1748, 48
        %v1827 = vpop.permute.xlu0 %1826
        %1828 = vrot.lane.b32.xlu0 %v1749, 48
        %v1829 = vpop.permute.xlu0 %1828
        %1830 = vrot.lane.b32.xlu0 %v1750, 48
        %v1831 = vpop.permute.xlu0 %1830
        %1832 = vrot.lane.b32.xlu0 %v1751, 48
        %v1833 = vpop.permute.xlu0 %1832
        %1834 = vrot.lane.b32.xlu0 %v1752, 48
        %v1835 = vpop.permute.xlu0 %1834
        %1836 = vrot.lane.b32.xlu0 %v1753, 48
        %v1837 = vpop.permute.xlu0 %1836
        %1838 = vrot.lane.b32.xlu0 %v1754, 48
        %v1839 = vpop.permute.xlu0 %1838
        %1840 = vrot.lane.b32.xlu0 %v1755, 48
        %v1841 = vpop.permute.xlu0 %1840
        %1842 = vrot.lane.b32.xlu0 %v1756, 48
        %v1843 = vpop.permute.xlu0 %1842
        %1844 = vrot.lane.b32.xlu0 %v1757, 48
        %v1845 = vpop.permute.xlu0 %1844
        %1846 = vrot.lane.b32.xlu0 %v1758, 48
        %v1847 = vpop.permute.xlu0 %1846
        %1848 = vrot.lane.b32.xlu0 %v1759, 48
        %v1849 = vpop.permute.xlu0 %1848
        %1850 = vrot.lane.b32.xlu0 %v1760, 48
        %v1851 = vpop.permute.xlu0 %1850
        %1852 = vrot.lane.b32.xlu0 %v1761, 48
        %v1853 = vpop.permute.xlu0 %1852
        %1854 = vrot.lane.b32.xlu0 %v1762, 48
        %v1855 = vpop.permute.xlu0 %1854
        %1856 = vrot.lane.b32.xlu0 %v1763, 48
        %v1857 = vpop.permute.xlu0 %1856
        %1858 = vrot.lane.b32.xlu0 %v1764, 48
        %v1859 = vpop.permute.xlu0 %1858
        %1860 = vrot.lane.b32.xlu0 %v1765, 48
        %v1861 = vpop.permute.xlu0 %1860
        %vm1894 = vcmask 458112
        %1895 = vst.msk [vmem:[#allocation4] sm:$0xff] %vm1894, %v1799
        %1896 = vst.msk [vmem:[#allocation4 + $0x8] sm:$0xff] %vm1894, %v1801
        %1897 = vst.msk [vmem:[#allocation4 + $0x10] sm:$0xff] %vm1894, %v1803
        %1898 = vst.msk [vmem:[#allocation4 + $0x18] sm:$0xff] %vm1894, %v1805
        %1899 = vst.msk [vmem:[#allocation4 + $0x20] sm:$0xff] %vm1894, %v1807
        %1900 = vst.msk [vmem:[#allocation4 + $0x28] sm:$0xff] %vm1894, %v1809
        %1901 = vst.msk [vmem:[#allocation4 + $0x30] sm:$0xff] %vm1894, %v1811
        %1902 = vst.msk [vmem:[#allocation4 + $0x38] sm:$0xff] %vm1894, %v1813
        %1903 = vst.msk [vmem:[#allocation4 + $0x40] sm:$0xff] %vm1894, %v1815
        %1904 = vst.msk [vmem:[#allocation4 + $0x48] sm:$0xff] %vm1894, %v1817
        %1905 = vst.msk [vmem:[#allocation4 + $0x50] sm:$0xff] %vm1894, %v1819
        %1906 = vst.msk [vmem:[#allocation4 + $0x58] sm:$0xff] %vm1894, %v1821
        %1907 = vst.msk [vmem:[#allocation4 + $0x60] sm:$0xff] %vm1894, %v1823
        %1908 = vst.msk [vmem:[#allocation4 + $0x68] sm:$0xff] %vm1894, %v1825
        %1909 = vst.msk [vmem:[#allocation4 + $0x70] sm:$0xff] %vm1894, %v1827
        %1910 = vst.msk [vmem:[#allocation4 + $0x78] sm:$0xff] %vm1894, %v1829
        %1911 = vst.msk [vmem:[#allocation4 + $0x80] sm:$0xff] %vm1894, %v1831
        %1912 = vst.msk [vmem:[#allocation4 + $0x88] sm:$0xff] %vm1894, %v1833
        %1913 = vst.msk [vmem:[#allocation4 + $0x90] sm:$0xff] %vm1894, %v1835
        %1914 = vst.msk [vmem:[#allocation4 + $0x98] sm:$0xff] %vm1894, %v1837
        %1915 = vst.msk [vmem:[#allocation4 + $0xa0] sm:$0xff] %vm1894, %v1839
        %1916 = vst.msk [vmem:[#allocation4 + $0xa8] sm:$0xff] %vm1894, %v1841
        %1917 = vst.msk [vmem:[#allocation4 + $0xb0] sm:$0xff] %vm1894, %v1843
        %1918 = vst.msk [vmem:[#allocation4 + $0xb8] sm:$0xff] %vm1894, %v1845
        %1919 = vst.msk [vmem:[#allocation4 + $0xc0] sm:$0xff] %vm1894, %v1847
        %1920 = vst.msk [vmem:[#allocation4 + $0xc8] sm:$0xff] %vm1894, %v1849
        %1921 = vst.msk [vmem:[#allocation4 + $0xd0] sm:$0xff] %vm1894, %v1851
        %1922 = vst.msk [vmem:[#allocation4 + $0xd8] sm:$0xff] %vm1894, %v1853
        %1923 = vst.msk [vmem:[#allocation4 + $0xe0] sm:$0xff] %vm1894, %v1855
        %1924 = vst.msk [vmem:[#allocation4 + $0xe8] sm:$0xff] %vm1894, %v1857
        %1925 = vst.msk [vmem:[#allocation4 + $0xf0] sm:$0xff] %vm1894, %v1859
        %1926 = vst.msk [vmem:[#allocation4 + $0xf8] sm:$0xff] %vm1894, %v1861
        %v1927 = vld [vmem:[%s1733 + $0x1] sm:$0xff]
        %v1928 = vld [vmem:[%s1733 + $0x9] sm:$0xff]
        %v1929 = vld [vmem:[%s1733 + $0x19] sm:$0xff]
        %v1930 = vld [vmem:[%s1733 + $0x21] sm:$0xff]
        %v1931 = vld [vmem:[%s1733 + $0x31] sm:$0xff]
        %v1932 = vld [vmem:[%s1733 + $0x39] sm:$0xff]
        %v1933 = vld [vmem:[%s1733 + $0x49] sm:$0xff]
        %v1934 = vld [vmem:[%s1733 + $0x51] sm:$0xff]
        %v1935 = vld [vmem:[%s1733 + $0x61] sm:$0xff]
        %v1936 = vld [vmem:[%s1733 + $0x69] sm:$0xff]
        %v1937 = vld [vmem:[%s1733 + $0x79] sm:$0xff]
        %v1938 = vld [vmem:[%s1733 + $0x81] sm:$0xff]
        %v1939 = vld [vmem:[%s1733 + $0x91] sm:$0xff]
        %v1940 = vld [vmem:[%s1733 + $0x99] sm:$0xff]
        %v1941 = vld [vmem:[%s1733 + $0xa9] sm:$0xff]
        %v1942 = vld [vmem:[%s1733 + $0xb1] sm:$0xff]
        %v1943 = vld [vmem:[%s1733 + $0xc1] sm:$0xff]
        %v1944 = vld [vmem:[%s1733 + $0xc9] sm:$0xff]
        %v1945 = vld [vmem:[%s1733 + $0xd9] sm:$0xff]
        %v1946 = vld [vmem:[%s1733 + $0xe1] sm:$0xff]
        %v1947 = vld [vmem:[%s1733 + $0xf1] sm:$0xff]
        %v1948 = vld [vmem:[%s1733 + $0xf9] sm:$0xff]
        %v1949 = vld [vmem:[%s1733 + $0x109] sm:$0xff]
        %v1950 = vld [vmem:[%s1733 + $0x111] sm:$0xff]
        %v1951 = vld [vmem:[%s1733 + $0x121] sm:$0xff]
        %v1952 = vld [vmem:[%s1733 + $0x129] sm:$0xff]
        %v1953 = vld [vmem:[%s1733 + $0x139] sm:$0xff]
        %v1954 = vld [vmem:[%s1733 + $0x141] sm:$0xff]
        %v1955 = vld [vmem:[%s1733 + $0x151] sm:$0xff]
        %v1956 = vld [vmem:[%s1733 + $0x159] sm:$0xff]
        %v1957 = vld [vmem:[%s1733 + $0x169] sm:$0xff]
        %v1958 = vld [vmem:[%s1733 + $0x171] sm:$0xff]
        %1991 = vrot.lane.b32.xlu0 %v1927, 56
        %v1992 = vpop.permute.xlu0 %1991
        %1993 = vrot.lane.b32.xlu0 %v1928, 56
        %v1994 = vpop.permute.xlu0 %1993
        %1995 = vrot.lane.b32.xlu0 %v1929, 56
        %v1996 = vpop.permute.xlu0 %1995
        %1997 = vrot.lane.b32.xlu0 %v1930, 56
        %v1998 = vpop.permute.xlu0 %1997
        %1999 = vrot.lane.b32.xlu0 %v1931, 56
        %v2000 = vpop.permute.xlu0 %1999
        %2001 = vrot.lane.b32.xlu0 %v1932, 56
        %v2002 = vpop.permute.xlu0 %2001
        %2003 = vrot.lane.b32.xlu0 %v1933, 56
        %v2004 = vpop.permute.xlu0 %2003
        %2005 = vrot.lane.b32.xlu0 %v1934, 56
        %v2006 = vpop.permute.xlu0 %2005
        %2007 = vrot.lane.b32.xlu0 %v1935, 56
        %v2008 = vpop.permute.xlu0 %2007
        %2009 = vrot.lane.b32.xlu0 %v1936, 56
        %v2010 = vpop.permute.xlu0 %2009
        %2011 = vrot.lane.b32.xlu0 %v1937, 56
        %v2012 = vpop.permute.xlu0 %2011
        %2013 = vrot.lane.b32.xlu0 %v1938, 56
        %v2014 = vpop.permute.xlu0 %2013
        %2015 = vrot.lane.b32.xlu0 %v1939, 56
        %v2016 = vpop.permute.xlu0 %2015
        %2017 = vrot.lane.b32.xlu0 %v1940, 56
        %v2018 = vpop.permute.xlu0 %2017
        %2019 = vrot.lane.b32.xlu0 %v1941, 56
        %v2020 = vpop.permute.xlu0 %2019
        %2021 = vrot.lane.b32.xlu0 %v1942, 56
        %v2022 = vpop.permute.xlu0 %2021
        %2023 = vrot.lane.b32.xlu0 %v1943, 56
        %v2024 = vpop.permute.xlu0 %2023
        %2025 = vrot.lane.b32.xlu0 %v1944, 56
        %v2026 = vpop.permute.xlu0 %2025
        %2027 = vrot.lane.b32.xlu0 %v1945, 56
        %v2028 = vpop.permute.xlu0 %2027
        %2029 = vrot.lane.b32.xlu0 %v1946, 56
        %v2030 = vpop.permute.xlu0 %2029
        %2031 = vrot.lane.b32.xlu0 %v1947, 56
        %v2032 = vpop.permute.xlu0 %2031
        %2033 = vrot.lane.b32.xlu0 %v1948, 56
        %v2034 = vpop.permute.xlu0 %2033
        %2035 = vrot.lane.b32.xlu0 %v1949, 56
        %v2036 = vpop.permute.xlu0 %2035
        %2037 = vrot.lane.b32.xlu0 %v1950, 56
        %v2038 = vpop.permute.xlu0 %2037
        %2039 = vrot.lane.b32.xlu0 %v1951, 56
        %v2040 = vpop.permute.xlu0 %2039
        %2041 = vrot.lane.b32.xlu0 %v1952, 56
        %v2042 = vpop.permute.xlu0 %2041
        %2043 = vrot.lane.b32.xlu0 %v1953, 56
        %v2044 = vpop.permute.xlu0 %2043
        %2045 = vrot.lane.b32.xlu0 %v1954, 56
        %v2046 = vpop.permute.xlu0 %2045
        %2047 = vrot.lane.b32.xlu0 %v1955, 56
        %v2048 = vpop.permute.xlu0 %2047
        %2049 = vrot.lane.b32.xlu0 %v1956, 56
        %v2050 = vpop.permute.xlu0 %2049
        %2051 = vrot.lane.b32.xlu0 %v1957, 56
        %v2052 = vpop.permute.xlu0 %2051
        %2053 = vrot.lane.b32.xlu0 %v1958, 56
        %v2054 = vpop.permute.xlu0 %2053
        %vm2087 = vcmask 523712
        %2088 = vst.msk [vmem:[#allocation4] sm:$0xff] %vm2087, %v1992
        %2089 = vst.msk [vmem:[#allocation4 + $0x8] sm:$0xff] %vm2087, %v1994
        %2090 = vst.msk [vmem:[#allocation4 + $0x10] sm:$0xff] %vm2087, %v1996
        %2091 = vst.msk [vmem:[#allocation4 + $0x18] sm:$0xff] %vm2087, %v1998
        %2092 = vst.msk [vmem:[#allocation4 + $0x20] sm:$0xff] %vm2087, %v2000
        %2093 = vst.msk [vmem:[#allocation4 + $0x28] sm:$0xff] %vm2087, %v2002
        %2094 = vst.msk [vmem:[#allocation4 + $0x30] sm:$0xff] %vm2087, %v2004
        %2095 = vst.msk [vmem:[#allocation4 + $0x38] sm:$0xff] %vm2087, %v2006
        %2096 = vst.msk [vmem:[#allocation4 + $0x40] sm:$0xff] %vm2087, %v2008
        %2097 = vst.msk [vmem:[#allocation4 + $0x48] sm:$0xff] %vm2087, %v2010
        %2098 = vst.msk [vmem:[#allocation4 + $0x50] sm:$0xff] %vm2087, %v2012
        %2099 = vst.msk [vmem:[#allocation4 + $0x58] sm:$0xff] %vm2087, %v2014
        %2100 = vst.msk [vmem:[#allocation4 + $0x60] sm:$0xff] %vm2087, %v2016
        %2101 = vst.msk [vmem:[#allocation4 + $0x68] sm:$0xff] %vm2087, %v2018
        %2102 = vst.msk [vmem:[#allocation4 + $0x70] sm:$0xff] %vm2087, %v2020
        %2103 = vst.msk [vmem:[#allocation4 + $0x78] sm:$0xff] %vm2087, %v2022
        %2104 = vst.msk [vmem:[#allocation4 + $0x80] sm:$0xff] %vm2087, %v2024
        %2105 = vst.msk [vmem:[#allocation4 + $0x88] sm:$0xff] %vm2087, %v2026
        %2106 = vst.msk [vmem:[#allocation4 + $0x90] sm:$0xff] %vm2087, %v2028
        %2107 = vst.msk [vmem:[#allocation4 + $0x98] sm:$0xff] %vm2087, %v2030
        %2108 = vst.msk [vmem:[#allocation4 + $0xa0] sm:$0xff] %vm2087, %v2032
        %2109 = vst.msk [vmem:[#allocation4 + $0xa8] sm:$0xff] %vm2087, %v2034
        %2110 = vst.msk [vmem:[#allocation4 + $0xb0] sm:$0xff] %vm2087, %v2036
        %2111 = vst.msk [vmem:[#allocation4 + $0xb8] sm:$0xff] %vm2087, %v2038
        %2112 = vst.msk [vmem:[#allocation4 + $0xc0] sm:$0xff] %vm2087, %v2040
        %2113 = vst.msk [vmem:[#allocation4 + $0xc8] sm:$0xff] %vm2087, %v2042
        %2114 = vst.msk [vmem:[#allocation4 + $0xd0] sm:$0xff] %vm2087, %v2044
        %2115 = vst.msk [vmem:[#allocation4 + $0xd8] sm:$0xff] %vm2087, %v2046
        %2116 = vst.msk [vmem:[#allocation4 + $0xe0] sm:$0xff] %vm2087, %v2048
        %2117 = vst.msk [vmem:[#allocation4 + $0xe8] sm:$0xff] %vm2087, %v2050
        %2118 = vst.msk [vmem:[#allocation4 + $0xf0] sm:$0xff] %vm2087, %v2052
        %2119 = vst.msk [vmem:[#allocation4 + $0xf8] sm:$0xff] %vm2087, %v2054
        %v2120 = vld [vmem:[%s1733 + $0x2] sm:$0xff]
        %v2121 = vld [vmem:[%s1733 + $0xa] sm:$0xff]
        %v2122 = vld [vmem:[%s1733 + $0x1a] sm:$0xff]
        %v2123 = vld [vmem:[%s1733 + $0x22] sm:$0xff]
        %v2124 = vld [vmem:[%s1733 + $0x32] sm:$0xff]
        %v2125 = vld [vmem:[%s1733 + $0x3a] sm:$0xff]
        %v2126 = vld [vmem:[%s1733 + $0x4a] sm:$0xff]
        %v2127 = vld [vmem:[%s1733 + $0x52] sm:$0xff]
        %v2128 = vld [vmem:[%s1733 + $0x62] sm:$0xff]
        %v2129 = vld [vmem:[%s1733 + $0x6a] sm:$0xff]
        %v2130 = vld [vmem:[%s1733 + $0x7a] sm:$0xff]
        %v2131 = vld [vmem:[%s1733 + $0x82] sm:$0xff]
        %v2132 = vld [vmem:[%s1733 + $0x92] sm:$0xff]
        %v2133 = vld [vmem:[%s1733 + $0x9a] sm:$0xff]
        %v2134 = vld [vmem:[%s1733 + $0xaa] sm:$0xff]
        %v2135 = vld [vmem:[%s1733 + $0xb2] sm:$0xff]
        %v2136 = vld [vmem:[%s1733 + $0xc2] sm:$0xff]
        %v2137 = vld [vmem:[%s1733 + $0xca] sm:$0xff]
        %v2138 = vld [vmem:[%s1733 + $0xda] sm:$0xff]
        %v2139 = vld [vmem:[%s1733 + $0xe2] sm:$0xff]
        %v2140 = vld [vmem:[%s1733 + $0xf2] sm:$0xff]
        %v2141 = vld [vmem:[%s1733 + $0xfa] sm:$0xff]
        %v2142 = vld [vmem:[%s1733 + $0x10a] sm:$0xff]
        %v2143 = vld [vmem:[%s1733 + $0x112] sm:$0xff]
        %v2144 = vld [vmem:[%s1733 + $0x122] sm:$0xff]
        %v2145 = vld [vmem:[%s1733 + $0x12a] sm:$0xff]
        %v2146 = vld [vmem:[%s1733 + $0x13a] sm:$0xff]
        %v2147 = vld [vmem:[%s1733 + $0x142] sm:$0xff]
        %v2148 = vld [vmem:[%s1733 + $0x152] sm:$0xff]
        %v2149 = vld [vmem:[%s1733 + $0x15a] sm:$0xff]
        %v2150 = vld [vmem:[%s1733 + $0x16a] sm:$0xff]
        %v2151 = vld [vmem:[%s1733 + $0x172] sm:$0xff]
        %2184 = vrot.lane.b32.xlu0 %v2120, 64
        %v2185 = vpop.permute.xlu0 %2184
        %2186 = vrot.lane.b32.xlu0 %v2121, 64
        %v2187 = vpop.permute.xlu0 %2186
        %2188 = vrot.lane.b32.xlu0 %v2122, 64
        %v2189 = vpop.permute.xlu0 %2188
        %2190 = vrot.lane.b32.xlu0 %v2123, 64
        %v2191 = vpop.permute.xlu0 %2190
        %2192 = vrot.lane.b32.xlu0 %v2124, 64
        %v2193 = vpop.permute.xlu0 %2192
        %2194 = vrot.lane.b32.xlu0 %v2125, 64
        %v2195 = vpop.permute.xlu0 %2194
        %2196 = vrot.lane.b32.xlu0 %v2126, 64
        %v2197 = vpop.permute.xlu0 %2196
        %2198 = vrot.lane.b32.xlu0 %v2127, 64
        %v2199 = vpop.permute.xlu0 %2198
        %2200 = vrot.lane.b32.xlu0 %v2128, 64
        %v2201 = vpop.permute.xlu0 %2200
        %2202 = vrot.lane.b32.xlu0 %v2129, 64
        %v2203 = vpop.permute.xlu0 %2202
        %2204 = vrot.lane.b32.xlu0 %v2130, 64
        %v2205 = vpop.permute.xlu0 %2204
        %2206 = vrot.lane.b32.xlu0 %v2131, 64
        %v2207 = vpop.permute.xlu0 %2206
        %2208 = vrot.lane.b32.xlu0 %v2132, 64
        %v2209 = vpop.permute.xlu0 %2208
        %2210 = vrot.lane.b32.xlu0 %v2133, 64
        %v2211 = vpop.permute.xlu0 %2210
        %2212 = vrot.lane.b32.xlu0 %v2134, 64
        %v2213 = vpop.permute.xlu0 %2212
        %2214 = vrot.lane.b32.xlu0 %v2135, 64
        %v2215 = vpop.permute.xlu0 %2214
        %2216 = vrot.lane.b32.xlu0 %v2136, 64
        %v2217 = vpop.permute.xlu0 %2216
        %2218 = vrot.lane.b32.xlu0 %v2137, 64
        %v2219 = vpop.permute.xlu0 %2218
        %2220 = vrot.lane.b32.xlu0 %v2138, 64
        %v2221 = vpop.permute.xlu0 %2220
        %2222 = vrot.lane.b32.xlu0 %v2139, 64
        %v2223 = vpop.permute.xlu0 %2222
        %2224 = vrot.lane.b32.xlu0 %v2140, 64
        %v2225 = vpop.permute.xlu0 %2224
        %2226 = vrot.lane.b32.xlu0 %v2141, 64
        %v2227 = vpop.permute.xlu0 %2226
        %2228 = vrot.lane.b32.xlu0 %v2142, 64
        %v2229 = vpop.permute.xlu0 %2228
        %2230 = vrot.lane.b32.xlu0 %v2143, 64
        %v2231 = vpop.permute.xlu0 %2230
        %2232 = vrot.lane.b32.xlu0 %v2144, 64
        %v2233 = vpop.permute.xlu0 %2232
        %2234 = vrot.lane.b32.xlu0 %v2145, 64
        %v2235 = vpop.permute.xlu0 %2234
        %2236 = vrot.lane.b32.xlu0 %v2146, 64
        %v2237 = vpop.permute.xlu0 %2236
        %2238 = vrot.lane.b32.xlu0 %v2147, 64
        %v2239 = vpop.permute.xlu0 %2238
        %2240 = vrot.lane.b32.xlu0 %v2148, 64
        %v2241 = vpop.permute.xlu0 %2240
        %2242 = vrot.lane.b32.xlu0 %v2149, 64
        %v2243 = vpop.permute.xlu0 %2242
        %2244 = vrot.lane.b32.xlu0 %v2150, 64
        %v2245 = vpop.permute.xlu0 %2244
        %2246 = vrot.lane.b32.xlu0 %v2151, 64
        %v2247 = vpop.permute.xlu0 %2246
        %vm2280 = vcmask 589312
        %2281 = vst.msk [vmem:[#allocation4] sm:$0xff] %vm2280, %v2185
        %2282 = vst.msk [vmem:[#allocation4 + $0x8] sm:$0xff] %vm2280, %v2187
        %2283 = vst.msk [vmem:[#allocation4 + $0x10] sm:$0xff] %vm2280, %v2189
        %2284 = vst.msk [vmem:[#allocation4 + $0x18] sm:$0xff] %vm2280, %v2191
        %2285 = vst.msk [vmem:[#allocation4 + $0x20] sm:$0xff] %vm2280, %v2193
        %2286 = vst.msk [vmem:[#allocation4 + $0x28] sm:$0xff] %vm2280, %v2195
        %2287 = vst.msk [vmem:[#allocation4 + $0x30] sm:$0xff] %vm2280, %v2197
        %2288 = vst.msk [vmem:[#allocation4 + $0x38] sm:$0xff] %vm2280, %v2199
        %2289 = vst.msk [vmem:[#allocation4 + $0x40] sm:$0xff] %vm2280, %v2201
        %2290 = vst.msk [vmem:[#allocation4 + $0x48] sm:$0xff] %vm2280, %v2203
        %2291 = vst.msk [vmem:[#allocation4 + $0x50] sm:$0xff] %vm2280, %v2205
        %2292 = vst.msk [vmem:[#allocation4 + $0x58] sm:$0xff] %vm2280, %v2207
        %2293 = vst.msk [vmem:[#allocation4 + $0x60] sm:$0xff] %vm2280, %v2209
        %2294 = vst.msk [vmem:[#allocation4 + $0x68] sm:$0xff] %vm2280, %v2211
        %2295 = vst.msk [vmem:[#allocation4 + $0x70] sm:$0xff] %vm2280, %v2213
        %2296 = vst.msk [vmem:[#allocation4 + $0x78] sm:$0xff] %vm2280, %v2215
        %2297 = vst.msk [vmem:[#allocation4 + $0x80] sm:$0xff] %vm2280, %v2217
        %2298 = vst.msk [vmem:[#allocation4 + $0x88] sm:$0xff] %vm2280, %v2219
        %2299 = vst.msk [vmem:[#allocation4 + $0x90] sm:$0xff] %vm2280, %v2221
        %2300 = vst.msk [vmem:[#allocation4 + $0x98] sm:$0xff] %vm2280, %v2223
        %2301 = vst.msk [vmem:[#allocation4 + $0xa0] sm:$0xff] %vm2280, %v2225
        %2302 = vst.msk [vmem:[#allocation4 + $0xa8] sm:$0xff] %vm2280, %v2227
        %2303 = vst.msk [vmem:[#allocation4 + $0xb0] sm:$0xff] %vm2280, %v2229
        %2304 = vst.msk [vmem:[#allocation4 + $0xb8] sm:$0xff] %vm2280, %v2231
        %2305 = vst.msk [vmem:[#allocation4 + $0xc0] sm:$0xff] %vm2280, %v2233
        %2306 = vst.msk [vmem:[#allocation4 + $0xc8] sm:$0xff] %vm2280, %v2235
        %2307 = vst.msk [vmem:[#allocation4 + $0xd0] sm:$0xff] %vm2280, %v2237
        %2308 = vst.msk [vmem:[#allocation4 + $0xd8] sm:$0xff] %vm2280, %v2239
        %2309 = vst.msk [vmem:[#allocation4 + $0xe0] sm:$0xff] %vm2280, %v2241
        %2310 = vst.msk [vmem:[#allocation4 + $0xe8] sm:$0xff] %vm2280, %v2243
        %2311 = vst.msk [vmem:[#allocation4 + $0xf0] sm:$0xff] %vm2280, %v2245
        %2312 = vst.msk [vmem:[#allocation4 + $0xf8] sm:$0xff] %vm2280, %v2247
        %v2313 = vld [vmem:[#allocation4] sm:$0xff]
        %v2314 = vld [vmem:[#allocation4 + $0x8] sm:$0xff]
        %v2315 = vld [vmem:[#allocation4 + $0x10] sm:$0xff]
        %v2316 = vld [vmem:[#allocation4 + $0x18] sm:$0xff]
        %v2317 = vld [vmem:[#allocation4 + $0x20] sm:$0xff]
        %v2318 = vld [vmem:[#allocation4 + $0x28] sm:$0xff]
        %v2319 = vld [vmem:[#allocation4 + $0x30] sm:$0xff]
        %v2320 = vld [vmem:[#allocation4 + $0x38] sm:$0xff]
        %v2321 = vld [vmem:[#allocation4 + $0x40] sm:$0xff]
        %v2322 = vld [vmem:[#allocation4 + $0x48] sm:$0xff]
        %v2323 = vld [vmem:[#allocation4 + $0x50] sm:$0xff]
        %v2324 = vld [vmem:[#allocation4 + $0x58] sm:$0xff]
        %v2325 = vld [vmem:[#allocation4 + $0x60] sm:$0xff]
        %v2326 = vld [vmem:[#allocation4 + $0x68] sm:$0xff]
        %v2327 = vld [vmem:[#allocation4 + $0x70] sm:$0xff]
        %v2328 = vld [vmem:[#allocation4 + $0x78] sm:$0xff]
        %v2329 = vld [vmem:[#allocation4 + $0x80] sm:$0xff]
        %v2330 = vld [vmem:[#allocation4 + $0x88] sm:$0xff]
        %v2331 = vld [vmem:[#allocation4 + $0x90] sm:$0xff]
        %v2332 = vld [vmem:[#allocation4 + $0x98] sm:$0xff]
        %v2333 = vld [vmem:[#allocation4 + $0xa0] sm:$0xff]
        %v2334 = vld [vmem:[#allocation4 + $0xa8] sm:$0xff]
        %v2335 = vld [vmem:[#allocation4 + $0xb0] sm:$0xff]
        %v2336 = vld [vmem:[#allocation4 + $0xb8] sm:$0xff]
        %v2337 = vld [vmem:[#allocation4 + $0xc0] sm:$0xff]
        %v2338 = vld [vmem:[#allocation4 + $0xc8] sm:$0xff]
        %v2339 = vld [vmem:[#allocation4 + $0xd0] sm:$0xff]
        %v2340 = vld [vmem:[#allocation4 + $0xd8] sm:$0xff]
        %v2341 = vld [vmem:[#allocation4 + $0xe0] sm:$0xff]
        %v2342 = vld [vmem:[#allocation4 + $0xe8] sm:$0xff]
        %v2343 = vld [vmem:[#allocation4 + $0xf0] sm:$0xff]
        %v2344 = vld [vmem:[#allocation4 + $0xf8] sm:$0xff]
        %v2345 = vpack.c.bf16 %v2314, %v2313
        %v2346 = vpack.c.bf16 %v2316, %v2315
        %v2347 = vpack.c.bf16 %v2318, %v2317
        %v2348 = vpack.c.bf16 %v2320, %v2319
        %v2349 = vpack.c.bf16 %v2322, %v2321
        %v2350 = vpack.c.bf16 %v2324, %v2323
        %v2351 = vpack.c.bf16 %v2326, %v2325
        %v2352 = vpack.c.bf16 %v2328, %v2327
        %v2353 = vpack.c.bf16 %v2330, %v2329
        %v2354 = vpack.c.bf16 %v2332, %v2331
        %v2355 = vpack.c.bf16 %v2334, %v2333
        %v2356 = vpack.c.bf16 %v2336, %v2335
        %v2357 = vpack.c.bf16 %v2338, %v2337
        %v2358 = vpack.c.bf16 %v2340, %v2339
        %v2359 = vpack.c.bf16 %v2342, %v2341
        %v2360 = vpack.c.bf16 %v2344, %v2343
        %v2361 = vld [vmem:[%s2] sm:$0xf]
        %v2362 = vld [vmem:[%s2 + $0x4] sm:$0xf]
        %v2363 = vld [vmem:[%s2 + $0x8] sm:$0xf]
        %v2364 = vld [vmem:[%s2 + $0xc] sm:$0xf]
        %v2365 = vld [vmem:[%s2 + $0x10] sm:$0xf]
        %v2366 = vld [vmem:[%s2 + $0x14] sm:$0xf]
        %v2367 = vld [vmem:[%s2 + $0x18] sm:$0xf]
        %v2368 = vld [vmem:[%s2 + $0x1c] sm:$0xf]
        %v2369 = vld [vmem:[%s2 + $0x20] sm:$0xf]
        %v2379 = vunpack.c.l.b16 %v2361
        %v2380 = vunpack.c.l.b16 %v2362
        %v2381 = vunpack.c.l.b16 %v2363
        %v2382 = vunpack.c.l.b16 %v2364
        %v2383 = vunpack.c.l.b16 %v2365
        %v2384 = vunpack.c.l.b16 %v2366
        %v2385 = vunpack.c.l.b16 %v2367
        %v2386 = vunpack.c.l.b16 %v2368
        %v2387 = vunpack.c.l.b16 %v2369
        %v2388 = vpack.c.b16 %v2380, %v2379
        %v2389 = vpack.c.b16 %v2382, %v2381
        %v2390 = vpack.c.b16 %v2384, %v2383
        %v2391 = vpack.c.b16 %v2386, %v2385
        %v2392 = vpack.c.b16 %v2387, %v2387
        %vm2397 = vcmask 588800
        %v2399 = vsel %vm2397, %v2345, 0
        %v2402 = vsel %vm2397, %v2346, 0
        %v2405 = vsel %vm2397, %v2347, 0
        %v2408 = vsel %vm2397, %v2348, 0
        %v2411 = vsel %vm2397, %v2349, 0
        %v2414 = vsel %vm2397, %v2350, 0
        %v2417 = vsel %vm2397, %v2351, 0
        %v2420 = vsel %vm2397, %v2352, 0
        %v2423 = vsel %vm2397, %v2353, 0
        %v2426 = vsel %vm2397, %v2354, 0
        %v2429 = vsel %vm2397, %v2355, 0
        %v2432 = vsel %vm2397, %v2356, 0
        %v2435 = vsel %vm2397, %v2357, 0
        %v2438 = vsel %vm2397, %v2358, 0
        %v2441 = vsel %vm2397, %v2359, 0
        %v2444 = vsel %vm2397, %v2360, 0
        %vm2446 = vcmask 1043456
        %v2448 = vsel %vm2446, %v2392, 0
        %2450 = vmatprep.subr.bf16.mxu0 0
        %2451 = vmatpush1.bf16.msra.mxu0 0
        %2452 = vmatprep.subr.bf16.mxu0 0
        %2453 = vmatpush1.bf16.msra.mxu0 0
        %2454 = vmatprep.subr.bf16.mxu0 0
        %2455 = vmatpush1.bf16.msra.mxu0 0
        %2456 = vmatprep.subr.bf16.mxu0 0
        %2457 = vmatpush1.bf16.msra.mxu0 %v2448
        %2458 = vmatprep.subr.bf16.mxu0 0
        %2459 = vmatpush1.bf16.msra.mxu0 %v2391
        %2460 = vmatprep.subr.bf16.mxu0 0
        %2461 = vmatpush1.bf16.msra.mxu0 %v2390
        %2462 = vmatprep.subr.bf16.mxu0 0
        %2463 = vmatpush1.bf16.msra.mxu0 %v2389
        %2464 = vmatprep.subr.bf16.mxu0 0
        %2465 = vmatpush1.bf16.msra.mxu0 %v2388
        %2466 = vmatprep.subr.bf16.mxu0 0
        %2467 = vmatpush2.bf16.msra.mxu0 0
        %2468 = vmatprep.subr.bf16.mxu0 0
        %2469 = vmatpush2.bf16.msra.mxu0 0
        %2470 = vmatprep.subr.bf16.mxu0 0
        %2471 = vmatpush2.bf16.msra.mxu0 0
        %2472 = vmatprep.subr.bf16.mxu0 0
        %2473 = vmatpush2.bf16.msra.mxu0 0
        %2474 = vmatprep.subr.bf16.mxu0 0
        %2475 = vmatpush2.bf16.msra.mxu0 0
        %2476 = vmatprep.subr.bf16.mxu0 0
        %2477 = vmatpush2.bf16.msra.mxu0 0
        %2478 = vmatprep.subr.bf16.mxu0 0
        %2479 = vmatpush2.bf16.msra.mxu0 0
        %2480 = vmatprep.subr.bf16.mxu0 0
        %2481 = vmatpush2.bf16.msra.mxu0 0
        %2482 = vmatprep.mubr.bf16.mxu0 0
        %2483 = vmatmul.mubr.bf16.gmra.mxu0 %v2399
        %v2484 = vpop.f32.mrf.mxu0
        %v2485 = vadd.f32 0.0, %v2484
        %v2486 = vpop.f32.mrf.mxu0
        %v2487 = vpop.f32.mrf.mxu0
        %v2488 = vadd.f32 0.0, %v2487
        %v2489 = vpop.f32.mrf.mxu0
        %2490 = vmatprep.mubr.bf16.mxu0 0
        %2491 = vmatmul.mubr.bf16.gmra.mxu0 %v2402
        %v2492 = vpop.f32.mrf.mxu0
        %v2493 = vadd.f32 0.0, %v2492
        %v2494 = vpop.f32.mrf.mxu0
        %v2495 = vpop.f32.mrf.mxu0
        %v2496 = vadd.f32 0.0, %v2495
        %v2497 = vpop.f32.mrf.mxu0
        %2498 = vmatprep.mubr.bf16.mxu0 0
        %2499 = vmatmul.mubr.bf16.gmra.mxu0 %v2405
        %v2500 = vpop.f32.mrf.mxu0
        %v2501 = vadd.f32 0.0, %v2500
        %v2502 = vpop.f32.mrf.mxu0
        %v2503 = vpop.f32.mrf.mxu0
        %v2504 = vadd.f32 0.0, %v2503
        %v2505 = vpop.f32.mrf.mxu0
        %2506 = vmatprep.mubr.bf16.mxu0 0
        %2507 = vmatmul.mubr.bf16.gmra.mxu0 %v2408
        %v2508 = vpop.f32.mrf.mxu0
        %v2509 = vadd.f32 0.0, %v2508
        %v2510 = vpop.f32.mrf.mxu0
        %v2511 = vpop.f32.mrf.mxu0
        %v2512 = vadd.f32 0.0, %v2511
        %v2513 = vpop.f32.mrf.mxu0
        %2514 = vmatprep.mubr.bf16.mxu0 0
        %2515 = vmatmul.mubr.bf16.gmra.mxu0 %v2411
        %v2516 = vpop.f32.mrf.mxu0
        %v2517 = vadd.f32 0.0, %v2516
        %v2518 = vpop.f32.mrf.mxu0
        %v2519 = vpop.f32.mrf.mxu0
        %v2520 = vadd.f32 0.0, %v2519
        %v2521 = vpop.f32.mrf.mxu0
        %2522 = vmatprep.mubr.bf16.mxu0 0
        %2523 = vmatmul.mubr.bf16.gmra.mxu0 %v2414
        %v2524 = vpop.f32.mrf.mxu0
        %v2525 = vadd.f32 0.0, %v2524
        %v2526 = vpop.f32.mrf.mxu0
        %v2527 = vpop.f32.mrf.mxu0
        %v2528 = vadd.f32 0.0, %v2527
        %v2529 = vpop.f32.mrf.mxu0
        %2530 = vmatprep.mubr.bf16.mxu0 0
        %2531 = vmatmul.mubr.bf16.gmra.mxu0 %v2417
        %v2532 = vpop.f32.mrf.mxu0
        %v2533 = vadd.f32 0.0, %v2532
        %v2534 = vpop.f32.mrf.mxu0
        %v2535 = vpop.f32.mrf.mxu0
        %v2536 = vadd.f32 0.0, %v2535
        %v2537 = vpop.f32.mrf.mxu0
        %2538 = vmatprep.mubr.bf16.mxu0 0
        %2539 = vmatmul.mubr.bf16.gmra.mxu0 %v2420
        %v2540 = vpop.f32.mrf.mxu0
        %v2541 = vadd.f32 0.0, %v2540
        %v2542 = vpop.f32.mrf.mxu0
        %v2543 = vpop.f32.mrf.mxu0
        %v2544 = vadd.f32 0.0, %v2543
        %v2545 = vpop.f32.mrf.mxu0
        %2546 = vmatprep.mubr.bf16.mxu0 0
        %2547 = vmatmul.mubr.bf16.gmra.mxu0 %v2423
        %v2548 = vpop.f32.mrf.mxu0
        %v2549 = vadd.f32 0.0, %v2548
        %v2550 = vpop.f32.mrf.mxu0
        %v2551 = vpop.f32.mrf.mxu0
        %v2552 = vadd.f32 0.0, %v2551
        %v2553 = vpop.f32.mrf.mxu0
        %2554 = vmatprep.mubr.bf16.mxu0 0
        %2555 = vmatmul.mubr.bf16.gmra.mxu0 %v2426
        %v2556 = vpop.f32.mrf.mxu0
        %v2557 = vadd.f32 0.0, %v2556
        %v2558 = vpop.f32.mrf.mxu0
        %v2559 = vpop.f32.mrf.mxu0
        %v2560 = vadd.f32 0.0, %v2559
        %v2561 = vpop.f32.mrf.mxu0
        %2562 = vmatprep.mubr.bf16.mxu0 0
        %2563 = vmatmul.mubr.bf16.gmra.mxu0 %v2429
        %v2564 = vpop.f32.mrf.mxu0
        %v2565 = vadd.f32 0.0, %v2564
        %v2566 = vpop.f32.mrf.mxu0
        %v2567 = vpop.f32.mrf.mxu0
        %v2568 = vadd.f32 0.0, %v2567
        %v2569 = vpop.f32.mrf.mxu0
        %2570 = vmatprep.mubr.bf16.mxu0 0
        %2571 = vmatmul.mubr.bf16.gmra.mxu0 %v2432
        %v2572 = vpop.f32.mrf.mxu0
        %v2573 = vadd.f32 0.0, %v2572
        %v2574 = vpop.f32.mrf.mxu0
        %v2575 = vpop.f32.mrf.mxu0
        %v2576 = vadd.f32 0.0, %v2575
        %v2577 = vpop.f32.mrf.mxu0
        %2578 = vmatprep.mubr.bf16.mxu0 0
        %2579 = vmatmul.mubr.bf16.gmra.mxu0 %v2435
        %v2580 = vpop.f32.mrf.mxu0
        %v2581 = vadd.f32 0.0, %v2580
        %v2582 = vpop.f32.mrf.mxu0
        %v2583 = vpop.f32.mrf.mxu0
        %v2584 = vadd.f32 0.0, %v2583
        %v2585 = vpop.f32.mrf.mxu0
        %2586 = vmatprep.mubr.bf16.mxu0 0
        %2587 = vmatmul.mubr.bf16.gmra.mxu0 %v2438
        %v2588 = vpop.f32.mrf.mxu0
        %v2589 = vadd.f32 0.0, %v2588
        %v2590 = vpop.f32.mrf.mxu0
        %v2591 = vpop.f32.mrf.mxu0
        %v2592 = vadd.f32 0.0, %v2591
        %v2593 = vpop.f32.mrf.mxu0
        %2594 = vmatprep.mubr.bf16.mxu0 0
        %2595 = vmatmul.mubr.bf16.gmra.mxu0 %v2441
        %v2596 = vpop.f32.mrf.mxu0
        %v2597 = vadd.f32 0.0, %v2596
        %v2598 = vpop.f32.mrf.mxu0
        %v2599 = vpop.f32.mrf.mxu0
        %v2600 = vadd.f32 0.0, %v2599
        %v2601 = vpop.f32.mrf.mxu0
        %2602 = vmatprep.mubr.bf16.mxu0 0
        %2603 = vmatmul.mubr.bf16.gmra.mxu0 %v2444
        %v2604 = vpop.f32.mrf.mxu0
        %v2605 = vadd.f32 0.0, %v2604
        %v2606 = vpop.f32.mrf.mxu0
        %v2607 = vpop.f32.mrf.mxu0
        %v2608 = vadd.f32 0.0, %v2607
        %v2609 = vpop.f32.mrf.mxu0
        %2610 = vdwg.mxu0
        %v2611 = vld [vmem:[%s3] sm:$0x1]
        %v2613 = vlaneseq
        %v2614 = vshrl.u32 %v2613, 7
        %v2615 = vsub.s32 0, %v2614
        %v2616 = vrot.slane %v2611, %v2615
        %v2618 = vmul.f32 %v2485, %v2616
        %v2619 = vmul.f32 %v2488, %v2616
        %v2620 = vmul.f32 %v2493, %v2616
        %v2621 = vmul.f32 %v2496, %v2616
        %v2622 = vmul.f32 %v2501, %v2616
        %v2623 = vmul.f32 %v2504, %v2616
        %v2624 = vmul.f32 %v2509, %v2616
        %v2625 = vmul.f32 %v2512, %v2616
        %v2626 = vmul.f32 %v2517, %v2616
        %v2627 = vmul.f32 %v2520, %v2616
        %v2628 = vmul.f32 %v2525, %v2616
        %v2629 = vmul.f32 %v2528, %v2616
        %v2630 = vmul.f32 %v2533, %v2616
        %v2631 = vmul.f32 %v2536, %v2616
        %v2632 = vmul.f32 %v2541, %v2616
        %v2633 = vmul.f32 %v2544, %v2616
        %v2634 = vmul.f32 %v2549, %v2616
        %v2635 = vmul.f32 %v2552, %v2616
        %v2636 = vmul.f32 %v2557, %v2616
        %v2637 = vmul.f32 %v2560, %v2616
        %v2638 = vmul.f32 %v2565, %v2616
        %v2639 = vmul.f32 %v2568, %v2616
        %v2640 = vmul.f32 %v2573, %v2616
        %v2641 = vmul.f32 %v2576, %v2616
        %v2642 = vmul.f32 %v2581, %v2616
        %v2643 = vmul.f32 %v2584, %v2616
        %v2644 = vmul.f32 %v2589, %v2616
        %v2645 = vmul.f32 %v2592, %v2616
        %v2646 = vmul.f32 %v2597, %v2616
        %v2647 = vmul.f32 %v2600, %v2616
        %v2648 = vmul.f32 %v2605, %v2616
        %v2649 = vmul.f32 %v2608, %v2616
        %v2650 = vld [vmem:[%s4] sm:$0x1]
        %v2652 = vlaneseq
        %v2653 = vshrl.u32 %v2652, 7
        %v2654 = vsub.s32 0, %v2653
        %v2655 = vrot.slane %v2650, %v2654
        %v2657 = vadd.f32 %v2618, %v2655
        %v2658 = vadd.f32 %v2619, %v2655
        %v2659 = vadd.f32 %v2620, %v2655
        %v2660 = vadd.f32 %v2621, %v2655
        %v2661 = vadd.f32 %v2622, %v2655
        %v2662 = vadd.f32 %v2623, %v2655
        %v2663 = vadd.f32 %v2624, %v2655
        %v2664 = vadd.f32 %v2625, %v2655
        %v2665 = vadd.f32 %v2626, %v2655
        %v2666 = vadd.f32 %v2627, %v2655
        %v2667 = vadd.f32 %v2628, %v2655
        %v2668 = vadd.f32 %v2629, %v2655
        %v2669 = vadd.f32 %v2630, %v2655
        %v2670 = vadd.f32 %v2631, %v2655
        %v2671 = vadd.f32 %v2632, %v2655
        %v2672 = vadd.f32 %v2633, %v2655
        %v2673 = vadd.f32 %v2634, %v2655
        %v2674 = vadd.f32 %v2635, %v2655
        %v2675 = vadd.f32 %v2636, %v2655
        %v2676 = vadd.f32 %v2637, %v2655
        %v2677 = vadd.f32 %v2638, %v2655
        %v2678 = vadd.f32 %v2639, %v2655
        %v2679 = vadd.f32 %v2640, %v2655
        %v2680 = vadd.f32 %v2641, %v2655
        %v2681 = vadd.f32 %v2642, %v2655
        %v2682 = vadd.f32 %v2643, %v2655
        %v2683 = vadd.f32 %v2644, %v2655
        %v2684 = vadd.f32 %v2645, %v2655
        %v2685 = vadd.f32 %v2646, %v2655
        %v2686 = vadd.f32 %v2647, %v2655
        %v2687 = vadd.f32 %v2648, %v2655
        %v2688 = vadd.f32 %v2649, %v2655
        %v2689 = vmax.f32 %v2657, 0.0
        %v2690 = vmax.f32 %v2658, 0.0
        %v2691 = vmax.f32 %v2659, 0.0
        %v2692 = vmax.f32 %v2660, 0.0
        %v2693 = vmax.f32 %v2661, 0.0
        %v2694 = vmax.f32 %v2662, 0.0
        %v2695 = vmax.f32 %v2663, 0.0
        %v2696 = vmax.f32 %v2664, 0.0
        %v2697 = vmax.f32 %v2665, 0.0
        %v2698 = vmax.f32 %v2666, 0.0
        %v2699 = vmax.f32 %v2667, 0.0
        %v2700 = vmax.f32 %v2668, 0.0
        %v2701 = vmax.f32 %v2669, 0.0
        %v2702 = vmax.f32 %v2670, 0.0
        %v2703 = vmax.f32 %v2671, 0.0
        %v2704 = vmax.f32 %v2672, 0.0
        %v2705 = vmax.f32 %v2673, 0.0
        %v2706 = vmax.f32 %v2674, 0.0
        %v2707 = vmax.f32 %v2675, 0.0
        %v2708 = vmax.f32 %v2676, 0.0
        %v2709 = vmax.f32 %v2677, 0.0
        %v2710 = vmax.f32 %v2678, 0.0
        %v2711 = vmax.f32 %v2679, 0.0
        %v2712 = vmax.f32 %v2680, 0.0
        %v2713 = vmax.f32 %v2681, 0.0
        %v2714 = vmax.f32 %v2682, 0.0
        %v2715 = vmax.f32 %v2683, 0.0
        %v2716 = vmax.f32 %v2684, 0.0
        %v2717 = vmax.f32 %v2685, 0.0
        %v2718 = vmax.f32 %v2686, 0.0
        %v2719 = vmax.f32 %v2687, 0.0
        %v2720 = vmax.f32 %v2688, 0.0
        %2721 = vst.msk [vmem:[#allocation3] sm:$0xff] %vm446, 0.0
        %2722 = vst.msk [vmem:[#allocation3 + $0x8] sm:$0xff] %vm446, 0.0
        %vm2723 = vcmask 25600
        %2724 = vst.msk [vmem:[#allocation3 + $0x10] sm:$0x3] %vm2723, 0.0
        %2725 = vst.msk [vmem:[#allocation3 + $0x18] sm:$0xff] %vm446, 0.0
        %2726 = vst.msk [vmem:[#allocation3 + $0x20] sm:$0xff] %vm446, 0.0
        %2727 = vst.msk [vmem:[#allocation3 + $0x28] sm:$0x3] %vm2723, 0.0
        %2728 = vst.msk [vmem:[#allocation3 + $0x30] sm:$0xff] %vm446, 0.0
        %2729 = vst.msk [vmem:[#allocation3 + $0x38] sm:$0xff] %vm446, 0.0
        %2730 = vst.msk [vmem:[#allocation3 + $0x40] sm:$0x3] %vm2723, 0.0
        %2731 = vst.msk [vmem:[#allocation3 + $0x48] sm:$0xff] %vm446, 0.0
        %2732 = vst.msk [vmem:[#allocation3 + $0x50] sm:$0xff] %vm446, 0.0
        %2733 = vst.msk [vmem:[#allocation3 + $0x58] sm:$0x3] %vm2723, 0.0
        %2734 = vst.msk [vmem:[#allocation3 + $0x60] sm:$0xff] %vm446, 0.0
        %2735 = vst.msk [vmem:[#allocation3 + $0x68] sm:$0xff] %vm446, 0.0
        %2736 = vst.msk [vmem:[#allocation3 + $0x70] sm:$0x3] %vm2723, 0.0
        %2737 = vst.msk [vmem:[#allocation3 + $0x78] sm:$0xff] %vm446, 0.0
        %2738 = vst.msk [vmem:[#allocation3 + $0x80] sm:$0xff] %vm446, 0.0
        %2739 = vst.msk [vmem:[#allocation3 + $0x88] sm:$0x3] %vm2723, 0.0
        %2740 = vst.msk [vmem:[#allocation3 + $0x90] sm:$0xff] %vm446, 0.0
        %2741 = vst.msk [vmem:[#allocation3 + $0x98] sm:$0xff] %vm446, 0.0
        %2742 = vst.msk [vmem:[#allocation3 + $0xa0] sm:$0x3] %vm2723, 0.0
        %2743 = vst.msk [vmem:[#allocation3 + $0xa8] sm:$0xff] %vm446, 0.0
        %2744 = vst.msk [vmem:[#allocation3 + $0xb0] sm:$0xff] %vm446, 0.0
        %2745 = vst.msk [vmem:[#allocation3 + $0xb8] sm:$0x3] %vm2723, 0.0
        %2746 = vst.msk [vmem:[#allocation3 + $0xc0] sm:$0xff] %vm446, 0.0
        %2747 = vst.msk [vmem:[#allocation3 + $0xc8] sm:$0xff] %vm446, 0.0
        %2748 = vst.msk [vmem:[#allocation3 + $0xd0] sm:$0x3] %vm2723, 0.0
        %2749 = vst.msk [vmem:[#allocation3 + $0xd8] sm:$0xff] %vm446, 0.0
        %2750 = vst.msk [vmem:[#allocation3 + $0xe0] sm:$0xff] %vm446, 0.0
        %2751 = vst.msk [vmem:[#allocation3 + $0xe8] sm:$0x3] %vm2723, 0.0
        %2752 = vst.msk [vmem:[#allocation3 + $0xf0] sm:$0xff] %vm446, 0.0
        %2753 = vst.msk [vmem:[#allocation3 + $0xf8] sm:$0xff] %vm446, 0.0
        %2754 = vst.msk [vmem:[#allocation3 + $0x100] sm:$0x3] %vm2723, 0.0
        %2755 = vst.msk [vmem:[#allocation3 + $0x108] sm:$0xff] %vm446, 0.0
        %2756 = vst.msk [vmem:[#allocation3 + $0x110] sm:$0xff] %vm446, 0.0
        %2757 = vst.msk [vmem:[#allocation3 + $0x118] sm:$0x3] %vm2723, 0.0
        %2758 = vst.msk [vmem:[#allocation3 + $0x120] sm:$0xff] %vm446, 0.0
        %2759 = vst.msk [vmem:[#allocation3 + $0x128] sm:$0xff] %vm446, 0.0
        %2760 = vst.msk [vmem:[#allocation3 + $0x130] sm:$0x3] %vm2723, 0.0
        %2761 = vst.msk [vmem:[#allocation3 + $0x138] sm:$0xff] %vm446, 0.0
        %2762 = vst.msk [vmem:[#allocation3 + $0x140] sm:$0xff] %vm446, 0.0
        %2763 = vst.msk [vmem:[#allocation3 + $0x148] sm:$0x3] %vm2723, 0.0
        %2764 = vst.msk [vmem:[#allocation3 + $0x150] sm:$0xff] %vm446, 0.0
        %2765 = vst.msk [vmem:[#allocation3 + $0x158] sm:$0xff] %vm446, 0.0
        %2766 = vst.msk [vmem:[#allocation3 + $0x160] sm:$0x3] %vm2723, 0.0
        %2767 = vst.msk [vmem:[#allocation3 + $0x168] sm:$0xff] %vm446, 0.0
        %2768 = vst.msk [vmem:[#allocation3 + $0x170] sm:$0xff] %vm446, 0.0
        %2769 = vst.msk [vmem:[#allocation3 + $0x178] sm:$0x3] %vm2723, 0.0
        %2770 = vst.msk [vmem:[#allocation3 + $0x180] sm:$0xff] %vm446, 0.0
        %2771 = vst.msk [vmem:[#allocation3 + $0x188] sm:$0xff] %vm446, 0.0
        %2772 = vst.msk [vmem:[#allocation3 + $0x190] sm:$0x3] %vm2723, 0.0
        %2773 = vst.msk [vmem:[#allocation3 + $0x198] sm:$0xff] %vm446, 0.0
        %2774 = vst.msk [vmem:[#allocation3 + $0x1a0] sm:$0xff] %vm446, 0.0
        %2775 = vst.msk [vmem:[#allocation3 + $0x1a8] sm:$0x3] %vm2723, 0.0
        %s2776 = scalar_lea.vmem [#allocation3], 24
        %2777 = vst.msk [vmem:[%s2776 + $0x1] sm:$0xff] %vm446, %v2689
        %2778 = vst.msk [vmem:[%s2776 + $0x9] sm:$0xff] %vm446, %v2690
        %2779 = vst.msk [vmem:[%s2776 + $0x19] sm:$0xff] %vm446, %v2691
        %2780 = vst.msk [vmem:[%s2776 + $0x21] sm:$0xff] %vm446, %v2692
        %2781 = vst.msk [vmem:[%s2776 + $0x31] sm:$0xff] %vm446, %v2693
        %2782 = vst.msk [vmem:[%s2776 + $0x39] sm:$0xff] %vm446, %v2694
        %2783 = vst.msk [vmem:[%s2776 + $0x49] sm:$0xff] %vm446, %v2695
        %2784 = vst.msk [vmem:[%s2776 + $0x51] sm:$0xff] %vm446, %v2696
        %2785 = vst.msk [vmem:[%s2776 + $0x61] sm:$0xff] %vm446, %v2697
        %2786 = vst.msk [vmem:[%s2776 + $0x69] sm:$0xff] %vm446, %v2698
        %2787 = vst.msk [vmem:[%s2776 + $0x79] sm:$0xff] %vm446, %v2699
        %2788 = vst.msk [vmem:[%s2776 + $0x81] sm:$0xff] %vm446, %v2700
        %2789 = vst.msk [vmem:[%s2776 + $0x91] sm:$0xff] %vm446, %v2701
        %2790 = vst.msk [vmem:[%s2776 + $0x99] sm:$0xff] %vm446, %v2702
        %2791 = vst.msk [vmem:[%s2776 + $0xa9] sm:$0xff] %vm446, %v2703
        %2792 = vst.msk [vmem:[%s2776 + $0xb1] sm:$0xff] %vm446, %v2704
        %2793 = vst.msk [vmem:[%s2776 + $0xc1] sm:$0xff] %vm446, %v2705
        %2794 = vst.msk [vmem:[%s2776 + $0xc9] sm:$0xff] %vm446, %v2706
        %2795 = vst.msk [vmem:[%s2776 + $0xd9] sm:$0xff] %vm446, %v2707
        %2796 = vst.msk [vmem:[%s2776 + $0xe1] sm:$0xff] %vm446, %v2708
        %2797 = vst.msk [vmem:[%s2776 + $0xf1] sm:$0xff] %vm446, %v2709
        %2798 = vst.msk [vmem:[%s2776 + $0xf9] sm:$0xff] %vm446, %v2710
        %2799 = vst.msk [vmem:[%s2776 + $0x109] sm:$0xff] %vm446, %v2711
        %2800 = vst.msk [vmem:[%s2776 + $0x111] sm:$0xff] %vm446, %v2712
        %2801 = vst.msk [vmem:[%s2776 + $0x121] sm:$0xff] %vm446, %v2713
        %2802 = vst.msk [vmem:[%s2776 + $0x129] sm:$0xff] %vm446, %v2714
        %2803 = vst.msk [vmem:[%s2776 + $0x139] sm:$0xff] %vm446, %v2715
        %2804 = vst.msk [vmem:[%s2776 + $0x141] sm:$0xff] %vm446, %v2716
        %2805 = vst.msk [vmem:[%s2776 + $0x151] sm:$0xff] %vm446, %v2717
        %2806 = vst.msk [vmem:[%s2776 + $0x159] sm:$0xff] %vm446, %v2718
        %2807 = vst.msk [vmem:[%s2776 + $0x169] sm:$0xff] %vm446, %v2719
        %2808 = vst.msk [vmem:[%s2776 + $0x171] sm:$0xff] %vm446, %v2720
        %v2809 = vld [vmem:[#allocation3] sm:$0xff]
        %v2810 = vld [vmem:[#allocation3 + $0x8] sm:$0xff]
        %v2811 = vld [vmem:[#allocation3 + $0x18] sm:$0xff]
        %v2812 = vld [vmem:[#allocation3 + $0x20] sm:$0xff]
        %v2813 = vld [vmem:[#allocation3 + $0x30] sm:$0xff]
        %v2814 = vld [vmem:[#allocation3 + $0x38] sm:$0xff]
        %v2815 = vld [vmem:[#allocation3 + $0x48] sm:$0xff]
        %v2816 = vld [vmem:[#allocation3 + $0x50] sm:$0xff]
        %v2817 = vld [vmem:[#allocation3 + $0x60] sm:$0xff]
        %v2818 = vld [vmem:[#allocation3 + $0x68] sm:$0xff]
        %v2819 = vld [vmem:[#allocation3 + $0x78] sm:$0xff]
        %v2820 = vld [vmem:[#allocation3 + $0x80] sm:$0xff]
        %v2821 = vld [vmem:[#allocation3 + $0x90] sm:$0xff]
        %v2822 = vld [vmem:[#allocation3 + $0x98] sm:$0xff]
        %v2823 = vld [vmem:[#allocation3 + $0xa8] sm:$0xff]
        %v2824 = vld [vmem:[#allocation3 + $0xb0] sm:$0xff]
        %v2825 = vld [vmem:[#allocation3 + $0xc0] sm:$0xff]
        %v2826 = vld [vmem:[#allocation3 + $0xc8] sm:$0xff]
        %v2827 = vld [vmem:[#allocation3 + $0xd8] sm:$0xff]
        %v2828 = vld [vmem:[#allocation3 + $0xe0] sm:$0xff]
        %v2829 = vld [vmem:[#allocation3 + $0xf0] sm:$0xff]
        %v2830 = vld [vmem:[#allocation3 + $0xf8] sm:$0xff]
        %v2831 = vld [vmem:[#allocation3 + $0x108] sm:$0xff]
        %v2832 = vld [vmem:[#allocation3 + $0x110] sm:$0xff]
        %v2833 = vld [vmem:[#allocation3 + $0x120] sm:$0xff]
        %v2834 = vld [vmem:[#allocation3 + $0x128] sm:$0xff]
        %v2835 = vld [vmem:[#allocation3 + $0x138] sm:$0xff]
        %v2836 = vld [vmem:[#allocation3 + $0x140] sm:$0xff]
        %v2837 = vld [vmem:[#allocation3 + $0x150] sm:$0xff]
        %v2838 = vld [vmem:[#allocation3 + $0x158] sm:$0xff]
        %v2839 = vld [vmem:[#allocation3 + $0x168] sm:$0xff]
        %v2840 = vld [vmem:[#allocation3 + $0x170] sm:$0xff]
        %2841 = vst.msk [vmem:[#allocation5] sm:$0xff] %vm446, %v2809
        %2842 = vst.msk [vmem:[#allocation5 + $0x8] sm:$0xff] %vm446, %v2810
        %2843 = vst.msk [vmem:[#allocation5 + $0x10] sm:$0xff] %vm446, %v2811
        %2844 = vst.msk [vmem:[#allocation5 + $0x18] sm:$0xff] %vm446, %v2812
        %2845 = vst.msk [vmem:[#allocation5 + $0x20] sm:$0xff] %vm446, %v2813
        %2846 = vst.msk [vmem:[#allocation5 + $0x28] sm:$0xff] %vm446, %v2814
        %2847 = vst.msk [vmem:[#allocation5 + $0x30] sm:$0xff] %vm446, %v2815
        %2848 = vst.msk [vmem:[#allocation5 + $0x38] sm:$0xff] %vm446, %v2816
        %2849 = vst.msk [vmem:[#allocation5 + $0x40] sm:$0xff] %vm446, %v2817
        %2850 = vst.msk [vmem:[#allocation5 + $0x48] sm:$0xff] %vm446, %v2818
        %2851 = vst.msk [vmem:[#allocation5 + $0x50] sm:$0xff] %vm446, %v2819
        %2852 = vst.msk [vmem:[#allocation5 + $0x58] sm:$0xff] %vm446, %v2820
        %2853 = vst.msk [vmem:[#allocation5 + $0x60] sm:$0xff] %vm446, %v2821
        %2854 = vst.msk [vmem:[#allocation5 + $0x68] sm:$0xff] %vm446, %v2822
        %2855 = vst.msk [vmem:[#allocation5 + $0x70] sm:$0xff] %vm446, %v2823
        %2856 = vst.msk [vmem:[#allocation5 + $0x78] sm:$0xff] %vm446, %v2824
        %2857 = vst.msk [vmem:[#allocation5 + $0x80] sm:$0xff] %vm446, %v2825
        %2858 = vst.msk [vmem:[#allocation5 + $0x88] sm:$0xff] %vm446, %v2826
        %2859 = vst.msk [vmem:[#allocation5 + $0x90] sm:$0xff] %vm446, %v2827
        %2860 = vst.msk [vmem:[#allocation5 + $0x98] sm:$0xff] %vm446, %v2828
        %2861 = vst.msk [vmem:[#allocation5 + $0xa0] sm:$0xff] %vm446, %v2829
        %2862 = vst.msk [vmem:[#allocation5 + $0xa8] sm:$0xff] %vm446, %v2830
        %2863 = vst.msk [vmem:[#allocation5 + $0xb0] sm:$0xff] %vm446, %v2831
        %2864 = vst.msk [vmem:[#allocation5 + $0xb8] sm:$0xff] %vm446, %v2832
        %2865 = vst.msk [vmem:[#allocation5 + $0xc0] sm:$0xff] %vm446, %v2833
        %2866 = vst.msk [vmem:[#allocation5 + $0xc8] sm:$0xff] %vm446, %v2834
        %2867 = vst.msk [vmem:[#allocation5 + $0xd0] sm:$0xff] %vm446, %v2835
        %2868 = vst.msk [vmem:[#allocation5 + $0xd8] sm:$0xff] %vm446, %v2836
        %2869 = vst.msk [vmem:[#allocation5 + $0xe0] sm:$0xff] %vm446, %v2837
        %2870 = vst.msk [vmem:[#allocation5 + $0xe8] sm:$0xff] %vm446, %v2838
        %2871 = vst.msk [vmem:[#allocation5 + $0xf0] sm:$0xff] %vm446, %v2839
        %2872 = vst.msk [vmem:[#allocation5 + $0xf8] sm:$0xff] %vm446, %v2840
        %v2873 = vld [vmem:[#allocation3 + $0x1] sm:$0xff]
        %v2874 = vld [vmem:[#allocation3 + $0x9] sm:$0xff]
        %v2875 = vld [vmem:[#allocation3 + $0x19] sm:$0xff]
        %v2876 = vld [vmem:[#allocation3 + $0x21] sm:$0xff]
        %v2877 = vld [vmem:[#allocation3 + $0x31] sm:$0xff]
        %v2878 = vld [vmem:[#allocation3 + $0x39] sm:$0xff]
        %v2879 = vld [vmem:[#allocation3 + $0x49] sm:$0xff]
        %v2880 = vld [vmem:[#allocation3 + $0x51] sm:$0xff]
        %v2881 = vld [vmem:[#allocation3 + $0x61] sm:$0xff]
        %v2882 = vld [vmem:[#allocation3 + $0x69] sm:$0xff]
        %v2883 = vld [vmem:[#allocation3 + $0x79] sm:$0xff]
        %v2884 = vld [vmem:[#allocation3 + $0x81] sm:$0xff]
        %v2885 = vld [vmem:[#allocation3 + $0x91] sm:$0xff]
        %v2886 = vld [vmem:[#allocation3 + $0x99] sm:$0xff]
        %v2887 = vld [vmem:[#allocation3 + $0xa9] sm:$0xff]
        %v2888 = vld [vmem:[#allocation3 + $0xb1] sm:$0xff]
        %v2889 = vld [vmem:[#allocation3 + $0xc1] sm:$0xff]
        %v2890 = vld [vmem:[#allocation3 + $0xc9] sm:$0xff]
        %v2891 = vld [vmem:[#allocation3 + $0xd9] sm:$0xff]
        %v2892 = vld [vmem:[#allocation3 + $0xe1] sm:$0xff]
        %v2893 = vld [vmem:[#allocation3 + $0xf1] sm:$0xff]
        %v2894 = vld [vmem:[#allocation3 + $0xf9] sm:$0xff]
        %v2895 = vld [vmem:[#allocation3 + $0x109] sm:$0xff]
        %v2896 = vld [vmem:[#allocation3 + $0x111] sm:$0xff]
        %v2897 = vld [vmem:[#allocation3 + $0x121] sm:$0xff]
        %v2898 = vld [vmem:[#allocation3 + $0x129] sm:$0xff]
        %v2899 = vld [vmem:[#allocation3 + $0x139] sm:$0xff]
        %v2900 = vld [vmem:[#allocation3 + $0x141] sm:$0xff]
        %v2901 = vld [vmem:[#allocation3 + $0x151] sm:$0xff]
        %v2902 = vld [vmem:[#allocation3 + $0x159] sm:$0xff]
        %v2903 = vld [vmem:[#allocation3 + $0x169] sm:$0xff]
        %v2904 = vld [vmem:[#allocation3 + $0x171] sm:$0xff]
        %2937 = vrot.lane.b32.xlu0 %v2873, 4
        %v2938 = vpop.permute.xlu0 %2937
        %2939 = vrot.lane.b32.xlu0 %v2874, 4
        %v2940 = vpop.permute.xlu0 %2939
        %2941 = vrot.lane.b32.xlu0 %v2875, 4
        %v2942 = vpop.permute.xlu0 %2941
        %2943 = vrot.lane.b32.xlu0 %v2876, 4
        %v2944 = vpop.permute.xlu0 %2943
        %2945 = vrot.lane.b32.xlu0 %v2877, 4
        %v2946 = vpop.permute.xlu0 %2945
        %2947 = vrot.lane.b32.xlu0 %v2878, 4
        %v2948 = vpop.permute.xlu0 %2947
        %2949 = vrot.lane.b32.xlu0 %v2879, 4
        %v2950 = vpop.permute.xlu0 %2949
        %2951 = vrot.lane.b32.xlu0 %v2880, 4
        %v2952 = vpop.permute.xlu0 %2951
        %2953 = vrot.lane.b32.xlu0 %v2881, 4
        %v2954 = vpop.permute.xlu0 %2953
        %2955 = vrot.lane.b32.xlu0 %v2882, 4
        %v2956 = vpop.permute.xlu0 %2955
        %2957 = vrot.lane.b32.xlu0 %v2883, 4
        %v2958 = vpop.permute.xlu0 %2957
        %2959 = vrot.lane.b32.xlu0 %v2884, 4
        %v2960 = vpop.permute.xlu0 %2959
        %2961 = vrot.lane.b32.xlu0 %v2885, 4
        %v2962 = vpop.permute.xlu0 %2961
        %2963 = vrot.lane.b32.xlu0 %v2886, 4
        %v2964 = vpop.permute.xlu0 %2963
        %2965 = vrot.lane.b32.xlu0 %v2887, 4
        %v2966 = vpop.permute.xlu0 %2965
        %2967 = vrot.lane.b32.xlu0 %v2888, 4
        %v2968 = vpop.permute.xlu0 %2967
        %2969 = vrot.lane.b32.xlu0 %v2889, 4
        %v2970 = vpop.permute.xlu0 %2969
        %2971 = vrot.lane.b32.xlu0 %v2890, 4
        %v2972 = vpop.permute.xlu0 %2971
        %2973 = vrot.lane.b32.xlu0 %v2891, 4
        %v2974 = vpop.permute.xlu0 %2973
        %2975 = vrot.lane.b32.xlu0 %v2892, 4
        %v2976 = vpop.permute.xlu0 %2975
        %2977 = vrot.lane.b32.xlu0 %v2893, 4
        %v2978 = vpop.permute.xlu0 %2977
        %2979 = vrot.lane.b32.xlu0 %v2894, 4
        %v2980 = vpop.permute.xlu0 %2979
        %2981 = vrot.lane.b32.xlu0 %v2895, 4
        %v2982 = vpop.permute.xlu0 %2981
        %2983 = vrot.lane.b32.xlu0 %v2896, 4
        %v2984 = vpop.permute.xlu0 %2983
        %2985 = vrot.lane.b32.xlu0 %v2897, 4
        %v2986 = vpop.permute.xlu0 %2985
        %2987 = vrot.lane.b32.xlu0 %v2898, 4
        %v2988 = vpop.permute.xlu0 %2987
        %2989 = vrot.lane.b32.xlu0 %v2899, 4
        %v2990 = vpop.permute.xlu0 %2989
        %2991 = vrot.lane.b32.xlu0 %v2900, 4
        %v2992 = vpop.permute.xlu0 %2991
        %2993 = vrot.lane.b32.xlu0 %v2901, 4
        %v2994 = vpop.permute.xlu0 %2993
        %2995 = vrot.lane.b32.xlu0 %v2902, 4
        %v2996 = vpop.permute.xlu0 %2995
        %2997 = vrot.lane.b32.xlu0 %v2903, 4
        %v2998 = vpop.permute.xlu0 %2997
        %2999 = vrot.lane.b32.xlu0 %v2904, 4
        %v3000 = vpop.permute.xlu0 %2999
        %3033 = vst.msk [vmem:[#allocation5] sm:$0xff] %vm671, %v2938
        %3034 = vst.msk [vmem:[#allocation5 + $0x8] sm:$0xff] %vm671, %v2940
        %3035 = vst.msk [vmem:[#allocation5 + $0x10] sm:$0xff] %vm671, %v2942
        %3036 = vst.msk [vmem:[#allocation5 + $0x18] sm:$0xff] %vm671, %v2944
        %3037 = vst.msk [vmem:[#allocation5 + $0x20] sm:$0xff] %vm671, %v2946
        %3038 = vst.msk [vmem:[#allocation5 + $0x28] sm:$0xff] %vm671, %v2948
        %3039 = vst.msk [vmem:[#allocation5 + $0x30] sm:$0xff] %vm671, %v2950
        %3040 = vst.msk [vmem:[#allocation5 + $0x38] sm:$0xff] %vm671, %v2952
        %3041 = vst.msk [vmem:[#allocation5 + $0x40] sm:$0xff] %vm671, %v2954
        %3042 = vst.msk [vmem:[#allocation5 + $0x48] sm:$0xff] %vm671, %v2956
        %3043 = vst.msk [vmem:[#allocation5 + $0x50] sm:$0xff] %vm671, %v2958
        %3044 = vst.msk [vmem:[#allocation5 + $0x58] sm:$0xff] %vm671, %v2960
        %3045 = vst.msk [vmem:[#allocation5 + $0x60] sm:$0xff] %vm671, %v2962
        %3046 = vst.msk [vmem:[#allocation5 + $0x68] sm:$0xff] %vm671, %v2964
        %3047 = vst.msk [vmem:[#allocation5 + $0x70] sm:$0xff] %vm671, %v2966
        %3048 = vst.msk [vmem:[#allocation5 + $0x78] sm:$0xff] %vm671, %v2968
        %3049 = vst.msk [vmem:[#allocation5 + $0x80] sm:$0xff] %vm671, %v2970
        %3050 = vst.msk [vmem:[#allocation5 + $0x88] sm:$0xff] %vm671, %v2972
        %3051 = vst.msk [vmem:[#allocation5 + $0x90] sm:$0xff] %vm671, %v2974
        %3052 = vst.msk [vmem:[#allocation5 + $0x98] sm:$0xff] %vm671, %v2976
        %3053 = vst.msk [vmem:[#allocation5 + $0xa0] sm:$0xff] %vm671, %v2978
        %3054 = vst.msk [vmem:[#allocation5 + $0xa8] sm:$0xff] %vm671, %v2980
        %3055 = vst.msk [vmem:[#allocation5 + $0xb0] sm:$0xff] %vm671, %v2982
        %3056 = vst.msk [vmem:[#allocation5 + $0xb8] sm:$0xff] %vm671, %v2984
        %3057 = vst.msk [vmem:[#allocation5 + $0xc0] sm:$0xff] %vm671, %v2986
        %3058 = vst.msk [vmem:[#allocation5 + $0xc8] sm:$0xff] %vm671, %v2988
        %3059 = vst.msk [vmem:[#allocation5 + $0xd0] sm:$0xff] %vm671, %v2990
        %3060 = vst.msk [vmem:[#allocation5 + $0xd8] sm:$0xff] %vm671, %v2992
        %3061 = vst.msk [vmem:[#allocation5 + $0xe0] sm:$0xff] %vm671, %v2994
        %3062 = vst.msk [vmem:[#allocation5 + $0xe8] sm:$0xff] %vm671, %v2996
        %3063 = vst.msk [vmem:[#allocation5 + $0xf0] sm:$0xff] %vm671, %v2998
        %3064 = vst.msk [vmem:[#allocation5 + $0xf8] sm:$0xff] %vm671, %v3000
        %v3065 = vld [vmem:[#allocation3 + $0x2] sm:$0xff]
        %v3066 = vld [vmem:[#allocation3 + $0xa] sm:$0xff]
        %v3067 = vld [vmem:[#allocation3 + $0x1a] sm:$0xff]
        %v3068 = vld [vmem:[#allocation3 + $0x22] sm:$0xff]
        %v3069 = vld [vmem:[#allocation3 + $0x32] sm:$0xff]
        %v3070 = vld [vmem:[#allocation3 + $0x3a] sm:$0xff]
        %v3071 = vld [vmem:[#allocation3 + $0x4a] sm:$0xff]
        %v3072 = vld [vmem:[#allocation3 + $0x52] sm:$0xff]
        %v3073 = vld [vmem:[#allocation3 + $0x62] sm:$0xff]
        %v3074 = vld [vmem:[#allocation3 + $0x6a] sm:$0xff]
        %v3075 = vld [vmem:[#allocation3 + $0x7a] sm:$0xff]
        %v3076 = vld [vmem:[#allocation3 + $0x82] sm:$0xff]
        %v3077 = vld [vmem:[#allocation3 + $0x92] sm:$0xff]
        %v3078 = vld [vmem:[#allocation3 + $0x9a] sm:$0xff]
        %v3079 = vld [vmem:[#allocation3 + $0xaa] sm:$0xff]
        %v3080 = vld [vmem:[#allocation3 + $0xb2] sm:$0xff]
        %v3081 = vld [vmem:[#allocation3 + $0xc2] sm:$0xff]
        %v3082 = vld [vmem:[#allocation3 + $0xca] sm:$0xff]
        %v3083 = vld [vmem:[#allocation3 + $0xda] sm:$0xff]
        %v3084 = vld [vmem:[#allocation3 + $0xe2] sm:$0xff]
        %v3085 = vld [vmem:[#allocation3 + $0xf2] sm:$0xff]
        %v3086 = vld [vmem:[#allocation3 + $0xfa] sm:$0xff]
        %v3087 = vld [vmem:[#allocation3 + $0x10a] sm:$0xff]
        %v3088 = vld [vmem:[#allocation3 + $0x112] sm:$0xff]
        %v3089 = vld [vmem:[#allocation3 + $0x122] sm:$0xff]
        %v3090 = vld [vmem:[#allocation3 + $0x12a] sm:$0xff]
        %v3091 = vld [vmem:[#allocation3 + $0x13a] sm:$0xff]
        %v3092 = vld [vmem:[#allocation3 + $0x142] sm:$0xff]
        %v3093 = vld [vmem:[#allocation3 + $0x152] sm:$0xff]
        %v3094 = vld [vmem:[#allocation3 + $0x15a] sm:$0xff]
        %v3095 = vld [vmem:[#allocation3 + $0x16a] sm:$0xff]
        %v3096 = vld [vmem:[#allocation3 + $0x172] sm:$0xff]
        %3129 = vrot.lane.b32.xlu0 %v3065, 8
        %v3130 = vpop.permute.xlu0 %3129
        %3131 = vrot.lane.b32.xlu0 %v3066, 8
        %v3132 = vpop.permute.xlu0 %3131
        %3133 = vrot.lane.b32.xlu0 %v3067, 8
        %v3134 = vpop.permute.xlu0 %3133
        %3135 = vrot.lane.b32.xlu0 %v3068, 8
        %v3136 = vpop.permute.xlu0 %3135
        %3137 = vrot.lane.b32.xlu0 %v3069, 8
        %v3138 = vpop.permute.xlu0 %3137
        %3139 = vrot.lane.b32.xlu0 %v3070, 8
        %v3140 = vpop.permute.xlu0 %3139
        %3141 = vrot.lane.b32.xlu0 %v3071, 8
        %v3142 = vpop.permute.xlu0 %3141
        %3143 = vrot.lane.b32.xlu0 %v3072, 8
        %v3144 = vpop.permute.xlu0 %3143
        %3145 = vrot.lane.b32.xlu0 %v3073, 8
        %v3146 = vpop.permute.xlu0 %3145
        %3147 = vrot.lane.b32.xlu0 %v3074, 8
        %v3148 = vpop.permute.xlu0 %3147
        %3149 = vrot.lane.b32.xlu0 %v3075, 8
        %v3150 = vpop.permute.xlu0 %3149
        %3151 = vrot.lane.b32.xlu0 %v3076, 8
        %v3152 = vpop.permute.xlu0 %3151
        %3153 = vrot.lane.b32.xlu0 %v3077, 8
        %v3154 = vpop.permute.xlu0 %3153
        %3155 = vrot.lane.b32.xlu0 %v3078, 8
        %v3156 = vpop.permute.xlu0 %3155
        %3157 = vrot.lane.b32.xlu0 %v3079, 8
        %v3158 = vpop.permute.xlu0 %3157
        %3159 = vrot.lane.b32.xlu0 %v3080, 8
        %v3160 = vpop.permute.xlu0 %3159
        %3161 = vrot.lane.b32.xlu0 %v3081, 8
        %v3162 = vpop.permute.xlu0 %3161
        %3163 = vrot.lane.b32.xlu0 %v3082, 8
        %v3164 = vpop.permute.xlu0 %3163
        %3165 = vrot.lane.b32.xlu0 %v3083, 8
        %v3166 = vpop.permute.xlu0 %3165
        %3167 = vrot.lane.b32.xlu0 %v3084, 8
        %v3168 = vpop.permute.xlu0 %3167
        %3169 = vrot.lane.b32.xlu0 %v3085, 8
        %v3170 = vpop.permute.xlu0 %3169
        %3171 = vrot.lane.b32.xlu0 %v3086, 8
        %v3172 = vpop.permute.xlu0 %3171
        %3173 = vrot.lane.b32.xlu0 %v3087, 8
        %v3174 = vpop.permute.xlu0 %3173
        %3175 = vrot.lane.b32.xlu0 %v3088, 8
        %v3176 = vpop.permute.xlu0 %3175
        %3177 = vrot.lane.b32.xlu0 %v3089, 8
        %v3178 = vpop.permute.xlu0 %3177
        %3179 = vrot.lane.b32.xlu0 %v3090, 8
        %v3180 = vpop.permute.xlu0 %3179
        %3181 = vrot.lane.b32.xlu0 %v3091, 8
        %v3182 = vpop.permute.xlu0 %3181
        %3183 = vrot.lane.b32.xlu0 %v3092, 8
        %v3184 = vpop.permute.xlu0 %3183
        %3185 = vrot.lane.b32.xlu0 %v3093, 8
        %v3186 = vpop.permute.xlu0 %3185
        %3187 = vrot.lane.b32.xlu0 %v3094, 8
        %v3188 = vpop.permute.xlu0 %3187
        %3189 = vrot.lane.b32.xlu0 %v3095, 8
        %v3190 = vpop.permute.xlu0 %3189
        %3191 = vrot.lane.b32.xlu0 %v3096, 8
        %v3192 = vpop.permute.xlu0 %3191
        %vm3225 = vcmask 97344
        %3226 = vst.msk [vmem:[#allocation5] sm:$0xff] %vm3225, %v3130
        %3227 = vst.msk [vmem:[#allocation5 + $0x8] sm:$0xff] %vm3225, %v3132
        %3228 = vst.msk [vmem:[#allocation5 + $0x10] sm:$0xff] %vm3225, %v3134
        %3229 = vst.msk [vmem:[#allocation5 + $0x18] sm:$0xff] %vm3225, %v3136
        %3230 = vst.msk [vmem:[#allocation5 + $0x20] sm:$0xff] %vm3225, %v3138
        %3231 = vst.msk [vmem:[#allocation5 + $0x28] sm:$0xff] %vm3225, %v3140
        %3232 = vst.msk [vmem:[#allocation5 + $0x30] sm:$0xff] %vm3225, %v3142
        %3233 = vst.msk [vmem:[#allocation5 + $0x38] sm:$0xff] %vm3225, %v3144
        %3234 = vst.msk [vmem:[#allocation5 + $0x40] sm:$0xff] %vm3225, %v3146
        %3235 = vst.msk [vmem:[#allocation5 + $0x48] sm:$0xff] %vm3225, %v3148
        %3236 = vst.msk [vmem:[#allocation5 + $0x50] sm:$0xff] %vm3225, %v3150
        %3237 = vst.msk [vmem:[#allocation5 + $0x58] sm:$0xff] %vm3225, %v3152
        %3238 = vst.msk [vmem:[#allocation5 + $0x60] sm:$0xff] %vm3225, %v3154
        %3239 = vst.msk [vmem:[#allocation5 + $0x68] sm:$0xff] %vm3225, %v3156
        %3240 = vst.msk [vmem:[#allocation5 + $0x70] sm:$0xff] %vm3225, %v3158
        %3241 = vst.msk [vmem:[#allocation5 + $0x78] sm:$0xff] %vm3225, %v3160
        %3242 = vst.msk [vmem:[#allocation5 + $0x80] sm:$0xff] %vm3225, %v3162
        %3243 = vst.msk [vmem:[#allocation5 + $0x88] sm:$0xff] %vm3225, %v3164
        %3244 = vst.msk [vmem:[#allocation5 + $0x90] sm:$0xff] %vm3225, %v3166
        %3245 = vst.msk [vmem:[#allocation5 + $0x98] sm:$0xff] %vm3225, %v3168
        %3246 = vst.msk [vmem:[#allocation5 + $0xa0] sm:$0xff] %vm3225, %v3170
        %3247 = vst.msk [vmem:[#allocation5 + $0xa8] sm:$0xff] %vm3225, %v3172
        %3248 = vst.msk [vmem:[#allocation5 + $0xb0] sm:$0xff] %vm3225, %v3174
        %3249 = vst.msk [vmem:[#allocation5 + $0xb8] sm:$0xff] %vm3225, %v3176
        %3250 = vst.msk [vmem:[#allocation5 + $0xc0] sm:$0xff] %vm3225, %v3178
        %3251 = vst.msk [vmem:[#allocation5 + $0xc8] sm:$0xff] %vm3225, %v3180
        %3252 = vst.msk [vmem:[#allocation5 + $0xd0] sm:$0xff] %vm3225, %v3182
        %3253 = vst.msk [vmem:[#allocation5 + $0xd8] sm:$0xff] %vm3225, %v3184
        %3254 = vst.msk [vmem:[#allocation5 + $0xe0] sm:$0xff] %vm3225, %v3186
        %3255 = vst.msk [vmem:[#allocation5 + $0xe8] sm:$0xff] %vm3225, %v3188
        %3256 = vst.msk [vmem:[#allocation5 + $0xf0] sm:$0xff] %vm3225, %v3190
        %3257 = vst.msk [vmem:[#allocation5 + $0xf8] sm:$0xff] %vm3225, %v3192
        %v3258 = vld [vmem:[%s2776] sm:$0xff]
        %v3259 = vld [vmem:[%s2776 + $0x8] sm:$0xff]
        %v3260 = vld [vmem:[%s2776 + $0x18] sm:$0xff]
        %v3261 = vld [vmem:[%s2776 + $0x20] sm:$0xff]
        %v3262 = vld [vmem:[%s2776 + $0x30] sm:$0xff]
        %v3263 = vld [vmem:[%s2776 + $0x38] sm:$0xff]
        %v3264 = vld [vmem:[%s2776 + $0x48] sm:$0xff]
        %v3265 = vld [vmem:[%s2776 + $0x50] sm:$0xff]
        %v3266 = vld [vmem:[%s2776 + $0x60] sm:$0xff]
        %v3267 = vld [vmem:[%s2776 + $0x68] sm:$0xff]
        %v3268 = vld [vmem:[%s2776 + $0x78] sm:$0xff]
        %v3269 = vld [vmem:[%s2776 + $0x80] sm:$0xff]
        %v3270 = vld [vmem:[%s2776 + $0x90] sm:$0xff]
        %v3271 = vld [vmem:[%s2776 + $0x98] sm:$0xff]
        %v3272 = vld [vmem:[%s2776 + $0xa8] sm:$0xff]
        %v3273 = vld [vmem:[%s2776 + $0xb0] sm:$0xff]
        %v3274 = vld [vmem:[%s2776 + $0xc0] sm:$0xff]
        %v3275 = vld [vmem:[%s2776 + $0xc8] sm:$0xff]
        %v3276 = vld [vmem:[%s2776 + $0xd8] sm:$0xff]
        %v3277 = vld [vmem:[%s2776 + $0xe0] sm:$0xff]
        %v3278 = vld [vmem:[%s2776 + $0xf0] sm:$0xff]
        %v3279 = vld [vmem:[%s2776 + $0xf8] sm:$0xff]
        %v3280 = vld [vmem:[%s2776 + $0x108] sm:$0xff]
        %v3281 = vld [vmem:[%s2776 + $0x110] sm:$0xff]
        %v3282 = vld [vmem:[%s2776 + $0x120] sm:$0xff]
        %v3283 = vld [vmem:[%s2776 + $0x128] sm:$0xff]
        %v3284 = vld [vmem:[%s2776 + $0x138] sm:$0xff]
        %v3285 = vld [vmem:[%s2776 + $0x140] sm:$0xff]
        %v3286 = vld [vmem:[%s2776 + $0x150] sm:$0xff]
        %v3287 = vld [vmem:[%s2776 + $0x158] sm:$0xff]
        %v3288 = vld [vmem:[%s2776 + $0x168] sm:$0xff]
        %v3289 = vld [vmem:[%s2776 + $0x170] sm:$0xff]
        %3322 = vrot.lane.b32.xlu0 %v3258, 12
        %v3323 = vpop.permute.xlu0 %3322
        %3324 = vrot.lane.b32.xlu0 %v3259, 12
        %v3325 = vpop.permute.xlu0 %3324
        %3326 = vrot.lane.b32.xlu0 %v3260, 12
        %v3327 = vpop.permute.xlu0 %3326
        %3328 = vrot.lane.b32.xlu0 %v3261, 12
        %v3329 = vpop.permute.xlu0 %3328
        %3330 = vrot.lane.b32.xlu0 %v3262, 12
        %v3331 = vpop.permute.xlu0 %3330
        %3332 = vrot.lane.b32.xlu0 %v3263, 12
        %v3333 = vpop.permute.xlu0 %3332
        %3334 = vrot.lane.b32.xlu0 %v3264, 12
        %v3335 = vpop.permute.xlu0 %3334
        %3336 = vrot.lane.b32.xlu0 %v3265, 12
        %v3337 = vpop.permute.xlu0 %3336
        %3338 = vrot.lane.b32.xlu0 %v3266, 12
        %v3339 = vpop.permute.xlu0 %3338
        %3340 = vrot.lane.b32.xlu0 %v3267, 12
        %v3341 = vpop.permute.xlu0 %3340
        %3342 = vrot.lane.b32.xlu0 %v3268, 12
        %v3343 = vpop.permute.xlu0 %3342
        %3344 = vrot.lane.b32.xlu0 %v3269, 12
        %v3345 = vpop.permute.xlu0 %3344
        %3346 = vrot.lane.b32.xlu0 %v3270, 12
        %v3347 = vpop.permute.xlu0 %3346
        %3348 = vrot.lane.b32.xlu0 %v3271, 12
        %v3349 = vpop.permute.xlu0 %3348
        %3350 = vrot.lane.b32.xlu0 %v3272, 12
        %v3351 = vpop.permute.xlu0 %3350
        %3352 = vrot.lane.b32.xlu0 %v3273, 12
        %v3353 = vpop.permute.xlu0 %3352
        %3354 = vrot.lane.b32.xlu0 %v3274, 12
        %v3355 = vpop.permute.xlu0 %3354
        %3356 = vrot.lane.b32.xlu0 %v3275, 12
        %v3357 = vpop.permute.xlu0 %3356
        %3358 = vrot.lane.b32.xlu0 %v3276, 12
        %v3359 = vpop.permute.xlu0 %3358
        %3360 = vrot.lane.b32.xlu0 %v3277, 12
        %v3361 = vpop.permute.xlu0 %3360
        %3362 = vrot.lane.b32.xlu0 %v3278, 12
        %v3363 = vpop.permute.xlu0 %3362
        %3364 = vrot.lane.b32.xlu0 %v3279, 12
        %v3365 = vpop.permute.xlu0 %3364
        %3366 = vrot.lane.b32.xlu0 %v3280, 12
        %v3367 = vpop.permute.xlu0 %3366
        %3368 = vrot.lane.b32.xlu0 %v3281, 12
        %v3369 = vpop.permute.xlu0 %3368
        %3370 = vrot.lane.b32.xlu0 %v3282, 12
        %v3371 = vpop.permute.xlu0 %3370
        %3372 = vrot.lane.b32.xlu0 %v3283, 12
        %v3373 = vpop.permute.xlu0 %3372
        %3374 = vrot.lane.b32.xlu0 %v3284, 12
        %v3375 = vpop.permute.xlu0 %3374
        %3376 = vrot.lane.b32.xlu0 %v3285, 12
        %v3377 = vpop.permute.xlu0 %3376
        %3378 = vrot.lane.b32.xlu0 %v3286, 12
        %v3379 = vpop.permute.xlu0 %3378
        %3380 = vrot.lane.b32.xlu0 %v3287, 12
        %v3381 = vpop.permute.xlu0 %3380
        %3382 = vrot.lane.b32.xlu0 %v3288, 12
        %v3383 = vpop.permute.xlu0 %3382
        %3384 = vrot.lane.b32.xlu0 %v3289, 12
        %v3385 = vpop.permute.xlu0 %3384
        %vm3418 = vcmask 130144
        %3419 = vst.msk [vmem:[#allocation5] sm:$0xff] %vm3418, %v3323
        %3420 = vst.msk [vmem:[#allocation5 + $0x8] sm:$0xff] %vm3418, %v3325
        %3421 = vst.msk [vmem:[#allocation5 + $0x10] sm:$0xff] %vm3418, %v3327
        %3422 = vst.msk [vmem:[#allocation5 + $0x18] sm:$0xff] %vm3418, %v3329
        %3423 = vst.msk [vmem:[#allocation5 + $0x20] sm:$0xff] %vm3418, %v3331
        %3424 = vst.msk [vmem:[#allocation5 + $0x28] sm:$0xff] %vm3418, %v3333
        %3425 = vst.msk [vmem:[#allocation5 + $0x30] sm:$0xff] %vm3418, %v3335
        %3426 = vst.msk [vmem:[#allocation5 + $0x38] sm:$0xff] %vm3418, %v3337
        %3427 = vst.msk [vmem:[#allocation5 + $0x40] sm:$0xff] %vm3418, %v3339
        %3428 = vst.msk [vmem:[#allocation5 + $0x48] sm:$0xff] %vm3418, %v3341
        %3429 = vst.msk [vmem:[#allocation5 + $0x50] sm:$0xff] %vm3418, %v3343
        %3430 = vst.msk [vmem:[#allocation5 + $0x58] sm:$0xff] %vm3418, %v3345
        %3431 = vst.msk [vmem:[#allocation5 + $0x60] sm:$0xff] %vm3418, %v3347
        %3432 = vst.msk [vmem:[#allocation5 + $0x68] sm:$0xff] %vm3418, %v3349
        %3433 = vst.msk [vmem:[#allocation5 + $0x70] sm:$0xff] %vm3418, %v3351
        %3434 = vst.msk [vmem:[#allocation5 + $0x78] sm:$0xff] %vm3418, %v3353
        %3435 = vst.msk [vmem:[#allocation5 + $0x80] sm:$0xff] %vm3418, %v3355
        %3436 = vst.msk [vmem:[#allocation5 + $0x88] sm:$0xff] %vm3418, %v3357
        %3437 = vst.msk [vmem:[#allocation5 + $0x90] sm:$0xff] %vm3418, %v3359
        %3438 = vst.msk [vmem:[#allocation5 + $0x98] sm:$0xff] %vm3418, %v3361
        %3439 = vst.msk [vmem:[#allocation5 + $0xa0] sm:$0xff] %vm3418, %v3363
        %3440 = vst.msk [vmem:[#allocation5 + $0xa8] sm:$0xff] %vm3418, %v3365
        %3441 = vst.msk [vmem:[#allocation5 + $0xb0] sm:$0xff] %vm3418, %v3367
        %3442 = vst.msk [vmem:[#allocation5 + $0xb8] sm:$0xff] %vm3418, %v3369
        %3443 = vst.msk [vmem:[#allocation5 + $0xc0] sm:$0xff] %vm3418, %v3371
        %3444 = vst.msk [vmem:[#allocation5 + $0xc8] sm:$0xff] %vm3418, %v3373
        %3445 = vst.msk [vmem:[#allocation5 + $0xd0] sm:$0xff] %vm3418, %v3375
        %3446 = vst.msk [vmem:[#allocation5 + $0xd8] sm:$0xff] %vm3418, %v3377
        %3447 = vst.msk [vmem:[#allocation5 + $0xe0] sm:$0xff] %vm3418, %v3379
        %3448 = vst.msk [vmem:[#allocation5 + $0xe8] sm:$0xff] %vm3418, %v3381
        %3449 = vst.msk [vmem:[#allocation5 + $0xf0] sm:$0xff] %vm3418, %v3383
        %3450 = vst.msk [vmem:[#allocation5 + $0xf8] sm:$0xff] %vm3418, %v3385
        %v3451 = vld [vmem:[%s2776 + $0x1] sm:$0xff]
        %v3452 = vld [vmem:[%s2776 + $0x9] sm:$0xff]
        %v3453 = vld [vmem:[%s2776 + $0x19] sm:$0xff]
        %v3454 = vld [vmem:[%s2776 + $0x21] sm:$0xff]
        %v3455 = vld [vmem:[%s2776 + $0x31] sm:$0xff]
        %v3456 = vld [vmem:[%s2776 + $0x39] sm:$0xff]
        %v3457 = vld [vmem:[%s2776 + $0x49] sm:$0xff]
        %v3458 = vld [vmem:[%s2776 + $0x51] sm:$0xff]
        %v3459 = vld [vmem:[%s2776 + $0x61] sm:$0xff]
        %v3460 = vld [vmem:[%s2776 + $0x69] sm:$0xff]
        %v3461 = vld [vmem:[%s2776 + $0x79] sm:$0xff]
        %v3462 = vld [vmem:[%s2776 + $0x81] sm:$0xff]
        %v3463 = vld [vmem:[%s2776 + $0x91] sm:$0xff]
        %v3464 = vld [vmem:[%s2776 + $0x99] sm:$0xff]
        %v3465 = vld [vmem:[%s2776 + $0xa9] sm:$0xff]
        %v3466 = vld [vmem:[%s2776 + $0xb1] sm:$0xff]
        %v3467 = vld [vmem:[%s2776 + $0xc1] sm:$0xff]
        %v3468 = vld [vmem:[%s2776 + $0xc9] sm:$0xff]
        %v3469 = vld [vmem:[%s2776 + $0xd9] sm:$0xff]
        %v3470 = vld [vmem:[%s2776 + $0xe1] sm:$0xff]
        %v3471 = vld [vmem:[%s2776 + $0xf1] sm:$0xff]
        %v3472 = vld [vmem:[%s2776 + $0xf9] sm:$0xff]
        %v3473 = vld [vmem:[%s2776 + $0x109] sm:$0xff]
        %v3474 = vld [vmem:[%s2776 + $0x111] sm:$0xff]
        %v3475 = vld [vmem:[%s2776 + $0x121] sm:$0xff]
        %v3476 = vld [vmem:[%s2776 + $0x129] sm:$0xff]
        %v3477 = vld [vmem:[%s2776 + $0x139] sm:$0xff]
        %v3478 = vld [vmem:[%s2776 + $0x141] sm:$0xff]
        %v3479 = vld [vmem:[%s2776 + $0x151] sm:$0xff]
        %v3480 = vld [vmem:[%s2776 + $0x159] sm:$0xff]
        %v3481 = vld [vmem:[%s2776 + $0x169] sm:$0xff]
        %v3482 = vld [vmem:[%s2776 + $0x171] sm:$0xff]
        %3515 = vrot.lane.b32.xlu0 %v3451, 16
        %v3516 = vpop.permute.xlu0 %3515
        %3517 = vrot.lane.b32.xlu0 %v3452, 16
        %v3518 = vpop.permute.xlu0 %3517
        %3519 = vrot.lane.b32.xlu0 %v3453, 16
        %v3520 = vpop.permute.xlu0 %3519
        %3521 = vrot.lane.b32.xlu0 %v3454, 16
        %v3522 = vpop.permute.xlu0 %3521
        %3523 = vrot.lane.b32.xlu0 %v3455, 16
        %v3524 = vpop.permute.xlu0 %3523
        %3525 = vrot.lane.b32.xlu0 %v3456, 16
        %v3526 = vpop.permute.xlu0 %3525
        %3527 = vrot.lane.b32.xlu0 %v3457, 16
        %v3528 = vpop.permute.xlu0 %3527
        %3529 = vrot.lane.b32.xlu0 %v3458, 16
        %v3530 = vpop.permute.xlu0 %3529
        %3531 = vrot.lane.b32.xlu0 %v3459, 16
        %v3532 = vpop.permute.xlu0 %3531
        %3533 = vrot.lane.b32.xlu0 %v3460, 16
        %v3534 = vpop.permute.xlu0 %3533
        %3535 = vrot.lane.b32.xlu0 %v3461, 16
        %v3536 = vpop.permute.xlu0 %3535
        %3537 = vrot.lane.b32.xlu0 %v3462, 16
        %v3538 = vpop.permute.xlu0 %3537
        %3539 = vrot.lane.b32.xlu0 %v3463, 16
        %v3540 = vpop.permute.xlu0 %3539
        %3541 = vrot.lane.b32.xlu0 %v3464, 16
        %v3542 = vpop.permute.xlu0 %3541
        %3543 = vrot.lane.b32.xlu0 %v3465, 16
        %v3544 = vpop.permute.xlu0 %3543
        %3545 = vrot.lane.b32.xlu0 %v3466, 16
        %v3546 = vpop.permute.xlu0 %3545
        %3547 = vrot.lane.b32.xlu0 %v3467, 16
        %v3548 = vpop.permute.xlu0 %3547
        %3549 = vrot.lane.b32.xlu0 %v3468, 16
        %v3550 = vpop.permute.xlu0 %3549
        %3551 = vrot.lane.b32.xlu0 %v3469, 16
        %v3552 = vpop.permute.xlu0 %3551
        %3553 = vrot.lane.b32.xlu0 %v3470, 16
        %v3554 = vpop.permute.xlu0 %3553
        %3555 = vrot.lane.b32.xlu0 %v3471, 16
        %v3556 = vpop.permute.xlu0 %3555
        %3557 = vrot.lane.b32.xlu0 %v3472, 16
        %v3558 = vpop.permute.xlu0 %3557
        %3559 = vrot.lane.b32.xlu0 %v3473, 16
        %v3560 = vpop.permute.xlu0 %3559
        %3561 = vrot.lane.b32.xlu0 %v3474, 16
        %v3562 = vpop.permute.xlu0 %3561
        %3563 = vrot.lane.b32.xlu0 %v3475, 16
        %v3564 = vpop.permute.xlu0 %3563
        %3565 = vrot.lane.b32.xlu0 %v3476, 16
        %v3566 = vpop.permute.xlu0 %3565
        %3567 = vrot.lane.b32.xlu0 %v3477, 16
        %v3568 = vpop.permute.xlu0 %3567
        %3569 = vrot.lane.b32.xlu0 %v3478, 16
        %v3570 = vpop.permute.xlu0 %3569
        %3571 = vrot.lane.b32.xlu0 %v3479, 16
        %v3572 = vpop.permute.xlu0 %3571
        %3573 = vrot.lane.b32.xlu0 %v3480, 16
        %v3574 = vpop.permute.xlu0 %3573
        %3575 = vrot.lane.b32.xlu0 %v3481, 16
        %v3576 = vpop.permute.xlu0 %3575
        %3577 = vrot.lane.b32.xlu0 %v3482, 16
        %v3578 = vpop.permute.xlu0 %3577
        %vm3611 = vcmask 162944
        %3612 = vst.msk [vmem:[#allocation5] sm:$0xff] %vm3611, %v3516
        %3613 = vst.msk [vmem:[#allocation5 + $0x8] sm:$0xff] %vm3611, %v3518
        %3614 = vst.msk [vmem:[#allocation5 + $0x10] sm:$0xff] %vm3611, %v3520
        %3615 = vst.msk [vmem:[#allocation5 + $0x18] sm:$0xff] %vm3611, %v3522
        %3616 = vst.msk [vmem:[#allocation5 + $0x20] sm:$0xff] %vm3611, %v3524
        %3617 = vst.msk [vmem:[#allocation5 + $0x28] sm:$0xff] %vm3611, %v3526
        %3618 = vst.msk [vmem:[#allocation5 + $0x30] sm:$0xff] %vm3611, %v3528
        %3619 = vst.msk [vmem:[#allocation5 + $0x38] sm:$0xff] %vm3611, %v3530
        %3620 = vst.msk [vmem:[#allocation5 + $0x40] sm:$0xff] %vm3611, %v3532
        %3621 = vst.msk [vmem:[#allocation5 + $0x48] sm:$0xff] %vm3611, %v3534
        %3622 = vst.msk [vmem:[#allocation5 + $0x50] sm:$0xff] %vm3611, %v3536
        %3623 = vst.msk [vmem:[#allocation5 + $0x58] sm:$0xff] %vm3611, %v3538
        %3624 = vst.msk [vmem:[#allocation5 + $0x60] sm:$0xff] %vm3611, %v3540
        %3625 = vst.msk [vmem:[#allocation5 + $0x68] sm:$0xff] %vm3611, %v3542
        %3626 = vst.msk [vmem:[#allocation5 + $0x70] sm:$0xff] %vm3611, %v3544
        %3627 = vst.msk [vmem:[#allocation5 + $0x78] sm:$0xff] %vm3611, %v3546
        %3628 = vst.msk [vmem:[#allocation5 + $0x80] sm:$0xff] %vm3611, %v3548
        %3629 = vst.msk [vmem:[#allocation5 + $0x88] sm:$0xff] %vm3611, %v3550
        %3630 = vst.msk [vmem:[#allocation5 + $0x90] sm:$0xff] %vm3611, %v3552
        %3631 = vst.msk [vmem:[#allocation5 + $0x98] sm:$0xff] %vm3611, %v3554
        %3632 = vst.msk [vmem:[#allocation5 + $0xa0] sm:$0xff] %vm3611, %v3556
        %3633 = vst.msk [vmem:[#allocation5 + $0xa8] sm:$0xff] %vm3611, %v3558
        %3634 = vst.msk [vmem:[#allocation5 + $0xb0] sm:$0xff] %vm3611, %v3560
        %3635 = vst.msk [vmem:[#allocation5 + $0xb8] sm:$0xff] %vm3611, %v3562
        %3636 = vst.msk [vmem:[#allocation5 + $0xc0] sm:$0xff] %vm3611, %v3564
        %3637 = vst.msk [vmem:[#allocation5 + $0xc8] sm:$0xff] %vm3611, %v3566
        %3638 = vst.msk [vmem:[#allocation5 + $0xd0] sm:$0xff] %vm3611, %v3568
        %3639 = vst.msk [vmem:[#allocation5 + $0xd8] sm:$0xff] %vm3611, %v3570
        %3640 = vst.msk [vmem:[#allocation5 + $0xe0] sm:$0xff] %vm3611, %v3572
        %3641 = vst.msk [vmem:[#allocation5 + $0xe8] sm:$0xff] %vm3611, %v3574
        %3642 = vst.msk [vmem:[#allocation5 + $0xf0] sm:$0xff] %vm3611, %v3576
        %3643 = vst.msk [vmem:[#allocation5 + $0xf8] sm:$0xff] %vm3611, %v3578
        %v3644 = vld [vmem:[%s2776 + $0x2] sm:$0xff]
        %v3645 = vld [vmem:[%s2776 + $0xa] sm:$0xff]
        %v3646 = vld [vmem:[%s2776 + $0x1a] sm:$0xff]
        %v3647 = vld [vmem:[%s2776 + $0x22] sm:$0xff]
        %v3648 = vld [vmem:[%s2776 + $0x32] sm:$0xff]
        %v3649 = vld [vmem:[%s2776 + $0x3a] sm:$0xff]
        %v3650 = vld [vmem:[%s2776 + $0x4a] sm:$0xff]
        %v3651 = vld [vmem:[%s2776 + $0x52] sm:$0xff]
        %v3652 = vld [vmem:[%s2776 + $0x62] sm:$0xff]
        %v3653 = vld [vmem:[%s2776 + $0x6a] sm:$0xff]
        %v3654 = vld [vmem:[%s2776 + $0x7a] sm:$0xff]
        %v3655 = vld [vmem:[%s2776 + $0x82] sm:$0xff]
        %v3656 = vld [vmem:[%s2776 + $0x92] sm:$0xff]
        %v3657 = vld [vmem:[%s2776 + $0x9a] sm:$0xff]
        %v3658 = vld [vmem:[%s2776 + $0xaa] sm:$0xff]
        %v3659 = vld [vmem:[%s2776 + $0xb2] sm:$0xff]
        %v3660 = vld [vmem:[%s2776 + $0xc2] sm:$0xff]
        %v3661 = vld [vmem:[%s2776 + $0xca] sm:$0xff]
        %v3662 = vld [vmem:[%s2776 + $0xda] sm:$0xff]
        %v3663 = vld [vmem:[%s2776 + $0xe2] sm:$0xff]
        %v3664 = vld [vmem:[%s2776 + $0xf2] sm:$0xff]
        %v3665 = vld [vmem:[%s2776 + $0xfa] sm:$0xff]
        %v3666 = vld [vmem:[%s2776 + $0x10a] sm:$0xff]
        %v3667 = vld [vmem:[%s2776 + $0x112] sm:$0xff]
        %v3668 = vld [vmem:[%s2776 + $0x122] sm:$0xff]
        %v3669 = vld [vmem:[%s2776 + $0x12a] sm:$0xff]
        %v3670 = vld [vmem:[%s2776 + $0x13a] sm:$0xff]
        %v3671 = vld [vmem:[%s2776 + $0x142] sm:$0xff]
        %v3672 = vld [vmem:[%s2776 + $0x152] sm:$0xff]
        %v3673 = vld [vmem:[%s2776 + $0x15a] sm:$0xff]
        %v3674 = vld [vmem:[%s2776 + $0x16a] sm:$0xff]
        %v3675 = vld [vmem:[%s2776 + $0x172] sm:$0xff]
        %3708 = vrot.lane.b32.xlu0 %v3644, 20
        %v3709 = vpop.permute.xlu0 %3708
        %3710 = vrot.lane.b32.xlu0 %v3645, 20
        %v3711 = vpop.permute.xlu0 %3710
        %3712 = vrot.lane.b32.xlu0 %v3646, 20
        %v3713 = vpop.permute.xlu0 %3712
        %3714 = vrot.lane.b32.xlu0 %v3647, 20
        %v3715 = vpop.permute.xlu0 %3714
        %3716 = vrot.lane.b32.xlu0 %v3648, 20
        %v3717 = vpop.permute.xlu0 %3716
        %3718 = vrot.lane.b32.xlu0 %v3649, 20
        %v3719 = vpop.permute.xlu0 %3718
        %3720 = vrot.lane.b32.xlu0 %v3650, 20
        %v3721 = vpop.permute.xlu0 %3720
        %3722 = vrot.lane.b32.xlu0 %v3651, 20
        %v3723 = vpop.permute.xlu0 %3722
        %3724 = vrot.lane.b32.xlu0 %v3652, 20
        %v3725 = vpop.permute.xlu0 %3724
        %3726 = vrot.lane.b32.xlu0 %v3653, 20
        %v3727 = vpop.permute.xlu0 %3726
        %3728 = vrot.lane.b32.xlu0 %v3654, 20
        %v3729 = vpop.permute.xlu0 %3728
        %3730 = vrot.lane.b32.xlu0 %v3655, 20
        %v3731 = vpop.permute.xlu0 %3730
        %3732 = vrot.lane.b32.xlu0 %v3656, 20
        %v3733 = vpop.permute.xlu0 %3732
        %3734 = vrot.lane.b32.xlu0 %v3657, 20
        %v3735 = vpop.permute.xlu0 %3734
        %3736 = vrot.lane.b32.xlu0 %v3658, 20
        %v3737 = vpop.permute.xlu0 %3736
        %3738 = vrot.lane.b32.xlu0 %v3659, 20
        %v3739 = vpop.permute.xlu0 %3738
        %3740 = vrot.lane.b32.xlu0 %v3660, 20
        %v3741 = vpop.permute.xlu0 %3740
        %3742 = vrot.lane.b32.xlu0 %v3661, 20
        %v3743 = vpop.permute.xlu0 %3742
        %3744 = vrot.lane.b32.xlu0 %v3662, 20
        %v3745 = vpop.permute.xlu0 %3744
        %3746 = vrot.lane.b32.xlu0 %v3663, 20
        %v3747 = vpop.permute.xlu0 %3746
        %3748 = vrot.lane.b32.xlu0 %v3664, 20
        %v3749 = vpop.permute.xlu0 %3748
        %3750 = vrot.lane.b32.xlu0 %v3665, 20
        %v3751 = vpop.permute.xlu0 %3750
        %3752 = vrot.lane.b32.xlu0 %v3666, 20
        %v3753 = vpop.permute.xlu0 %3752
        %3754 = vrot.lane.b32.xlu0 %v3667, 20
        %v3755 = vpop.permute.xlu0 %3754
        %3756 = vrot.lane.b32.xlu0 %v3668, 20
        %v3757 = vpop.permute.xlu0 %3756
        %3758 = vrot.lane.b32.xlu0 %v3669, 20
        %v3759 = vpop.permute.xlu0 %3758
        %3760 = vrot.lane.b32.xlu0 %v3670, 20
        %v3761 = vpop.permute.xlu0 %3760
        %3762 = vrot.lane.b32.xlu0 %v3671, 20
        %v3763 = vpop.permute.xlu0 %3762
        %3764 = vrot.lane.b32.xlu0 %v3672, 20
        %v3765 = vpop.permute.xlu0 %3764
        %3766 = vrot.lane.b32.xlu0 %v3673, 20
        %v3767 = vpop.permute.xlu0 %3766
        %3768 = vrot.lane.b32.xlu0 %v3674, 20
        %v3769 = vpop.permute.xlu0 %3768
        %3770 = vrot.lane.b32.xlu0 %v3675, 20
        %v3771 = vpop.permute.xlu0 %3770
        %vm3804 = vcmask 195744
        %3805 = vst.msk [vmem:[#allocation5] sm:$0xff] %vm3804, %v3709
        %3806 = vst.msk [vmem:[#allocation5 + $0x8] sm:$0xff] %vm3804, %v3711
        %3807 = vst.msk [vmem:[#allocation5 + $0x10] sm:$0xff] %vm3804, %v3713
        %3808 = vst.msk [vmem:[#allocation5 + $0x18] sm:$0xff] %vm3804, %v3715
        %3809 = vst.msk [vmem:[#allocation5 + $0x20] sm:$0xff] %vm3804, %v3717
        %3810 = vst.msk [vmem:[#allocation5 + $0x28] sm:$0xff] %vm3804, %v3719
        %3811 = vst.msk [vmem:[#allocation5 + $0x30] sm:$0xff] %vm3804, %v3721
        %3812 = vst.msk [vmem:[#allocation5 + $0x38] sm:$0xff] %vm3804, %v3723
        %3813 = vst.msk [vmem:[#allocation5 + $0x40] sm:$0xff] %vm3804, %v3725
        %3814 = vst.msk [vmem:[#allocation5 + $0x48] sm:$0xff] %vm3804, %v3727
        %3815 = vst.msk [vmem:[#allocation5 + $0x50] sm:$0xff] %vm3804, %v3729
        %3816 = vst.msk [vmem:[#allocation5 + $0x58] sm:$0xff] %vm3804, %v3731
        %3817 = vst.msk [vmem:[#allocation5 + $0x60] sm:$0xff] %vm3804, %v3733
        %3818 = vst.msk [vmem:[#allocation5 + $0x68] sm:$0xff] %vm3804, %v3735
        %3819 = vst.msk [vmem:[#allocation5 + $0x70] sm:$0xff] %vm3804, %v3737
        %3820 = vst.msk [vmem:[#allocation5 + $0x78] sm:$0xff] %vm3804, %v3739
        %3821 = vst.msk [vmem:[#allocation5 + $0x80] sm:$0xff] %vm3804, %v3741
        %3822 = vst.msk [vmem:[#allocation5 + $0x88] sm:$0xff] %vm3804, %v3743
        %3823 = vst.msk [vmem:[#allocation5 + $0x90] sm:$0xff] %vm3804, %v3745
        %3824 = vst.msk [vmem:[#allocation5 + $0x98] sm:$0xff] %vm3804, %v3747
        %3825 = vst.msk [vmem:[#allocation5 + $0xa0] sm:$0xff] %vm3804, %v3749
        %3826 = vst.msk [vmem:[#allocation5 + $0xa8] sm:$0xff] %vm3804, %v3751
        %3827 = vst.msk [vmem:[#allocation5 + $0xb0] sm:$0xff] %vm3804, %v3753
        %3828 = vst.msk [vmem:[#allocation5 + $0xb8] sm:$0xff] %vm3804, %v3755
        %3829 = vst.msk [vmem:[#allocation5 + $0xc0] sm:$0xff] %vm3804, %v3757
        %3830 = vst.msk [vmem:[#allocation5 + $0xc8] sm:$0xff] %vm3804, %v3759
        %3831 = vst.msk [vmem:[#allocation5 + $0xd0] sm:$0xff] %vm3804, %v3761
        %3832 = vst.msk [vmem:[#allocation5 + $0xd8] sm:$0xff] %vm3804, %v3763
        %3833 = vst.msk [vmem:[#allocation5 + $0xe0] sm:$0xff] %vm3804, %v3765
        %3834 = vst.msk [vmem:[#allocation5 + $0xe8] sm:$0xff] %vm3804, %v3767
        %3835 = vst.msk [vmem:[#allocation5 + $0xf0] sm:$0xff] %vm3804, %v3769
        %3836 = vst.msk [vmem:[#allocation5 + $0xf8] sm:$0xff] %vm3804, %v3771
        %s3837 = scalar_lea.vmem [#allocation3], 48
        %v3838 = vld [vmem:[%s3837] sm:$0xff]
        %v3839 = vld [vmem:[%s3837 + $0x8] sm:$0xff]
        %v3840 = vld [vmem:[%s3837 + $0x18] sm:$0xff]
        %v3841 = vld [vmem:[%s3837 + $0x20] sm:$0xff]
        %v3842 = vld [vmem:[%s3837 + $0x30] sm:$0xff]
        %v3843 = vld [vmem:[%s3837 + $0x38] sm:$0xff]
        %v3844 = vld [vmem:[%s3837 + $0x48] sm:$0xff]
        %v3845 = vld [vmem:[%s3837 + $0x50] sm:$0xff]
        %v3846 = vld [vmem:[%s3837 + $0x60] sm:$0xff]
        %v3847 = vld [vmem:[%s3837 + $0x68] sm:$0xff]
        %v3848 = vld [vmem:[%s3837 + $0x78] sm:$0xff]
        %v3849 = vld [vmem:[%s3837 + $0x80] sm:$0xff]
        %v3850 = vld [vmem:[%s3837 + $0x90] sm:$0xff]
        %v3851 = vld [vmem:[%s3837 + $0x98] sm:$0xff]
        %v3852 = vld [vmem:[%s3837 + $0xa8] sm:$0xff]
        %v3853 = vld [vmem:[%s3837 + $0xb0] sm:$0xff]
        %v3854 = vld [vmem:[%s3837 + $0xc0] sm:$0xff]
        %v3855 = vld [vmem:[%s3837 + $0xc8] sm:$0xff]
        %v3856 = vld [vmem:[%s3837 + $0xd8] sm:$0xff]
        %v3857 = vld [vmem:[%s3837 + $0xe0] sm:$0xff]
        %v3858 = vld [vmem:[%s3837 + $0xf0] sm:$0xff]
        %v3859 = vld [vmem:[%s3837 + $0xf8] sm:$0xff]
        %v3860 = vld [vmem:[%s3837 + $0x108] sm:$0xff]
        %v3861 = vld [vmem:[%s3837 + $0x110] sm:$0xff]
        %v3862 = vld [vmem:[%s3837 + $0x120] sm:$0xff]
        %v3863 = vld [vmem:[%s3837 + $0x128] sm:$0xff]
        %v3864 = vld [vmem:[%s3837 + $0x138] sm:$0xff]
        %v3865 = vld [vmem:[%s3837 + $0x140] sm:$0xff]
        %v3866 = vld [vmem:[%s3837 + $0x150] sm:$0xff]
        %v3867 = vld [vmem:[%s3837 + $0x158] sm:$0xff]
        %v3868 = vld [vmem:[%s3837 + $0x168] sm:$0xff]
        %v3869 = vld [vmem:[%s3837 + $0x170] sm:$0xff]
        %3902 = vrot.lane.b32.xlu0 %v3838, 24
        %v3903 = vpop.permute.xlu0 %3902
        %3904 = vrot.lane.b32.xlu0 %v3839, 24
        %v3905 = vpop.permute.xlu0 %3904
        %3906 = vrot.lane.b32.xlu0 %v3840, 24
        %v3907 = vpop.permute.xlu0 %3906
        %3908 = vrot.lane.b32.xlu0 %v3841, 24
        %v3909 = vpop.permute.xlu0 %3908
        %3910 = vrot.lane.b32.xlu0 %v3842, 24
        %v3911 = vpop.permute.xlu0 %3910
        %3912 = vrot.lane.b32.xlu0 %v3843, 24
        %v3913 = vpop.permute.xlu0 %3912
        %3914 = vrot.lane.b32.xlu0 %v3844, 24
        %v3915 = vpop.permute.xlu0 %3914
        %3916 = vrot.lane.b32.xlu0 %v3845, 24
        %v3917 = vpop.permute.xlu0 %3916
        %3918 = vrot.lane.b32.xlu0 %v3846, 24
        %v3919 = vpop.permute.xlu0 %3918
        %3920 = vrot.lane.b32.xlu0 %v3847, 24
        %v3921 = vpop.permute.xlu0 %3920
        %3922 = vrot.lane.b32.xlu0 %v3848, 24
        %v3923 = vpop.permute.xlu0 %3922
        %3924 = vrot.lane.b32.xlu0 %v3849, 24
        %v3925 = vpop.permute.xlu0 %3924
        %3926 = vrot.lane.b32.xlu0 %v3850, 24
        %v3927 = vpop.permute.xlu0 %3926
        %3928 = vrot.lane.b32.xlu0 %v3851, 24
        %v3929 = vpop.permute.xlu0 %3928
        %3930 = vrot.lane.b32.xlu0 %v3852, 24
        %v3931 = vpop.permute.xlu0 %3930
        %3932 = vrot.lane.b32.xlu0 %v3853, 24
        %v3933 = vpop.permute.xlu0 %3932
        %3934 = vrot.lane.b32.xlu0 %v3854, 24
        %v3935 = vpop.permute.xlu0 %3934
        %3936 = vrot.lane.b32.xlu0 %v3855, 24
        %v3937 = vpop.permute.xlu0 %3936
        %3938 = vrot.lane.b32.xlu0 %v3856, 24
        %v3939 = vpop.permute.xlu0 %3938
        %3940 = vrot.lane.b32.xlu0 %v3857, 24
        %v3941 = vpop.permute.xlu0 %3940
        %3942 = vrot.lane.b32.xlu0 %v3858, 24
        %v3943 = vpop.permute.xlu0 %3942
        %3944 = vrot.lane.b32.xlu0 %v3859, 24
        %v3945 = vpop.permute.xlu0 %3944
        %3946 = vrot.lane.b32.xlu0 %v3860, 24
        %v3947 = vpop.permute.xlu0 %3946
        %3948 = vrot.lane.b32.xlu0 %v3861, 24
        %v3949 = vpop.permute.xlu0 %3948
        %3950 = vrot.lane.b32.xlu0 %v3862, 24
        %v3951 = vpop.permute.xlu0 %3950
        %3952 = vrot.lane.b32.xlu0 %v3863, 24
        %v3953 = vpop.permute.xlu0 %3952
        %3954 = vrot.lane.b32.xlu0 %v3864, 24
        %v3955 = vpop.permute.xlu0 %3954
        %3956 = vrot.lane.b32.xlu0 %v3865, 24
        %v3957 = vpop.permute.xlu0 %3956
        %3958 = vrot.lane.b32.xlu0 %v3866, 24
        %v3959 = vpop.permute.xlu0 %3958
        %3960 = vrot.lane.b32.xlu0 %v3867, 24
        %v3961 = vpop.permute.xlu0 %3960
        %3962 = vrot.lane.b32.xlu0 %v3868, 24
        %v3963 = vpop.permute.xlu0 %3962
        %3964 = vrot.lane.b32.xlu0 %v3869, 24
        %v3965 = vpop.permute.xlu0 %3964
        %vm3998 = vcmask 228544
        %3999 = vst.msk [vmem:[#allocation5] sm:$0xff] %vm3998, %v3903
        %4000 = vst.msk [vmem:[#allocation5 + $0x8] sm:$0xff] %vm3998, %v3905
        %4001 = vst.msk [vmem:[#allocation5 + $0x10] sm:$0xff] %vm3998, %v3907
        %4002 = vst.msk [vmem:[#allocation5 + $0x18] sm:$0xff] %vm3998, %v3909
        %4003 = vst.msk [vmem:[#allocation5 + $0x20] sm:$0xff] %vm3998, %v3911
        %4004 = vst.msk [vmem:[#allocation5 + $0x28] sm:$0xff] %vm3998, %v3913
        %4005 = vst.msk [vmem:[#allocation5 + $0x30] sm:$0xff] %vm3998, %v3915
        %4006 = vst.msk [vmem:[#allocation5 + $0x38] sm:$0xff] %vm3998, %v3917
        %4007 = vst.msk [vmem:[#allocation5 + $0x40] sm:$0xff] %vm3998, %v3919
        %4008 = vst.msk [vmem:[#allocation5 + $0x48] sm:$0xff] %vm3998, %v3921
        %4009 = vst.msk [vmem:[#allocation5 + $0x50] sm:$0xff] %vm3998, %v3923
        %4010 = vst.msk [vmem:[#allocation5 + $0x58] sm:$0xff] %vm3998, %v3925
        %4011 = vst.msk [vmem:[#allocation5 + $0x60] sm:$0xff] %vm3998, %v3927
        %4012 = vst.msk [vmem:[#allocation5 + $0x68] sm:$0xff] %vm3998, %v3929
        %4013 = vst.msk [vmem:[#allocation5 + $0x70] sm:$0xff] %vm3998, %v3931
        %4014 = vst.msk [vmem:[#allocation5 + $0x78] sm:$0xff] %vm3998, %v3933
        %4015 = vst.msk [vmem:[#allocation5 + $0x80] sm:$0xff] %vm3998, %v3935
        %4016 = vst.msk [vmem:[#allocation5 + $0x88] sm:$0xff] %vm3998, %v3937
        %4017 = vst.msk [vmem:[#allocation5 + $0x90] sm:$0xff] %vm3998, %v3939
        %4018 = vst.msk [vmem:[#allocation5 + $0x98] sm:$0xff] %vm3998, %v3941
        %4019 = vst.msk [vmem:[#allocation5 + $0xa0] sm:$0xff] %vm3998, %v3943
        %4020 = vst.msk [vmem:[#allocation5 + $0xa8] sm:$0xff] %vm3998, %v3945
        %4021 = vst.msk [vmem:[#allocation5 + $0xb0] sm:$0xff] %vm3998, %v3947
        %4022 = vst.msk [vmem:[#allocation5 + $0xb8] sm:$0xff] %vm3998, %v3949
        %4023 = vst.msk [vmem:[#allocation5 + $0xc0] sm:$0xff] %vm3998, %v3951
        %4024 = vst.msk [vmem:[#allocation5 + $0xc8] sm:$0xff] %vm3998, %v3953
        %4025 = vst.msk [vmem:[#allocation5 + $0xd0] sm:$0xff] %vm3998, %v3955
        %4026 = vst.msk [vmem:[#allocation5 + $0xd8] sm:$0xff] %vm3998, %v3957
        %4027 = vst.msk [vmem:[#allocation5 + $0xe0] sm:$0xff] %vm3998, %v3959
        %4028 = vst.msk [vmem:[#allocation5 + $0xe8] sm:$0xff] %vm3998, %v3961
        %4029 = vst.msk [vmem:[#allocation5 + $0xf0] sm:$0xff] %vm3998, %v3963
        %4030 = vst.msk [vmem:[#allocation5 + $0xf8] sm:$0xff] %vm3998, %v3965
        %v4031 = vld [vmem:[%s3837 + $0x1] sm:$0xff]
        %v4032 = vld [vmem:[%s3837 + $0x9] sm:$0xff]
        %v4033 = vld [vmem:[%s3837 + $0x19] sm:$0xff]
        %v4034 = vld [vmem:[%s3837 + $0x21] sm:$0xff]
        %v4035 = vld [vmem:[%s3837 + $0x31] sm:$0xff]
        %v4036 = vld [vmem:[%s3837 + $0x39] sm:$0xff]
        %v4037 = vld [vmem:[%s3837 + $0x49] sm:$0xff]
        %v4038 = vld [vmem:[%s3837 + $0x51] sm:$0xff]
        %v4039 = vld [vmem:[%s3837 + $0x61] sm:$0xff]
        %v4040 = vld [vmem:[%s3837 + $0x69] sm:$0xff]
        %v4041 = vld [vmem:[%s3837 + $0x79] sm:$0xff]
        %v4042 = vld [vmem:[%s3837 + $0x81] sm:$0xff]
        %v4043 = vld [vmem:[%s3837 + $0x91] sm:$0xff]
        %v4044 = vld [vmem:[%s3837 + $0x99] sm:$0xff]
        %v4045 = vld [vmem:[%s3837 + $0xa9] sm:$0xff]
        %v4046 = vld [vmem:[%s3837 + $0xb1] sm:$0xff]
        %v4047 = vld [vmem:[%s3837 + $0xc1] sm:$0xff]
        %v4048 = vld [vmem:[%s3837 + $0xc9] sm:$0xff]
        %v4049 = vld [vmem:[%s3837 + $0xd9] sm:$0xff]
        %v4050 = vld [vmem:[%s3837 + $0xe1] sm:$0xff]
        %v4051 = vld [vmem:[%s3837 + $0xf1] sm:$0xff]
        %v4052 = vld [vmem:[%s3837 + $0xf9] sm:$0xff]
        %v4053 = vld [vmem:[%s3837 + $0x109] sm:$0xff]
        %v4054 = vld [vmem:[%s3837 + $0x111] sm:$0xff]
        %v4055 = vld [vmem:[%s3837 + $0x121] sm:$0xff]
        %v4056 = vld [vmem:[%s3837 + $0x129] sm:$0xff]
        %v4057 = vld [vmem:[%s3837 + $0x139] sm:$0xff]
        %v4058 = vld [vmem:[%s3837 + $0x141] sm:$0xff]
        %v4059 = vld [vmem:[%s3837 + $0x151] sm:$0xff]
        %v4060 = vld [vmem:[%s3837 + $0x159] sm:$0xff]
        %v4061 = vld [vmem:[%s3837 + $0x169] sm:$0xff]
        %v4062 = vld [vmem:[%s3837 + $0x171] sm:$0xff]
        %4095 = vrot.lane.b32.xlu0 %v4031, 28
        %v4096 = vpop.permute.xlu0 %4095
        %4097 = vrot.lane.b32.xlu0 %v4032, 28
        %v4098 = vpop.permute.xlu0 %4097
        %4099 = vrot.lane.b32.xlu0 %v4033, 28
        %v4100 = vpop.permute.xlu0 %4099
        %4101 = vrot.lane.b32.xlu0 %v4034, 28
        %v4102 = vpop.permute.xlu0 %4101
        %4103 = vrot.lane.b32.xlu0 %v4035, 28
        %v4104 = vpop.permute.xlu0 %4103
        %4105 = vrot.lane.b32.xlu0 %v4036, 28
        %v4106 = vpop.permute.xlu0 %4105
        %4107 = vrot.lane.b32.xlu0 %v4037, 28
        %v4108 = vpop.permute.xlu0 %4107
        %4109 = vrot.lane.b32.xlu0 %v4038, 28
        %v4110 = vpop.permute.xlu0 %4109
        %4111 = vrot.lane.b32.xlu0 %v4039, 28
        %v4112 = vpop.permute.xlu0 %4111
        %4113 = vrot.lane.b32.xlu0 %v4040, 28
        %v4114 = vpop.permute.xlu0 %4113
        %4115 = vrot.lane.b32.xlu0 %v4041, 28
        %v4116 = vpop.permute.xlu0 %4115
        %4117 = vrot.lane.b32.xlu0 %v4042, 28
        %v4118 = vpop.permute.xlu0 %4117
        %4119 = vrot.lane.b32.xlu0 %v4043, 28
        %v4120 = vpop.permute.xlu0 %4119
        %4121 = vrot.lane.b32.xlu0 %v4044, 28
        %v4122 = vpop.permute.xlu0 %4121
        %4123 = vrot.lane.b32.xlu0 %v4045, 28
        %v4124 = vpop.permute.xlu0 %4123
        %4125 = vrot.lane.b32.xlu0 %v4046, 28
        %v4126 = vpop.permute.xlu0 %4125
        %4127 = vrot.lane.b32.xlu0 %v4047, 28
        %v4128 = vpop.permute.xlu0 %4127
        %4129 = vrot.lane.b32.xlu0 %v4048, 28
        %v4130 = vpop.permute.xlu0 %4129
        %4131 = vrot.lane.b32.xlu0 %v4049, 28
        %v4132 = vpop.permute.xlu0 %4131
        %4133 = vrot.lane.b32.xlu0 %v4050, 28
        %v4134 = vpop.permute.xlu0 %4133
        %4135 = vrot.lane.b32.xlu0 %v4051, 28
        %v4136 = vpop.permute.xlu0 %4135
        %4137 = vrot.lane.b32.xlu0 %v4052, 28
        %v4138 = vpop.permute.xlu0 %4137
        %4139 = vrot.lane.b32.xlu0 %v4053, 28
        %v4140 = vpop.permute.xlu0 %4139
        %4141 = vrot.lane.b32.xlu0 %v4054, 28
        %v4142 = vpop.permute.xlu0 %4141
        %4143 = vrot.lane.b32.xlu0 %v4055, 28
        %v4144 = vpop.permute.xlu0 %4143
        %4145 = vrot.lane.b32.xlu0 %v4056, 28
        %v4146 = vpop.permute.xlu0 %4145
        %4147 = vrot.lane.b32.xlu0 %v4057, 28
        %v4148 = vpop.permute.xlu0 %4147
        %4149 = vrot.lane.b32.xlu0 %v4058, 28
        %v4150 = vpop.permute.xlu0 %4149
        %4151 = vrot.lane.b32.xlu0 %v4059, 28
        %v4152 = vpop.permute.xlu0 %4151
        %4153 = vrot.lane.b32.xlu0 %v4060, 28
        %v4154 = vpop.permute.xlu0 %4153
        %4155 = vrot.lane.b32.xlu0 %v4061, 28
        %v4156 = vpop.permute.xlu0 %4155
        %4157 = vrot.lane.b32.xlu0 %v4062, 28
        %v4158 = vpop.permute.xlu0 %4157
        %vm4191 = vcmask 261344
        %4192 = vst.msk [vmem:[#allocation5] sm:$0xff] %vm4191, %v4096
        %4193 = vst.msk [vmem:[#allocation5 + $0x8] sm:$0xff] %vm4191, %v4098
        %4194 = vst.msk [vmem:[#allocation5 + $0x10] sm:$0xff] %vm4191, %v4100
        %4195 = vst.msk [vmem:[#allocation5 + $0x18] sm:$0xff] %vm4191, %v4102
        %4196 = vst.msk [vmem:[#allocation5 + $0x20] sm:$0xff] %vm4191, %v4104
        %4197 = vst.msk [vmem:[#allocation5 + $0x28] sm:$0xff] %vm4191, %v4106
        %4198 = vst.msk [vmem:[#allocation5 + $0x30] sm:$0xff] %vm4191, %v4108
        %4199 = vst.msk [vmem:[#allocation5 + $0x38] sm:$0xff] %vm4191, %v4110
        %4200 = vst.msk [vmem:[#allocation5 + $0x40] sm:$0xff] %vm4191, %v4112
        %4201 = vst.msk [vmem:[#allocation5 + $0x48] sm:$0xff] %vm4191, %v4114
        %4202 = vst.msk [vmem:[#allocation5 + $0x50] sm:$0xff] %vm4191, %v4116
        %4203 = vst.msk [vmem:[#allocation5 + $0x58] sm:$0xff] %vm4191, %v4118
        %4204 = vst.msk [vmem:[#allocation5 + $0x60] sm:$0xff] %vm4191, %v4120
        %4205 = vst.msk [vmem:[#allocation5 + $0x68] sm:$0xff] %vm4191, %v4122
        %4206 = vst.msk [vmem:[#allocation5 + $0x70] sm:$0xff] %vm4191, %v4124
        %4207 = vst.msk [vmem:[#allocation5 + $0x78] sm:$0xff] %vm4191, %v4126
        %4208 = vst.msk [vmem:[#allocation5 + $0x80] sm:$0xff] %vm4191, %v4128
        %4209 = vst.msk [vmem:[#allocation5 + $0x88] sm:$0xff] %vm4191, %v4130
        %4210 = vst.msk [vmem:[#allocation5 + $0x90] sm:$0xff] %vm4191, %v4132
        %4211 = vst.msk [vmem:[#allocation5 + $0x98] sm:$0xff] %vm4191, %v4134
        %4212 = vst.msk [vmem:[#allocation5 + $0xa0] sm:$0xff] %vm4191, %v4136
        %4213 = vst.msk [vmem:[#allocation5 + $0xa8] sm:$0xff] %vm4191, %v4138
        %4214 = vst.msk [vmem:[#allocation5 + $0xb0] sm:$0xff] %vm4191, %v4140
        %4215 = vst.msk [vmem:[#allocation5 + $0xb8] sm:$0xff] %vm4191, %v4142
        %4216 = vst.msk [vmem:[#allocation5 + $0xc0] sm:$0xff] %vm4191, %v4144
        %4217 = vst.msk [vmem:[#allocation5 + $0xc8] sm:$0xff] %vm4191, %v4146
        %4218 = vst.msk [vmem:[#allocation5 + $0xd0] sm:$0xff] %vm4191, %v4148
        %4219 = vst.msk [vmem:[#allocation5 + $0xd8] sm:$0xff] %vm4191, %v4150
        %4220 = vst.msk [vmem:[#allocation5 + $0xe0] sm:$0xff] %vm4191, %v4152
        %4221 = vst.msk [vmem:[#allocation5 + $0xe8] sm:$0xff] %vm4191, %v4154
        %4222 = vst.msk [vmem:[#allocation5 + $0xf0] sm:$0xff] %vm4191, %v4156
        %4223 = vst.msk [vmem:[#allocation5 + $0xf8] sm:$0xff] %vm4191, %v4158
        %v4224 = vld [vmem:[%s3837 + $0x2] sm:$0xff]
        %v4225 = vld [vmem:[%s3837 + $0xa] sm:$0xff]
        %v4226 = vld [vmem:[%s3837 + $0x1a] sm:$0xff]
        %v4227 = vld [vmem:[%s3837 + $0x22] sm:$0xff]
        %v4228 = vld [vmem:[%s3837 + $0x32] sm:$0xff]
        %v4229 = vld [vmem:[%s3837 + $0x3a] sm:$0xff]
        %v4230 = vld [vmem:[%s3837 + $0x4a] sm:$0xff]
        %v4231 = vld [vmem:[%s3837 + $0x52] sm:$0xff]
        %v4232 = vld [vmem:[%s3837 + $0x62] sm:$0xff]
        %v4233 = vld [vmem:[%s3837 + $0x6a] sm:$0xff]
        %v4234 = vld [vmem:[%s3837 + $0x7a] sm:$0xff]
        %v4235 = vld [vmem:[%s3837 + $0x82] sm:$0xff]
        %v4236 = vld [vmem:[%s3837 + $0x92] sm:$0xff]
        %v4237 = vld [vmem:[%s3837 + $0x9a] sm:$0xff]
        %v4238 = vld [vmem:[%s3837 + $0xaa] sm:$0xff]
        %v4239 = vld [vmem:[%s3837 + $0xb2] sm:$0xff]
        %v4240 = vld [vmem:[%s3837 + $0xc2] sm:$0xff]
        %v4241 = vld [vmem:[%s3837 + $0xca] sm:$0xff]
        %v4242 = vld [vmem:[%s3837 + $0xda] sm:$0xff]
        %v4243 = vld [vmem:[%s3837 + $0xe2] sm:$0xff]
        %v4244 = vld [vmem:[%s3837 + $0xf2] sm:$0xff]
        %v4245 = vld [vmem:[%s3837 + $0xfa] sm:$0xff]
        %v4246 = vld [vmem:[%s3837 + $0x10a] sm:$0xff]
        %v4247 = vld [vmem:[%s3837 + $0x112] sm:$0xff]
        %v4248 = vld [vmem:[%s3837 + $0x122] sm:$0xff]
        %v4249 = vld [vmem:[%s3837 + $0x12a] sm:$0xff]
        %v4250 = vld [vmem:[%s3837 + $0x13a] sm:$0xff]
        %v4251 = vld [vmem:[%s3837 + $0x142] sm:$0xff]
        %v4252 = vld [vmem:[%s3837 + $0x152] sm:$0xff]
        %v4253 = vld [vmem:[%s3837 + $0x15a] sm:$0xff]
        %v4254 = vld [vmem:[%s3837 + $0x16a] sm:$0xff]
        %v4255 = vld [vmem:[%s3837 + $0x172] sm:$0xff]
        %4288 = vrot.lane.b32.xlu0 %v4224, 32
        %v4289 = vpop.permute.xlu0 %4288
        %4290 = vrot.lane.b32.xlu0 %v4225, 32
        %v4291 = vpop.permute.xlu0 %4290
        %4292 = vrot.lane.b32.xlu0 %v4226, 32
        %v4293 = vpop.permute.xlu0 %4292
        %4294 = vrot.lane.b32.xlu0 %v4227, 32
        %v4295 = vpop.permute.xlu0 %4294
        %4296 = vrot.lane.b32.xlu0 %v4228, 32
        %v4297 = vpop.permute.xlu0 %4296
        %4298 = vrot.lane.b32.xlu0 %v4229, 32
        %v4299 = vpop.permute.xlu0 %4298
        %4300 = vrot.lane.b32.xlu0 %v4230, 32
        %v4301 = vpop.permute.xlu0 %4300
        %4302 = vrot.lane.b32.xlu0 %v4231, 32
        %v4303 = vpop.permute.xlu0 %4302
        %4304 = vrot.lane.b32.xlu0 %v4232, 32
        %v4305 = vpop.permute.xlu0 %4304
        %4306 = vrot.lane.b32.xlu0 %v4233, 32
        %v4307 = vpop.permute.xlu0 %4306
        %4308 = vrot.lane.b32.xlu0 %v4234, 32
        %v4309 = vpop.permute.xlu0 %4308
        %4310 = vrot.lane.b32.xlu0 %v4235, 32
        %v4311 = vpop.permute.xlu0 %4310
        %4312 = vrot.lane.b32.xlu0 %v4236, 32
        %v4313 = vpop.permute.xlu0 %4312
        %4314 = vrot.lane.b32.xlu0 %v4237, 32
        %v4315 = vpop.permute.xlu0 %4314
        %4316 = vrot.lane.b32.xlu0 %v4238, 32
        %v4317 = vpop.permute.xlu0 %4316
        %4318 = vrot.lane.b32.xlu0 %v4239, 32
        %v4319 = vpop.permute.xlu0 %4318
        %4320 = vrot.lane.b32.xlu0 %v4240, 32
        %v4321 = vpop.permute.xlu0 %4320
        %4322 = vrot.lane.b32.xlu0 %v4241, 32
        %v4323 = vpop.permute.xlu0 %4322
        %4324 = vrot.lane.b32.xlu0 %v4242, 32
        %v4325 = vpop.permute.xlu0 %4324
        %4326 = vrot.lane.b32.xlu0 %v4243, 32
        %v4327 = vpop.permute.xlu0 %4326
        %4328 = vrot.lane.b32.xlu0 %v4244, 32
        %v4329 = vpop.permute.xlu0 %4328
        %4330 = vrot.lane.b32.xlu0 %v4245, 32
        %v4331 = vpop.permute.xlu0 %4330
        %4332 = vrot.lane.b32.xlu0 %v4246, 32
        %v4333 = vpop.permute.xlu0 %4332
        %4334 = vrot.lane.b32.xlu0 %v4247, 32
        %v4335 = vpop.permute.xlu0 %4334
        %4336 = vrot.lane.b32.xlu0 %v4248, 32
        %v4337 = vpop.permute.xlu0 %4336
        %4338 = vrot.lane.b32.xlu0 %v4249, 32
        %v4339 = vpop.permute.xlu0 %4338
        %4340 = vrot.lane.b32.xlu0 %v4250, 32
        %v4341 = vpop.permute.xlu0 %4340
        %4342 = vrot.lane.b32.xlu0 %v4251, 32
        %v4343 = vpop.permute.xlu0 %4342
        %4344 = vrot.lane.b32.xlu0 %v4252, 32
        %v4345 = vpop.permute.xlu0 %4344
        %4346 = vrot.lane.b32.xlu0 %v4253, 32
        %v4347 = vpop.permute.xlu0 %4346
        %4348 = vrot.lane.b32.xlu0 %v4254, 32
        %v4349 = vpop.permute.xlu0 %4348
        %4350 = vrot.lane.b32.xlu0 %v4255, 32
        %v4351 = vpop.permute.xlu0 %4350
        %vm4384 = vcmask 294144
        %4385 = vst.msk [vmem:[#allocation5] sm:$0xff] %vm4384, %v4289
        %4386 = vst.msk [vmem:[#allocation5 + $0x8] sm:$0xff] %vm4384, %v4291
        %4387 = vst.msk [vmem:[#allocation5 + $0x10] sm:$0xff] %vm4384, %v4293
        %4388 = vst.msk [vmem:[#allocation5 + $0x18] sm:$0xff] %vm4384, %v4295
        %4389 = vst.msk [vmem:[#allocation5 + $0x20] sm:$0xff] %vm4384, %v4297
        %4390 = vst.msk [vmem:[#allocation5 + $0x28] sm:$0xff] %vm4384, %v4299
        %4391 = vst.msk [vmem:[#allocation5 + $0x30] sm:$0xff] %vm4384, %v4301
        %4392 = vst.msk [vmem:[#allocation5 + $0x38] sm:$0xff] %vm4384, %v4303
        %4393 = vst.msk [vmem:[#allocation5 + $0x40] sm:$0xff] %vm4384, %v4305
        %4394 = vst.msk [vmem:[#allocation5 + $0x48] sm:$0xff] %vm4384, %v4307
        %4395 = vst.msk [vmem:[#allocation5 + $0x50] sm:$0xff] %vm4384, %v4309
        %4396 = vst.msk [vmem:[#allocation5 + $0x58] sm:$0xff] %vm4384, %v4311
        %4397 = vst.msk [vmem:[#allocation5 + $0x60] sm:$0xff] %vm4384, %v4313
        %4398 = vst.msk [vmem:[#allocation5 + $0x68] sm:$0xff] %vm4384, %v4315
        %4399 = vst.msk [vmem:[#allocation5 + $0x70] sm:$0xff] %vm4384, %v4317
        %4400 = vst.msk [vmem:[#allocation5 + $0x78] sm:$0xff] %vm4384, %v4319
        %4401 = vst.msk [vmem:[#allocation5 + $0x80] sm:$0xff] %vm4384, %v4321
        %4402 = vst.msk [vmem:[#allocation5 + $0x88] sm:$0xff] %vm4384, %v4323
        %4403 = vst.msk [vmem:[#allocation5 + $0x90] sm:$0xff] %vm4384, %v4325
        %4404 = vst.msk [vmem:[#allocation5 + $0x98] sm:$0xff] %vm4384, %v4327
        %4405 = vst.msk [vmem:[#allocation5 + $0xa0] sm:$0xff] %vm4384, %v4329
        %4406 = vst.msk [vmem:[#allocation5 + $0xa8] sm:$0xff] %vm4384, %v4331
        %4407 = vst.msk [vmem:[#allocation5 + $0xb0] sm:$0xff] %vm4384, %v4333
        %4408 = vst.msk [vmem:[#allocation5 + $0xb8] sm:$0xff] %vm4384, %v4335
        %4409 = vst.msk [vmem:[#allocation5 + $0xc0] sm:$0xff] %vm4384, %v4337
        %4410 = vst.msk [vmem:[#allocation5 + $0xc8] sm:$0xff] %vm4384, %v4339
        %4411 = vst.msk [vmem:[#allocation5 + $0xd0] sm:$0xff] %vm4384, %v4341
        %4412 = vst.msk [vmem:[#allocation5 + $0xd8] sm:$0xff] %vm4384, %v4343
        %4413 = vst.msk [vmem:[#allocation5 + $0xe0] sm:$0xff] %vm4384, %v4345
        %4414 = vst.msk [vmem:[#allocation5 + $0xe8] sm:$0xff] %vm4384, %v4347
        %4415 = vst.msk [vmem:[#allocation5 + $0xf0] sm:$0xff] %vm4384, %v4349
        %4416 = vst.msk [vmem:[#allocation5 + $0xf8] sm:$0xff] %vm4384, %v4351
        %v4417 = vld [vmem:[%s5] sm:$0x3]
        %v4418 = vld [vmem:[#allocation5] sm:$0xff]
        %v4419 = vld [vmem:[#allocation5 + $0x8] sm:$0xff]
        %v4420 = vld [vmem:[#allocation5 + $0x10] sm:$0xff]
        %v4421 = vld [vmem:[#allocation5 + $0x18] sm:$0xff]
        %v4422 = vld [vmem:[#allocation5 + $0x20] sm:$0xff]
        %v4423 = vld [vmem:[#allocation5 + $0x28] sm:$0xff]
        %v4424 = vld [vmem:[#allocation5 + $0x30] sm:$0xff]
        %v4425 = vld [vmem:[#allocation5 + $0x38] sm:$0xff]
        %v4426 = vld [vmem:[#allocation5 + $0x40] sm:$0xff]
        %v4427 = vld [vmem:[#allocation5 + $0x48] sm:$0xff]
        %v4428 = vld [vmem:[#allocation5 + $0x50] sm:$0xff]
        %v4429 = vld [vmem:[#allocation5 + $0x58] sm:$0xff]
        %v4430 = vld [vmem:[#allocation5 + $0x60] sm:$0xff]
        %v4431 = vld [vmem:[#allocation5 + $0x68] sm:$0xff]
        %v4432 = vld [vmem:[#allocation5 + $0x70] sm:$0xff]
        %v4433 = vld [vmem:[#allocation5 + $0x78] sm:$0xff]
        %v4434 = vld [vmem:[#allocation5 + $0x80] sm:$0xff]
        %v4435 = vld [vmem:[#allocation5 + $0x88] sm:$0xff]
        %v4436 = vld [vmem:[#allocation5 + $0x90] sm:$0xff]
        %v4437 = vld [vmem:[#allocation5 + $0x98] sm:$0xff]
        %v4438 = vld [vmem:[#allocation5 + $0xa0] sm:$0xff]
        %v4439 = vld [vmem:[#allocation5 + $0xa8] sm:$0xff]
        %v4440 = vld [vmem:[#allocation5 + $0xb0] sm:$0xff]
        %v4441 = vld [vmem:[#allocation5 + $0xb8] sm:$0xff]
        %v4442 = vld [vmem:[#allocation5 + $0xc0] sm:$0xff]
        %v4443 = vld [vmem:[#allocation5 + $0xc8] sm:$0xff]
        %v4444 = vld [vmem:[#allocation5 + $0xd0] sm:$0xff]
        %v4445 = vld [vmem:[#allocation5 + $0xd8] sm:$0xff]
        %v4446 = vld [vmem:[#allocation5 + $0xe0] sm:$0xff]
        %v4447 = vld [vmem:[#allocation5 + $0xe8] sm:$0xff]
        %v4448 = vld [vmem:[#allocation5 + $0xf0] sm:$0xff]
        %v4449 = vld [vmem:[#allocation5 + $0xf8] sm:$0xff]
        %v4450 = vpack.c.bf16 %v4419, %v4418
        %v4451 = vpack.c.bf16 %v4421, %v4420
        %v4452 = vpack.c.bf16 %v4423, %v4422
        %v4453 = vpack.c.bf16 %v4425, %v4424
        %v4454 = vpack.c.bf16 %v4427, %v4426
        %v4455 = vpack.c.bf16 %v4429, %v4428
        %v4456 = vpack.c.bf16 %v4431, %v4430
        %v4457 = vpack.c.bf16 %v4433, %v4432
        %v4458 = vpack.c.bf16 %v4435, %v4434
        %v4459 = vpack.c.bf16 %v4437, %v4436
        %v4460 = vpack.c.bf16 %v4439, %v4438
        %v4461 = vpack.c.bf16 %v4441, %v4440
        %v4462 = vpack.c.bf16 %v4443, %v4442
        %v4463 = vpack.c.bf16 %v4445, %v4444
        %v4464 = vpack.c.bf16 %v4447, %v4446
        %v4465 = vpack.c.bf16 %v4449, %v4448
        %vm4466 = vcmask 293888
        %v4468 = vsel %vm4466, %v4417, 0
        %v4471 = vsel %vm4466, %v4450, 0
        %v4474 = vsel %vm4466, %v4451, 0
        %v4477 = vsel %vm4466, %v4452, 0
        %v4480 = vsel %vm4466, %v4453, 0
        %v4483 = vsel %vm4466, %v4454, 0
        %v4486 = vsel %vm4466, %v4455, 0
        %v4489 = vsel %vm4466, %v4456, 0
        %v4492 = vsel %vm4466, %v4457, 0
        %v4495 = vsel %vm4466, %v4458, 0
        %v4498 = vsel %vm4466, %v4459, 0
        %v4501 = vsel %vm4466, %v4460, 0
        %v4504 = vsel %vm4466, %v4461, 0
        %v4507 = vsel %vm4466, %v4462, 0
        %v4510 = vsel %vm4466, %v4463, 0
        %v4513 = vsel %vm4466, %v4464, 0
        %v4516 = vsel %vm4466, %v4465, 0
        %4518 = vmatprep.subr.bf16.mxu0 0
        %4519 = vmatpush1.bf16.xpose.msra.mxu0 %v4492
        %4520 = vmatprep.subr.bf16.mxu0 0
        %4521 = vmatpush1.bf16.xpose.msra.mxu0 %v4489
        %4522 = vmatprep.subr.bf16.mxu0 0
        %4523 = vmatpush1.bf16.xpose.msra.mxu0 %v4486
        %4524 = vmatprep.subr.bf16.mxu0 0
        %4525 = vmatpush1.bf16.xpose.msra.mxu0 %v4483
        %4526 = vmatprep.subr.bf16.mxu0 0
        %4527 = vmatpush1.bf16.xpose.msra.mxu0 %v4480
        %4528 = vmatprep.subr.bf16.mxu0 0
        %4529 = vmatpush1.bf16.xpose.msra.mxu0 %v4477
        %4530 = vmatprep.subr.bf16.mxu0 0
        %4531 = vmatpush1.bf16.xpose.msra.mxu0 %v4474
        %4532 = vmatprep.subr.bf16.mxu0 0
        %4533 = vmatpush1.bf16.xpose.msra.mxu0 %v4471
        %4534 = vmatprep.subr.bf16.mxu0 0
        %4535 = vmatpush2.bf16.xpose.msra.mxu0 %v4516
        %4536 = vmatprep.subr.bf16.mxu0 0
        %4537 = vmatpush2.bf16.xpose.msra.mxu0 %v4513
        %4538 = vmatprep.subr.bf16.mxu0 0
        %4539 = vmatpush2.bf16.xpose.msra.mxu0 %v4510
        %4540 = vmatprep.subr.bf16.mxu0 0
        %4541 = vmatpush2.bf16.xpose.msra.mxu0 %v4507
        %4542 = vmatprep.subr.bf16.mxu0 0
        %4543 = vmatpush2.bf16.xpose.msra.mxu0 %v4504
        %4544 = vmatprep.subr.bf16.mxu0 0
        %4545 = vmatpush2.bf16.xpose.msra.mxu0 %v4501
        %4546 = vmatprep.subr.bf16.mxu0 0
        %4547 = vmatpush2.bf16.xpose.msra.mxu0 %v4498
        %4548 = vmatprep.subr.bf16.mxu0 0
        %4549 = vmatpush2.bf16.xpose.msra.mxu0 %v4495
        %4550 = vmatprep.mubr.bf16.mxu0 0
        %4551 = vmatmul.mubr.bf16.gmra.mxu0 %v4468
        %v4552 = vpop.f32.mrf.mxu0
        %v4553 = vadd.f32 0.0, %v4552
        %v4554 = vpop.f32.mrf.mxu0
        %v4555 = vadd.f32 0.0, %v4554
        %v4556 = vpop.f32.mrf.mxu0
        %v4557 = vpop.f32.mrf.mxu0
        %4558 = vdwg.mxu0
        %v4559 = vld [vmem:[%s6] sm:$0xf]
        %4561 = vset.pattern.permute.xlu0 0
        %4562 = vperm.xlu0 %4561, %v4559
        %v4563 = vpop.permute.xlu0 %4562
        %v4565 = vmul.f32 %v4553, %v4563
        %v4566 = vmul.f32 %v4555, %v4563
        %v4567 = vld [vmem:[%s7] sm:$0xf]
        %4569 = vset.pattern.permute.xlu0 0
        %4570 = vperm.xlu0 %4569, %v4567
        %v4571 = vpop.permute.xlu0 %4570
        %v4573 = vadd.f32 %v4565, %v4571
        %v4574 = vadd.f32 %v4566, %v4571
        %v4575 = vmax.f32 %v4573, 0.0
        %v4576 = vmax.f32 %v4574, 0.0
        %v4579 = vcombine.low %v4575, %v4576
        %4581 = vst [vmem:[%s313] sm:$0xff] %v4579
        %s4582 = sand.u32 %s208, 1
        %s4583 = scalar_lea.sflag [#allocation7], %s4582
        %s4584 = sand.u32 %s208, 1
        %s4585 = smul.addr %s4584, 8
        %s4586 = scalar_lea.vmem [#allocation6], %s4585
        // Predicated region
        $region53: #{tpu_custom_call.1} parent=51 // pred_check
          %p4587 = pneg %p218
        $region54: #{tpu_custom_call.1} parent=51 // pred_check_branch
          %4589 = sbr.rel (%p4587) target = $region56
        $region55: #{tpu_custom_call.1} parent=51 // pred_region
          %s4591 = ssub.s32 128, 128
          %4592 = vsyncadd %s4583, %s4591
          %s4593 = smul.addr %s22, 2
          %s4594 = smul.addr %s4593, 64
          %s4595 = scalar_lea.hbm %s8, %s4594
          %s4597 = sshll.u32 %s4586, 4
          %s4598 = int_to_ptr.vmem [resolvable:$true] %s4597
          %4600 = dma.vmem_to_hbm [thread:$0]  %s4598, 128, %s4595, %s4583
        $region56: #{tpu_custom_call.1} parent=51 // pred_fallthru
          _
      $region52: #{tpu_custom_call.1} parent=5 // pred_fallthru
        _
      %p4601 = scmp.le.s32.totalorder 2, %s17
      // Predicated region
      $region57: #{tpu_custom_call.1} parent=5 // pred_check
        %p4602 = pneg %p4601
      $region58: #{tpu_custom_call.1} parent=5 // pred_check_branch
        %4604 = sbr.rel (%p4602) target = $region60
      $region59: #{tpu_custom_call.1} parent=5 // pred_region
        %s4605 = ssub.s32 %s17, 2
        // Predicated region
        $region61: #{tpu_custom_call.1} parent=59 // pred_check
          %p4606 = pneg %p224
        $region62: #{tpu_custom_call.1} parent=59 // pred_check_branch
          %4608 = sbr.rel (%p4606) target = $region64
        $region63: #{tpu_custom_call.1} parent=59 // pred_region
          %s4609 = sand.u32 %s209, 1
          %s4610 = scalar_lea.sflag [#allocation7], %s4609
          %s4611 = sand.u32 %s209, 1
          %s4612 = smul.addr %s4611, 8
          %s4613 = scalar_lea.vmem [#allocation6], %s4612
          %4614 = dma.done %s4610, 128
        $region64: #{tpu_custom_call.1} parent=59 // pred_fallthru
          _
      $region60: #{tpu_custom_call.1} parent=5 // pred_fallthru
        _
    $region6: #{tpu_custom_call.1} parent=1 // loop_footer
      %s21 = sadd.s32 1, %s17
    $region7: #{tpu_custom_call.1} parent=1 // loop_footer_branch
      %16 = sbr.rel target = $region3
    $region8: #{tpu_custom_call.1} parent=1 // loop_exit
      _
    %4615 = vsyncpa [#allocation7], 1
    %s4616 = scalar_lea.sflag [#allocation7], 1
    %4617 = vsyncpa %s4616, 1

</llo_original>
